<compile_context>
chip_gen: v6e
topology: v6e:2x2x1
jax: 0.10.0
libtpu: 0.0.40
codegen_flags: <defaults>
</compile_context>

<pallas_src>
import functools

import jax
import jax.numpy as jnp
import numpy as np
from jax.experimental import pallas as pl
from jax.experimental.pallas import tpu as pltpu


def _round_up(x, m):
    return -(-x // m) * m


def _make_datehead_kernel(level_shapes, cin, co_pad):
    """Kernel over refs: [x_l]*L + [w, b] + [o_l]*L + [pad_l]*L (VMEM scratch)."""
    L = len(level_shapes)

    def kernel(*refs):
        x_refs = refs[:L]                    # (1, cin, H, W) f32, unpadded
        w_ref = refs[L]                      # (9, co_pad, cin) bf16; tap t = kh*3+kw
        b_ref = refs[L + 1]                  # (co_pad, 1) f32
        o_refs = refs[L + 2:L + 2 + L]       # (1, co_pad, span_pad) f32
        pad_refs = refs[L + 2 + L:]          # (cin, (H+3)*(W+2)) bf16 scratch

        w = w_ref[...]                       # tiny, lives in vregs
        b = b_ref[...]

        for (H, W), x_ref, o_ref, pad_ref in zip(level_shapes, x_refs, o_refs, pad_refs):
            Wp = W + 2
            span = H * Wp                    # H rows of (W valid + 2 junk) lanes
            span_pad = o_ref.shape[2]

            # --- Build the zero-padded, flattened image in VMEM (bf16 cast folded in). ---
            # Zero the whole scratch every step: cheap VMEM traffic, and correct no matter
            # how the "parallel" grid axis is sharded across TensorCores (scratch is
            # per-core, so a "zero only on program_id==0" guard would be unsafe).
            pad_ref[...] = jnp.zeros_like(pad_ref)
            for h in range(H):
                start = (h + 1) * Wp + 1
                pad_ref[:, start:start + W] = x_ref[0, :, h, :].astype(jnp.bfloat16)

            # --- 3x3 conv as 9 accumulated MXU dots (no im2col temp). ---
            acc = None
            for kh in range(3):
                for kw in range(3):
                    t = kh * 3 + kw
                    off = kh * Wp + kw       # contiguous lane window of the flat image
                    part = jnp.dot(w[t], pad_ref[:, off:off + span],
                                   preferred_element_type=jnp.float32)
                    acc = part if acc is None else acc + part
            acc = acc + b                    # (co_pad, span) f32

            # --- Lane-dense store; pad tail kept deterministic (wrapper slices it off). ---
            o_ref[0, :, :span] = acc.astype(o_ref.dtype)
            if span_pad > span:
                o_ref[0, :, span:] = jnp.zeros((co_pad, span_pad - span), o_ref.dtype)

    return kernel


@functools.partial(jax.jit, static_argnames=("num_classes", "co_pad"))
def _datehead_forward(feats, w_taps, b_col, *, num_classes, co_pad):
    N, cin = feats[0].shape[0], feats[0].shape[1]
    level_shapes = tuple((int(f.shape[2]), int(f.shape[3])) for f in feats)
    span_pads = tuple(_round_up(H * (W + 2), 128) for (H, W) in level_shapes)

    kernel = _make_datehead_kernel(level_shapes, cin, co_pad)

    in_specs = [pl.BlockSpec((1, cin, H, W), lambda n: (n, 0, 0, 0))
                for (H, W) in level_shapes]
    in_specs += [pl.BlockSpec((9, co_pad, cin), lambda n: (0, 0, 0)),
                 pl.BlockSpec((co_pad, 1), lambda n: (0, 0))]
    out_specs = tuple(pl.BlockSpec((1, co_pad, sp), lambda n: (n, 0, 0))
                      for sp in span_pads)
    out_shape = tuple(jax.ShapeDtypeStruct((N, co_pad, sp), jnp.float32)
                      for sp in span_pads)
    scratch_shapes = [pltpu.VMEM((cin, (H + 3) * (W + 2)), jnp.bfloat16)
                      for (H, W) in level_shapes]

    # Explicit VMEM budget: double-buffered in/out blocks + padded scratch, with headroom.
    est = 2 * (w_taps.size * 2 + b_col.size * 4)
    for (H, W), sp in zip(level_shapes, span_pads):
        est += 2 * cin * H * W * 4            # input block (f32), double-buffered
        est += 2 * co_pad * sp * 4            # output block (f32), double-buffered
        est += cin * (H + 3) * (W + 2) * 2    # padded bf16 scratch
    vmem_limit = int(min(64 * 2**20, max(4 * 2**20, 2 * est)))

    outs = pl.pallas_call(
        kernel,
        out_shape=out_shape,
        grid=(N,),
        in_specs=in_specs,
        out_specs=out_specs,
        scratch_shapes=scratch_shapes,
        compiler_params=pltpu.CompilerParams(
            dimension_semantics=("parallel",),     # batch across TCs on megacore parts
            vmem_limit_bytes=vmem_limit),
    )(*feats, w_taps, b_col)

    # Split heads; also drops the 2 junk columns / Cout padding / lane padding.
    nc = num_classes
    cls_logits, bbox_reg, centerness = [], [], []
    for (H, W), o in zip(level_shapes, outs):
        span = H * (W + 2)
        o4 = o[:, :, :span].reshape(N, co_pad, H, W + 2)
        cls_logits.append(o4[:, :nc, :, :W])
        bbox_reg.append(o4[:, nc:nc + 4, :, :W])
        centerness.append(o4[:, nc + 4:nc + 5, :, :W])
    return tuple(cls_logits), tuple(bbox_reg), tuple(centerness)


class DateHeadPallas:
    """Pallas port of train/date_detector.py::DateHead (forward only)."""

    def __init__(self, in_channels, num_classes=4, key=None):
        if key is None:
            key = jax.random.PRNGKey(0)
        k = jax.random.split(key, 6)

        # Deterministic synthetic init (shapes match nn.Conv2d(in, out, 3)).
        def w(key, cout):
            return 0.1 * jax.random.normal(key, (cout, in_channels, 3, 3), jnp.float32)

        def b(key, cout):
            return 0.01 * jax.random.normal(key, (cout,), jnp.float32)

        self.num_classes = num_classes
        self.cls_w, self.cls_b = w(k[0], num_classes), b(k[1], num_classes)
        self.reg_w, self.reg_b = w(k[2], 4), b(k[3], 4)
        self.ctn_w, self.ctn_b = w(k[4], 1), b(k[5], 1)

        # Fuse the three heads along Cout, pad Cout to a full sublane group, split per tap.
        co = num_classes + 4 + 1
        co_pad = max(8, -(-co // 8) * 8)
        self._co_pad = co_pad
        w_all = jnp.concatenate([self.cls_w, self.reg_w, self.ctn_w], axis=0)  # (co,Cin,3,3)
        # (co,Cin,3,3) -> (3,3,co,Cin) -> (9, co, Cin); tap index t = kh*3 + kw.
        w_taps = jnp.transpose(w_all, (2, 3, 0, 1)).reshape(9, co, in_channels)
        w_taps = jnp.pad(w_taps, ((0, 0), (0, co_pad - co), (0, 0)))
        self._w_taps = w_taps.astype(jnp.bfloat16)                 # bf16 MXU operand
        b_all = jnp.concatenate([self.cls_b, self.reg_b, self.ctn_b], axis=0)
        self._b_col = jnp.pad(b_all, (0, co_pad - co)).reshape(co_pad, 1)  # f32

    def __call__(self, feats):
        cls, reg, ctn = _datehead_forward(
            tuple(feats), self._w_taps, self._b_col,
            num_classes=self.num_classes, co_pad=self._co_pad)
        return list(cls), list(reg), list(ctn)


def _ref_conv(x, w, b):
    y = jax.lax.conv_general_dilated(
        x, w, window_strides=(1, 1), padding="SAME",
        dimension_numbers=("NCHW", "OIHW", "NCHW"))
    return y + b[None, :, None, None]


if __name__ == "__main__":
    root = jax.random.PRNGKey(0)
    k_head, k_f0, k_f1 = jax.random.split(root, 3)

    in_channels, num_classes = 8, 4
    head = DateHeadPallas(in_channels, num_classes, key=k_head)

    # Two FPN-like feature levels, NCHW.
    feats = [
        jax.random.normal(k_f0, (2, in_channels, 16, 16), jnp.float32),
        jax.random.normal(k_f1, (2, in_channels, 8, 8), jnp.float32),
    ]

    cls_logits, bbox_reg, centerness = head(feats)
    jax.block_until_ready((cls_logits, bbox_reg, centerness))

    # Correctness check vs XLA's f32 conv.  The kernel uses bf16 operands with f32
    # accumulation, so the tolerance is loosened accordingly (~1e-2 scale errors expected).
    ok = True
    for f, c, r, t in zip(feats, cls_logits, bbox_reg, centerness):
        ok &= np.allclose(c, _ref_conv(f, head.cls_w, head.cls_b), atol=5e-2)
        ok &= np.allclose(r, _ref_conv(f, head.reg_w, head.reg_b), atol=5e-2)
        ok &= np.allclose(t, _ref_conv(f, head.ctn_w, head.ctn_b), atol=5e-2)
        ok &= c.shape == (f.shape[0], num_classes, f.shape[2], f.shape[3])
        ok &= r.shape == (f.shape[0], 4, f.shape[2], f.shape[3])
        ok &= t.shape == (f.shape[0], 1, f.shape[2], f.shape[3])
    assert ok, "Pallas DateHead mismatch vs reference conv"
    print("KERNEL_OK")
</pallas_src>

<mosaic_0001>
module attributes {stable_mosaic.version = 11 : i64} {
  func.func @kernel(%arg0: i32, %arg1: memref<1x8x16x16xf32, #tpu.memory_space<vmem>>, %arg2: memref<1x8x8x8xf32, #tpu.memory_space<vmem>>, %arg3: memref<9x16x8xbf16, #tpu.memory_space<vmem>>, %arg4: memref<16x1xf32, #tpu.memory_space<vmem>>, %arg5: memref<1x16x384xf32, #tpu.memory_space<vmem>>, %arg6: memref<1x16x128xf32, #tpu.memory_space<vmem>>, %arg7: memref<8x342xbf16, #tpu.memory_space<vmem>>, %arg8: memref<8x110xbf16, #tpu.memory_space<vmem>>) attributes {dimension_semantics = [#tpu.dimension_semantics<parallel>], iteration_bounds = array<i64: 2>, scalar_prefetch = 0 : i64, scratch_operands = 2 : i64, tpu.core_type = #tpu.core_type<tc>, window_params = [{transform_indices = @transform_0, window_bounds = array<i64: 1, 8, 16, 16>}, {transform_indices = @transform_1, window_bounds = array<i64: 1, 8, 8, 8>}, {pipeline_mode = #tpu.pipeline_mode<synchronous>, transform_indices = @transform_2, window_bounds = array<i64: 9, 16, 8>}, {pipeline_mode = #tpu.pipeline_mode<synchronous>, transform_indices = @transform_3, window_bounds = array<i64: 16, 1>}, {transform_indices = @transform_4, window_bounds = array<i64: 1, 16, 384>}, {transform_indices = @transform_5, window_bounds = array<i64: 1, 16, 128>}]} {
    %c0 = arith.constant 0 : index
    %c0_0 = arith.constant 0 : index
    %c0_1 = arith.constant 0 : index
    %0 = vector.load %arg3[%c0, %c0_0, %c0_1] : memref<9x16x8xbf16, #tpu.memory_space<vmem>>, vector<9x16x8xbf16>
    %c0_2 = arith.constant 0 : index
    %c0_3 = arith.constant 0 : index
    %1 = vector.load %arg4[%c0_2, %c0_3] : memref<16x1xf32, #tpu.memory_space<vmem>>, vector<16x1xf32>
    %cst = arith.constant 0.000000e+00 : bf16
    %2 = vector.broadcast %cst : bf16 to vector<8x342xbf16>
    %c0_4 = arith.constant 0 : index
    %c0_5 = arith.constant 0 : index
    %3 = vector.load %arg7[%c0_4, %c0_5] : memref<8x342xbf16, #tpu.memory_space<vmem>>, vector<8x342xbf16>
    tpu.vector_store %arg7[%c0_4, %c0_5], %2 {strides = array<i32>} : memref<8x342xbf16, #tpu.memory_space<vmem>>, vector<8x342xbf16>,
    %c0_6 = arith.constant 0 : index
    %c0_7 = arith.constant 0 : index
    %c0_8 = arith.constant 0 : index
    %c0_9 = arith.constant 0 : index
    %4 = vector.load %arg1[%c0_6, %c0_7, %c0_8, %c0_9] : memref<1x8x16x16xf32, #tpu.memory_space<vmem>>, vector<1x8x1x16xf32>
    %5 = vector.shape_cast %4 : vector<1x8x1x16xf32> to vector<8x16xf32>
    %6 = arith.truncf %5 : vector<8x16xf32> to vector<8x16xbf16>
    %c0_10 = arith.constant 0 : index
    %c19 = arith.constant 19 : index
    %7 = vector.load %arg7[%c0_10, %c19] : memref<8x342xbf16, #tpu.memory_space<vmem>>, vector<8x16xbf16>
    tpu.vector_store %arg7[%c0_10, %c19], %6 {strides = array<i32>} : memref<8x342xbf16, #tpu.memory_space<vmem>>, vector<8x16xbf16>,
    %c0_11 = arith.constant 0 : index
    %c0_12 = arith.constant 0 : index
    %c1 = arith.constant 1 : index
    %c0_13 = arith.constant 0 : index
    %8 = vector.load %arg1[%c0_11, %c0_12, %c1, %c0_13] : memref<1x8x16x16xf32, #tpu.memory_space<vmem>>, vector<1x8x1x16xf32>
    %9 = vector.shape_cast %8 : vector<1x8x1x16xf32> to vector<8x16xf32>
    %10 = arith.truncf %9 : vector<8x16xf32> to vector<8x16xbf16>
    %c0_14 = arith.constant 0 : index
    %c37 = arith.constant 37 : index
    %11 = vector.load %arg7[%c0_14, %c37] : memref<8x342xbf16, #tpu.memory_space<vmem>>, vector<8x16xbf16>
    tpu.vector_store %arg7[%c0_14, %c37], %10 {strides = array<i32>} : memref<8x342xbf16, #tpu.memory_space<vmem>>, vector<8x16xbf16>,
    %c0_15 = arith.constant 0 : index
    %c0_16 = arith.constant 0 : index
    %c2 = arith.constant 2 : index
    %c0_17 = arith.constant 0 : index
    %12 = vector.load %arg1[%c0_15, %c0_16, %c2, %c0_17] : memref<1x8x16x16xf32, #tpu.memory_space<vmem>>, vector<1x8x1x16xf32>
    %13 = vector.shape_cast %12 : vector<1x8x1x16xf32> to vector<8x16xf32>
    %14 = arith.truncf %13 : vector<8x16xf32> to vector<8x16xbf16>
    %c0_18 = arith.constant 0 : index
    %c55 = arith.constant 55 : index
    %15 = vector.load %arg7[%c0_18, %c55] : memref<8x342xbf16, #tpu.memory_space<vmem>>, vector<8x16xbf16>
    tpu.vector_store %arg7[%c0_18, %c55], %14 {strides = array<i32>} : memref<8x342xbf16, #tpu.memory_space<vmem>>, vector<8x16xbf16>,
    %c0_19 = arith.constant 0 : index
    %c0_20 = arith.constant 0 : index
    %c3 = arith.constant 3 : index
    %c0_21 = arith.constant 0 : index
    %16 = vector.load %arg1[%c0_19, %c0_20, %c3, %c0_21] : memref<1x8x16x16xf32, #tpu.memory_space<vmem>>, vector<1x8x1x16xf32>
    %17 = vector.shape_cast %16 : vector<1x8x1x16xf32> to vector<8x16xf32>
    %18 = arith.truncf %17 : vector<8x16xf32> to vector<8x16xbf16>
    %c0_22 = arith.constant 0 : index
    %c73 = arith.constant 73 : index
    %19 = vector.load %arg7[%c0_22, %c73] : memref<8x342xbf16, #tpu.memory_space<vmem>>, vector<8x16xbf16>
    tpu.vector_store %arg7[%c0_22, %c73], %18 {strides = array<i32>} : memref<8x342xbf16, #tpu.memory_space<vmem>>, vector<8x16xbf16>,
    %c0_23 = arith.constant 0 : index
    %c0_24 = arith.constant 0 : index
    %c4 = arith.constant 4 : index
    %c0_25 = arith.constant 0 : index
    %20 = vector.load %arg1[%c0_23, %c0_24, %c4, %c0_25] : memref<1x8x16x16xf32, #tpu.memory_space<vmem>>, vector<1x8x1x16xf32>
    %21 = vector.shape_cast %20 : vector<1x8x1x16xf32> to vector<8x16xf32>
    %22 = arith.truncf %21 : vector<8x16xf32> to vector<8x16xbf16>
    %c0_26 = arith.constant 0 : index
    %c91 = arith.constant 91 : index
    %23 = vector.load %arg7[%c0_26, %c91] : memref<8x342xbf16, #tpu.memory_space<vmem>>, vector<8x16xbf16>
    tpu.vector_store %arg7[%c0_26, %c91], %22 {strides = array<i32>} : memref<8x342xbf16, #tpu.memory_space<vmem>>, vector<8x16xbf16>,
    %c0_27 = arith.constant 0 : index
    %c0_28 = arith.constant 0 : index
    %c5 = arith.constant 5 : index
    %c0_29 = arith.constant 0 : index
    %24 = vector.load %arg1[%c0_27, %c0_28, %c5, %c0_29] : memref<1x8x16x16xf32, #tpu.memory_space<vmem>>, vector<1x8x1x16xf32>
    %25 = vector.shape_cast %24 : vector<1x8x1x16xf32> to vector<8x16xf32>
    %26 = arith.truncf %25 : vector<8x16xf32> to vector<8x16xbf16>
    %c0_30 = arith.constant 0 : index
    %c109 = arith.constant 109 : index
    %27 = vector.load %arg7[%c0_30, %c109] : memref<8x342xbf16, #tpu.memory_space<vmem>>, vector<8x16xbf16>
    tpu.vector_store %arg7[%c0_30, %c109], %26 {strides = array<i32>} : memref<8x342xbf16, #tpu.memory_space<vmem>>, vector<8x16xbf16>,
    %c0_31 = arith.constant 0 : index
    %c0_32 = arith.constant 0 : index
    %c6 = arith.constant 6 : index
    %c0_33 = arith.constant 0 : index
    %28 = vector.load %arg1[%c0_31, %c0_32, %c6, %c0_33] : memref<1x8x16x16xf32, #tpu.memory_space<vmem>>, vector<1x8x1x16xf32>
    %29 = vector.shape_cast %28 : vector<1x8x1x16xf32> to vector<8x16xf32>
    %30 = arith.truncf %29 : vector<8x16xf32> to vector<8x16xbf16>
    %c0_34 = arith.constant 0 : index
    %c127 = arith.constant 127 : index
    %31 = vector.load %arg7[%c0_34, %c127] : memref<8x342xbf16, #tpu.memory_space<vmem>>, vector<8x16xbf16>
    tpu.vector_store %arg7[%c0_34, %c127], %30 {strides = array<i32>} : memref<8x342xbf16, #tpu.memory_space<vmem>>, vector<8x16xbf16>,
    %c0_35 = arith.constant 0 : index
    %c0_36 = arith.constant 0 : index
    %c7 = arith.constant 7 : index
    %c0_37 = arith.constant 0 : index
    %32 = vector.load %arg1[%c0_35, %c0_36, %c7, %c0_37] : memref<1x8x16x16xf32, #tpu.memory_space<vmem>>, vector<1x8x1x16xf32>
    %33 = vector.shape_cast %32 : vector<1x8x1x16xf32> to vector<8x16xf32>
    %34 = arith.truncf %33 : vector<8x16xf32> to vector<8x16xbf16>
    %c0_38 = arith.constant 0 : index
    %c145 = arith.constant 145 : index
    %35 = vector.load %arg7[%c0_38, %c145] : memref<8x342xbf16, #tpu.memory_space<vmem>>, vector<8x16xbf16>
    tpu.vector_store %arg7[%c0_38, %c145], %34 {strides = array<i32>} : memref<8x342xbf16, #tpu.memory_space<vmem>>, vector<8x16xbf16>,
    %c0_39 = arith.constant 0 : index
    %c0_40 = arith.constant 0 : index
    %c8 = arith.constant 8 : index
    %c0_41 = arith.constant 0 : index
    %36 = vector.load %arg1[%c0_39, %c0_40, %c8, %c0_41] : memref<1x8x16x16xf32, #tpu.memory_space<vmem>>, vector<1x8x1x16xf32>
    %37 = vector.shape_cast %36 : vector<1x8x1x16xf32> to vector<8x16xf32>
    %38 = arith.truncf %37 : vector<8x16xf32> to vector<8x16xbf16>
    %c0_42 = arith.constant 0 : index
    %c163 = arith.constant 163 : index
    %39 = vector.load %arg7[%c0_42, %c163] : memref<8x342xbf16, #tpu.memory_space<vmem>>, vector<8x16xbf16>
    tpu.vector_store %arg7[%c0_42, %c163], %38 {strides = array<i32>} : memref<8x342xbf16, #tpu.memory_space<vmem>>, vector<8x16xbf16>,
    %c0_43 = arith.constant 0 : index
    %c0_44 = arith.constant 0 : index
    %c9 = arith.constant 9 : index
    %c0_45 = arith.constant 0 : index
    %40 = vector.load %arg1[%c0_43, %c0_44, %c9, %c0_45] : memref<1x8x16x16xf32, #tpu.memory_space<vmem>>, vector<1x8x1x16xf32>
    %41 = vector.shape_cast %40 : vector<1x8x1x16xf32> to vector<8x16xf32>
    %42 = arith.truncf %41 : vector<8x16xf32> to vector<8x16xbf16>
    %c0_46 = arith.constant 0 : index
    %c181 = arith.constant 181 : index
    %43 = vector.load %arg7[%c0_46, %c181] : memref<8x342xbf16, #tpu.memory_space<vmem>>, vector<8x16xbf16>
    tpu.vector_store %arg7[%c0_46, %c181], %42 {strides = array<i32>} : memref<8x342xbf16, #tpu.memory_space<vmem>>, vector<8x16xbf16>,
    %c0_47 = arith.constant 0 : index
    %c0_48 = arith.constant 0 : index
    %c10 = arith.constant 10 : index
    %c0_49 = arith.constant 0 : index
    %44 = vector.load %arg1[%c0_47, %c0_48, %c10, %c0_49] : memref<1x8x16x16xf32, #tpu.memory_space<vmem>>, vector<1x8x1x16xf32>
    %45 = vector.shape_cast %44 : vector<1x8x1x16xf32> to vector<8x16xf32>
    %46 = arith.truncf %45 : vector<8x16xf32> to vector<8x16xbf16>
    %c0_50 = arith.constant 0 : index
    %c199 = arith.constant 199 : index
    %47 = vector.load %arg7[%c0_50, %c199] : memref<8x342xbf16, #tpu.memory_space<vmem>>, vector<8x16xbf16>
    tpu.vector_store %arg7[%c0_50, %c199], %46 {strides = array<i32>} : memref<8x342xbf16, #tpu.memory_space<vmem>>, vector<8x16xbf16>,
    %c0_51 = arith.constant 0 : index
    %c0_52 = arith.constant 0 : index
    %c11 = arith.constant 11 : index
    %c0_53 = arith.constant 0 : index
    %48 = vector.load %arg1[%c0_51, %c0_52, %c11, %c0_53] : memref<1x8x16x16xf32, #tpu.memory_space<vmem>>, vector<1x8x1x16xf32>
    %49 = vector.shape_cast %48 : vector<1x8x1x16xf32> to vector<8x16xf32>
    %50 = arith.truncf %49 : vector<8x16xf32> to vector<8x16xbf16>
    %c0_54 = arith.constant 0 : index
    %c217 = arith.constant 217 : index
    %51 = vector.load %arg7[%c0_54, %c217] : memref<8x342xbf16, #tpu.memory_space<vmem>>, vector<8x16xbf16>
    tpu.vector_store %arg7[%c0_54, %c217], %50 {strides = array<i32>} : memref<8x342xbf16, #tpu.memory_space<vmem>>, vector<8x16xbf16>,
    %c0_55 = arith.constant 0 : index
    %c0_56 = arith.constant 0 : index
    %c12 = arith.constant 12 : index
    %c0_57 = arith.constant 0 : index
    %52 = vector.load %arg1[%c0_55, %c0_56, %c12, %c0_57] : memref<1x8x16x16xf32, #tpu.memory_space<vmem>>, vector<1x8x1x16xf32>
    %53 = vector.shape_cast %52 : vector<1x8x1x16xf32> to vector<8x16xf32>
    %54 = arith.truncf %53 : vector<8x16xf32> to vector<8x16xbf16>
    %c0_58 = arith.constant 0 : index
    %c235 = arith.constant 235 : index
    %55 = vector.load %arg7[%c0_58, %c235] : memref<8x342xbf16, #tpu.memory_space<vmem>>, vector<8x16xbf16>
    tpu.vector_store %arg7[%c0_58, %c235], %54 {strides = array<i32>} : memref<8x342xbf16, #tpu.memory_space<vmem>>, vector<8x16xbf16>,
    %c0_59 = arith.constant 0 : index
    %c0_60 = arith.constant 0 : index
    %c13 = arith.constant 13 : index
    %c0_61 = arith.constant 0 : index
    %56 = vector.load %arg1[%c0_59, %c0_60, %c13, %c0_61] : memref<1x8x16x16xf32, #tpu.memory_space<vmem>>, vector<1x8x1x16xf32>
    %57 = vector.shape_cast %56 : vector<1x8x1x16xf32> to vector<8x16xf32>
    %58 = arith.truncf %57 : vector<8x16xf32> to vector<8x16xbf16>
    %c0_62 = arith.constant 0 : index
    %c253 = arith.constant 253 : index
    %59 = vector.load %arg7[%c0_62, %c253] : memref<8x342xbf16, #tpu.memory_space<vmem>>, vector<8x16xbf16>
    tpu.vector_store %arg7[%c0_62, %c253], %58 {strides = array<i32>} : memref<8x342xbf16, #tpu.memory_space<vmem>>, vector<8x16xbf16>,
    %c0_63 = arith.constant 0 : index
    %c0_64 = arith.constant 0 : index
    %c14 = arith.constant 14 : index
    %c0_65 = arith.constant 0 : index
    %60 = vector.load %arg1[%c0_63, %c0_64, %c14, %c0_65] : memref<1x8x16x16xf32, #tpu.memory_space<vmem>>, vector<1x8x1x16xf32>
    %61 = vector.shape_cast %60 : vector<1x8x1x16xf32> to vector<8x16xf32>
    %62 = arith.truncf %61 : vector<8x16xf32> to vector<8x16xbf16>
    %c0_66 = arith.constant 0 : index
    %c271 = arith.constant 271 : index
    %63 = vector.load %arg7[%c0_66, %c271] : memref<8x342xbf16, #tpu.memory_space<vmem>>, vector<8x16xbf16>
    tpu.vector_store %arg7[%c0_66, %c271], %62 {strides = array<i32>} : memref<8x342xbf16, #tpu.memory_space<vmem>>, vector<8x16xbf16>,
    %c0_67 = arith.constant 0 : index
    %c0_68 = arith.constant 0 : index
    %c15 = arith.constant 15 : index
    %c0_69 = arith.constant 0 : index
    %64 = vector.load %arg1[%c0_67, %c0_68, %c15, %c0_69] : memref<1x8x16x16xf32, #tpu.memory_space<vmem>>, vector<1x8x1x16xf32>
    %65 = vector.shape_cast %64 : vector<1x8x1x16xf32> to vector<8x16xf32>
    %66 = arith.truncf %65 : vector<8x16xf32> to vector<8x16xbf16>
    %c0_70 = arith.constant 0 : index
    %c289 = arith.constant 289 : index
    %67 = vector.load %arg7[%c0_70, %c289] : memref<8x342xbf16, #tpu.memory_space<vmem>>, vector<8x16xbf16>
    tpu.vector_store %arg7[%c0_70, %c289], %66 {strides = array<i32>} : memref<8x342xbf16, #tpu.memory_space<vmem>>, vector<8x16xbf16>,
    %68 = vector.extract_strided_slice %0 {offsets = [0, 0, 0], sizes = [1, 16, 8], strides = [1, 1, 1]} : vector<9x16x8xbf16> to vector<1x16x8xbf16>
    %69 = vector.shape_cast %68 : vector<1x16x8xbf16> to vector<16x8xbf16>
    %c0_71 = arith.constant 0 : index
    %c0_72 = arith.constant 0 : index
    %70 = vector.load %arg7[%c0_71, %c0_72] : memref<8x342xbf16, #tpu.memory_space<vmem>>, vector<8x288xbf16>
    %cst_73 = arith.constant dense<0.000000e+00> : vector<16x288xf32>
    %71 = tpu.matmul %69, %70, %cst_73 {dimension_numbers = #tpu.dot_dimension_numbers<[1], [0], [0], [1], [0, 0, 1, 1], [], []>} : vector<16x8xbf16>, vector<8x288xbf16>, vector<16x288xf32> -> vector<16x288xf32>
    %72 = vector.extract_strided_slice %0 {offsets = [1, 0, 0], sizes = [1, 16, 8], strides = [1, 1, 1]} : vector<9x16x8xbf16> to vector<1x16x8xbf16>
    %73 = vector.shape_cast %72 : vector<1x16x8xbf16> to vector<16x8xbf16>
    %c0_74 = arith.constant 0 : index
    %c1_75 = arith.constant 1 : index
    %74 = vector.load %arg7[%c0_74, %c1_75] : memref<8x342xbf16, #tpu.memory_space<vmem>>, vector<8x288xbf16>
    %cst_76 = arith.constant dense<0.000000e+00> : vector<16x288xf32>
    %75 = tpu.matmul %73, %74, %cst_76 {dimension_numbers = #tpu.dot_dimension_numbers<[1], [0], [0], [1], [0, 0, 1, 1], [], []>} : vector<16x8xbf16>, vector<8x288xbf16>, vector<16x288xf32> -> vector<16x288xf32>
    %76 = arith.addf %71, %75 : vector<16x288xf32>
    %77 = vector.extract_strided_slice %0 {offsets = [2, 0, 0], sizes = [1, 16, 8], strides = [1, 1, 1]} : vector<9x16x8xbf16> to vector<1x16x8xbf16>
    %78 = vector.shape_cast %77 : vector<1x16x8xbf16> to vector<16x8xbf16>
    %c0_77 = arith.constant 0 : index
    %c2_78 = arith.constant 2 : index
    %79 = vector.load %arg7[%c0_77, %c2_78] : memref<8x342xbf16, #tpu.memory_space<vmem>>, vector<8x288xbf16>
    %cst_79 = arith.constant dense<0.000000e+00> : vector<16x288xf32>
    %80 = tpu.matmul %78, %79, %cst_79 {dimension_numbers = #tpu.dot_dimension_numbers<[1], [0], [0], [1], [0, 0, 1, 1], [], []>} : vector<16x8xbf16>, vector<8x288xbf16>, vector<16x288xf32> -> vector<16x288xf32>
    %81 = arith.addf %76, %80 : vector<16x288xf32>
    %82 = vector.extract_strided_slice %0 {offsets = [3, 0, 0], sizes = [1, 16, 8], strides = [1, 1, 1]} : vector<9x16x8xbf16> to vector<1x16x8xbf16>
    %83 = vector.shape_cast %82 : vector<1x16x8xbf16> to vector<16x8xbf16>
    %c0_80 = arith.constant 0 : index
    %c18 = arith.constant 18 : index
    %84 = vector.load %arg7[%c0_80, %c18] : memref<8x342xbf16, #tpu.memory_space<vmem>>, vector<8x288xbf16>
    %cst_81 = arith.constant dense<0.000000e+00> : vector<16x288xf32>
    %85 = tpu.matmul %83, %84, %cst_81 {dimension_numbers = #tpu.dot_dimension_numbers<[1], [0], [0], [1], [0, 0, 1, 1], [], []>} : vector<16x8xbf16>, vector<8x288xbf16>, vector<16x288xf32> -> vector<16x288xf32>
    %86 = arith.addf %81, %85 : vector<16x288xf32>
    %87 = vector.extract_strided_slice %0 {offsets = [4, 0, 0], sizes = [1, 16, 8], strides = [1, 1, 1]} : vector<9x16x8xbf16> to vector<1x16x8xbf16>
    %88 = vector.shape_cast %87 : vector<1x16x8xbf16> to vector<16x8xbf16>
    %c0_82 = arith.constant 0 : index
    %c19_83 = arith.constant 19 : index
    %89 = vector.load %arg7[%c0_82, %c19_83] : memref<8x342xbf16, #tpu.memory_space<vmem>>, vector<8x288xbf16>
    %cst_84 = arith.constant dense<0.000000e+00> : vector<16x288xf32>
    %90 = tpu.matmul %88, %89, %cst_84 {dimension_numbers = #tpu.dot_dimension_numbers<[1], [0], [0], [1], [0, 0, 1, 1], [], []>} : vector<16x8xbf16>, vector<8x288xbf16>, vector<16x288xf32> -> vector<16x288xf32>
    %91 = arith.addf %86, %90 : vector<16x288xf32>
    %92 = vector.extract_strided_slice %0 {offsets = [5, 0, 0], sizes = [1, 16, 8], strides = [1, 1, 1]} : vector<9x16x8xbf16> to vector<1x16x8xbf16>
    %93 = vector.shape_cast %92 : vector<1x16x8xbf16> to vector<16x8xbf16>
    %c0_85 = arith.constant 0 : index
    %c20 = arith.constant 20 : index
    %94 = vector.load %arg7[%c0_85, %c20] : memref<8x342xbf16, #tpu.memory_space<vmem>>, vector<8x288xbf16>
    %cst_86 = arith.constant dense<0.000000e+00> : vector<16x288xf32>
    %95 = tpu.matmul %93, %94, %cst_86 {dimension_numbers = #tpu.dot_dimension_numbers<[1], [0], [0], [1], [0, 0, 1, 1], [], []>} : vector<16x8xbf16>, vector<8x288xbf16>, vector<16x288xf32> -> vector<16x288xf32>
    %96 = arith.addf %91, %95 : vector<16x288xf32>
    %97 = vector.extract_strided_slice %0 {offsets = [6, 0, 0], sizes = [1, 16, 8], strides = [1, 1, 1]} : vector<9x16x8xbf16> to vector<1x16x8xbf16>
    %98 = vector.shape_cast %97 : vector<1x16x8xbf16> to vector<16x8xbf16>
    %c0_87 = arith.constant 0 : index
    %c36 = arith.constant 36 : index
    %99 = vector.load %arg7[%c0_87, %c36] : memref<8x342xbf16, #tpu.memory_space<vmem>>, vector<8x288xbf16>
    %cst_88 = arith.constant dense<0.000000e+00> : vector<16x288xf32>
    %100 = tpu.matmul %98, %99, %cst_88 {dimension_numbers = #tpu.dot_dimension_numbers<[1], [0], [0], [1], [0, 0, 1, 1], [], []>} : vector<16x8xbf16>, vector<8x288xbf16>, vector<16x288xf32> -> vector<16x288xf32>
    %101 = arith.addf %96, %100 : vector<16x288xf32>
    %102 = vector.extract_strided_slice %0 {offsets = [7, 0, 0], sizes = [1, 16, 8], strides = [1, 1, 1]} : vector<9x16x8xbf16> to vector<1x16x8xbf16>
    %103 = vector.shape_cast %102 : vector<1x16x8xbf16> to vector<16x8xbf16>
    %c0_89 = arith.constant 0 : index
    %c37_90 = arith.constant 37 : index
    %104 = vector.load %arg7[%c0_89, %c37_90] : memref<8x342xbf16, #tpu.memory_space<vmem>>, vector<8x288xbf16>
    %cst_91 = arith.constant dense<0.000000e+00> : vector<16x288xf32>
    %105 = tpu.matmul %103, %104, %cst_91 {dimension_numbers = #tpu.dot_dimension_numbers<[1], [0], [0], [1], [0, 0, 1, 1], [], []>} : vector<16x8xbf16>, vector<8x288xbf16>, vector<16x288xf32> -> vector<16x288xf32>
    %106 = arith.addf %101, %105 : vector<16x288xf32>
    %107 = vector.extract_strided_slice %0 {offsets = [8, 0, 0], sizes = [1, 16, 8], strides = [1, 1, 1]} : vector<9x16x8xbf16> to vector<1x16x8xbf16>
    %108 = vector.shape_cast %107 : vector<1x16x8xbf16> to vector<16x8xbf16>
    %c0_92 = arith.constant 0 : index
    %c38 = arith.constant 38 : index
    %109 = vector.load %arg7[%c0_92, %c38] : memref<8x342xbf16, #tpu.memory_space<vmem>>, vector<8x288xbf16>
    %cst_93 = arith.constant dense<0.000000e+00> : vector<16x288xf32>
    %110 = tpu.matmul %108, %109, %cst_93 {dimension_numbers = #tpu.dot_dimension_numbers<[1], [0], [0], [1], [0, 0, 1, 1], [], []>} : vector<16x8xbf16>, vector<8x288xbf16>, vector<16x288xf32> -> vector<16x288xf32>
    %111 = arith.addf %106, %110 : vector<16x288xf32>
    %112 = vector.broadcast %1 : vector<16x1xf32> to vector<16x288xf32>
    %113 = arith.addf %111, %112 : vector<16x288xf32>
    %c0_94 = arith.constant 0 : index
    %c0_95 = arith.constant 0 : index
    %c0_96 = arith.constant 0 : index
    %114 = vector.load %arg5[%c0_94, %c0_95, %c0_96] : memref<1x16x384xf32, #tpu.memory_space<vmem>>, vector<1x16x288xf32>
    %115 = vector.shape_cast %114 : vector<1x16x288xf32> to vector<16x288xf32>
    %116 = vector.shape_cast %113 : vector<16x288xf32> to vector<1x16x288xf32>
    tpu.vector_store %arg5[%c0_94, %c0_95, %c0_96], %116 {strides = array<i32>} : memref<1x16x384xf32, #tpu.memory_space<vmem>>, vector<1x16x288xf32>,
    %cst_97 = arith.constant 0.000000e+00 : f32
    %117 = vector.broadcast %cst_97 : f32 to vector<16x96xf32>
    %c0_98 = arith.constant 0 : index
    %c0_99 = arith.constant 0 : index
    %c288 = arith.constant 288 : index
    %118 = vector.load %arg5[%c0_98, %c0_99, %c288] : memref<1x16x384xf32, #tpu.memory_space<vmem>>, vector<1x16x96xf32>
    %119 = vector.shape_cast %118 : vector<1x16x96xf32> to vector<16x96xf32>
    %120 = vector.shape_cast %117 : vector<16x96xf32> to vector<1x16x96xf32>
    tpu.vector_store %arg5[%c0_98, %c0_99, %c288], %120 {strides = array<i32>} : memref<1x16x384xf32, #tpu.memory_space<vmem>>, vector<1x16x96xf32>,
    %cst_100 = arith.constant 0.000000e+00 : bf16
    %121 = vector.broadcast %cst_100 : bf16 to vector<8x110xbf16>
    %c0_101 = arith.constant 0 : index
    %c0_102 = arith.constant 0 : index
    %122 = vector.load %arg8[%c0_101, %c0_102] : memref<8x110xbf16, #tpu.memory_space<vmem>>, vector<8x110xbf16>
    tpu.vector_store %arg8[%c0_101, %c0_102], %121 {strides = array<i32>} : memref<8x110xbf16, #tpu.memory_space<vmem>>, vector<8x110xbf16>,
    %c0_103 = arith.constant 0 : index
    %c0_104 = arith.constant 0 : index
    %c0_105 = arith.constant 0 : index
    %c0_106 = arith.constant 0 : index
    %123 = vector.load %arg2[%c0_103, %c0_104, %c0_105, %c0_106] : memref<1x8x8x8xf32, #tpu.memory_space<vmem>>, vector<1x8x1x8xf32>
    %124 = vector.shape_cast %123 : vector<1x8x1x8xf32> to vector<8x8xf32>
    %125 = arith.truncf %124 : vector<8x8xf32> to vector<8x8xbf16>
    %c0_107 = arith.constant 0 : index
    %c11_108 = arith.constant 11 : index
    %126 = vector.load %arg8[%c0_107, %c11_108] : memref<8x110xbf16, #tpu.memory_space<vmem>>, vector<8x8xbf16>
    tpu.vector_store %arg8[%c0_107, %c11_108], %125 {strides = array<i32>} : memref<8x110xbf16, #tpu.memory_space<vmem>>, vector<8x8xbf16>,
    %c0_109 = arith.constant 0 : index
    %c0_110 = arith.constant 0 : index
    %c1_111 = arith.constant 1 : index
    %c0_112 = arith.constant 0 : index
    %127 = vector.load %arg2[%c0_109, %c0_110, %c1_111, %c0_112] : memref<1x8x8x8xf32, #tpu.memory_space<vmem>>, vector<1x8x1x8xf32>
    %128 = vector.shape_cast %127 : vector<1x8x1x8xf32> to vector<8x8xf32>
    %129 = arith.truncf %128 : vector<8x8xf32> to vector<8x8xbf16>
    %c0_113 = arith.constant 0 : index
    %c21 = arith.constant 21 : index
    %130 = vector.load %arg8[%c0_113, %c21] : memref<8x110xbf16, #tpu.memory_space<vmem>>, vector<8x8xbf16>
    tpu.vector_store %arg8[%c0_113, %c21], %129 {strides = array<i32>} : memref<8x110xbf16, #tpu.memory_space<vmem>>, vector<8x8xbf16>,
    %c0_114 = arith.constant 0 : index
    %c0_115 = arith.constant 0 : index
    %c2_116 = arith.constant 2 : index
    %c0_117 = arith.constant 0 : index
    %131 = vector.load %arg2[%c0_114, %c0_115, %c2_116, %c0_117] : memref<1x8x8x8xf32, #tpu.memory_space<vmem>>, vector<1x8x1x8xf32>
    %132 = vector.shape_cast %131 : vector<1x8x1x8xf32> to vector<8x8xf32>
    %133 = arith.truncf %132 : vector<8x8xf32> to vector<8x8xbf16>
    %c0_118 = arith.constant 0 : index
    %c31 = arith.constant 31 : index
    %134 = vector.load %arg8[%c0_118, %c31] : memref<8x110xbf16, #tpu.memory_space<vmem>>, vector<8x8xbf16>
    tpu.vector_store %arg8[%c0_118, %c31], %133 {strides = array<i32>} : memref<8x110xbf16, #tpu.memory_space<vmem>>, vector<8x8xbf16>,
    %c0_119 = arith.constant 0 : index
    %c0_120 = arith.constant 0 : index
    %c3_121 = arith.constant 3 : index
    %c0_122 = arith.constant 0 : index
    %135 = vector.load %arg2[%c0_119, %c0_120, %c3_121, %c0_122] : memref<1x8x8x8xf32, #tpu.memory_space<vmem>>, vector<1x8x1x8xf32>
    %136 = vector.shape_cast %135 : vector<1x8x1x8xf32> to vector<8x8xf32>
    %137 = arith.truncf %136 : vector<8x8xf32> to vector<8x8xbf16>
    %c0_123 = arith.constant 0 : index
    %c41 = arith.constant 41 : index
    %138 = vector.load %arg8[%c0_123, %c41] : memref<8x110xbf16, #tpu.memory_space<vmem>>, vector<8x8xbf16>
    tpu.vector_store %arg8[%c0_123, %c41], %137 {strides = array<i32>} : memref<8x110xbf16, #tpu.memory_space<vmem>>, vector<8x8xbf16>,
    %c0_124 = arith.constant 0 : index
    %c0_125 = arith.constant 0 : index
    %c4_126 = arith.constant 4 : index
    %c0_127 = arith.constant 0 : index
    %139 = vector.load %arg2[%c0_124, %c0_125, %c4_126, %c0_127] : memref<1x8x8x8xf32, #tpu.memory_space<vmem>>, vector<1x8x1x8xf32>
    %140 = vector.shape_cast %139 : vector<1x8x1x8xf32> to vector<8x8xf32>
    %141 = arith.truncf %140 : vector<8x8xf32> to vector<8x8xbf16>
    %c0_128 = arith.constant 0 : index
    %c51 = arith.constant 51 : index
    %142 = vector.load %arg8[%c0_128, %c51] : memref<8x110xbf16, #tpu.memory_space<vmem>>, vector<8x8xbf16>
    tpu.vector_store %arg8[%c0_128, %c51], %141 {strides = array<i32>} : memref<8x110xbf16, #tpu.memory_space<vmem>>, vector<8x8xbf16>,
    %c0_129 = arith.constant 0 : index
    %c0_130 = arith.constant 0 : index
    %c5_131 = arith.constant 5 : index
    %c0_132 = arith.constant 0 : index
    %143 = vector.load %arg2[%c0_129, %c0_130, %c5_131, %c0_132] : memref<1x8x8x8xf32, #tpu.memory_space<vmem>>, vector<1x8x1x8xf32>
    %144 = vector.shape_cast %143 : vector<1x8x1x8xf32> to vector<8x8xf32>
    %145 = arith.truncf %144 : vector<8x8xf32> to vector<8x8xbf16>
    %c0_133 = arith.constant 0 : index
    %c61 = arith.constant 61 : index
    %146 = vector.load %arg8[%c0_133, %c61] : memref<8x110xbf16, #tpu.memory_space<vmem>>, vector<8x8xbf16>
    tpu.vector_store %arg8[%c0_133, %c61], %145 {strides = array<i32>} : memref<8x110xbf16, #tpu.memory_space<vmem>>, vector<8x8xbf16>,
    %c0_134 = arith.constant 0 : index
    %c0_135 = arith.constant 0 : index
    %c6_136 = arith.constant 6 : index
    %c0_137 = arith.constant 0 : index
    %147 = vector.load %arg2[%c0_134, %c0_135, %c6_136, %c0_137] : memref<1x8x8x8xf32, #tpu.memory_space<vmem>>, vector<1x8x1x8xf32>
    %148 = vector.shape_cast %147 : vector<1x8x1x8xf32> to vector<8x8xf32>
    %149 = arith.truncf %148 : vector<8x8xf32> to vector<8x8xbf16>
    %c0_138 = arith.constant 0 : index
    %c71 = arith.constant 71 : index
    %150 = vector.load %arg8[%c0_138, %c71] : memref<8x110xbf16, #tpu.memory_space<vmem>>, vector<8x8xbf16>
    tpu.vector_store %arg8[%c0_138, %c71], %149 {strides = array<i32>} : memref<8x110xbf16, #tpu.memory_space<vmem>>, vector<8x8xbf16>,
    %c0_139 = arith.constant 0 : index
    %c0_140 = arith.constant 0 : index
    %c7_141 = arith.constant 7 : index
    %c0_142 = arith.constant 0 : index
    %151 = vector.load %arg2[%c0_139, %c0_140, %c7_141, %c0_142] : memref<1x8x8x8xf32, #tpu.memory_space<vmem>>, vector<1x8x1x8xf32>
    %152 = vector.shape_cast %151 : vector<1x8x1x8xf32> to vector<8x8xf32>
    %153 = arith.truncf %152 : vector<8x8xf32> to vector<8x8xbf16>
    %c0_143 = arith.constant 0 : index
    %c81 = arith.constant 81 : index
    %154 = vector.load %arg8[%c0_143, %c81] : memref<8x110xbf16, #tpu.memory_space<vmem>>, vector<8x8xbf16>
    tpu.vector_store %arg8[%c0_143, %c81], %153 {strides = array<i32>} : memref<8x110xbf16, #tpu.memory_space<vmem>>, vector<8x8xbf16>,
    %155 = vector.extract_strided_slice %0 {offsets = [0, 0, 0], sizes = [1, 16, 8], strides = [1, 1, 1]} : vector<9x16x8xbf16> to vector<1x16x8xbf16>
    %156 = vector.shape_cast %155 : vector<1x16x8xbf16> to vector<16x8xbf16>
    %c0_144 = arith.constant 0 : index
    %c0_145 = arith.constant 0 : index
    %157 = vector.load %arg8[%c0_144, %c0_145] : memref<8x110xbf16, #tpu.memory_space<vmem>>, vector<8x80xbf16>
    %cst_146 = arith.constant dense<0.000000e+00> : vector<16x80xf32>
    %158 = tpu.matmul %156, %157, %cst_146 {dimension_numbers = #tpu.dot_dimension_numbers<[1], [0], [0], [1], [0, 0, 1, 1], [], []>} : vector<16x8xbf16>, vector<8x80xbf16>, vector<16x80xf32> -> vector<16x80xf32>
    %159 = vector.extract_strided_slice %0 {offsets = [1, 0, 0], sizes = [1, 16, 8], strides = [1, 1, 1]} : vector<9x16x8xbf16> to vector<1x16x8xbf16>
    %160 = vector.shape_cast %159 : vector<1x16x8xbf16> to vector<16x8xbf16>
    %c0_147 = arith.constant 0 : index
    %c1_148 = arith.constant 1 : index
    %161 = vector.load %arg8[%c0_147, %c1_148] : memref<8x110xbf16, #tpu.memory_space<vmem>>, vector<8x80xbf16>
    %cst_149 = arith.constant dense<0.000000e+00> : vector<16x80xf32>
    %162 = tpu.matmul %160, %161, %cst_149 {dimension_numbers = #tpu.dot_dimension_numbers<[1], [0], [0], [1], [0, 0, 1, 1], [], []>} : vector<16x8xbf16>, vector<8x80xbf16>, vector<16x80xf32> -> vector<16x80xf32>
    %163 = arith.addf %158, %162 : vector<16x80xf32>
    %164 = vector.extract_strided_slice %0 {offsets = [2, 0, 0], sizes = [1, 16, 8], strides = [1, 1, 1]} : vector<9x16x8xbf16> to vector<1x16x8xbf16>
    %165 = vector.shape_cast %164 : vector<1x16x8xbf16> to vector<16x8xbf16>
    %c0_150 = arith.constant 0 : index
    %c2_151 = arith.constant 2 : index
    %166 = vector.load %arg8[%c0_150, %c2_151] : memref<8x110xbf16, #tpu.memory_space<vmem>>, vector<8x80xbf16>
    %cst_152 = arith.constant dense<0.000000e+00> : vector<16x80xf32>
    %167 = tpu.matmul %165, %166, %cst_152 {dimension_numbers = #tpu.dot_dimension_numbers<[1], [0], [0], [1], [0, 0, 1, 1], [], []>} : vector<16x8xbf16>, vector<8x80xbf16>, vector<16x80xf32> -> vector<16x80xf32>
    %168 = arith.addf %163, %167 : vector<16x80xf32>
    %169 = vector.extract_strided_slice %0 {offsets = [3, 0, 0], sizes = [1, 16, 8], strides = [1, 1, 1]} : vector<9x16x8xbf16> to vector<1x16x8xbf16>
    %170 = vector.shape_cast %169 : vector<1x16x8xbf16> to vector<16x8xbf16>
    %c0_153 = arith.constant 0 : index
    %c10_154 = arith.constant 10 : index
    %171 = vector.load %arg8[%c0_153, %c10_154] : memref<8x110xbf16, #tpu.memory_space<vmem>>, vector<8x80xbf16>
    %cst_155 = arith.constant dense<0.000000e+00> : vector<16x80xf32>
    %172 = tpu.matmul %170, %171, %cst_155 {dimension_numbers = #tpu.dot_dimension_numbers<[1], [0], [0], [1], [0, 0, 1, 1], [], []>} : vector<16x8xbf16>, vector<8x80xbf16>, vector<16x80xf32> -> vector<16x80xf32>
    %173 = arith.addf %168, %172 : vector<16x80xf32>
    %174 = vector.extract_strided_slice %0 {offsets = [4, 0, 0], sizes = [1, 16, 8], strides = [1, 1, 1]} : vector<9x16x8xbf16> to vector<1x16x8xbf16>
    %175 = vector.shape_cast %174 : vector<1x16x8xbf16> to vector<16x8xbf16>
    %c0_156 = arith.constant 0 : index
    %c11_157 = arith.constant 11 : index
    %176 = vector.load %arg8[%c0_156, %c11_157] : memref<8x110xbf16, #tpu.memory_space<vmem>>, vector<8x80xbf16>
    %cst_158 = arith.constant dense<0.000000e+00> : vector<16x80xf32>
    %177 = tpu.matmul %175, %176, %cst_158 {dimension_numbers = #tpu.dot_dimension_numbers<[1], [0], [0], [1], [0, 0, 1, 1], [], []>} : vector<16x8xbf16>, vector<8x80xbf16>, vector<16x80xf32> -> vector<16x80xf32>
    %178 = arith.addf %173, %177 : vector<16x80xf32>
    %179 = vector.extract_strided_slice %0 {offsets = [5, 0, 0], sizes = [1, 16, 8], strides = [1, 1, 1]} : vector<9x16x8xbf16> to vector<1x16x8xbf16>
    %180 = vector.shape_cast %179 : vector<1x16x8xbf16> to vector<16x8xbf16>
    %c0_159 = arith.constant 0 : index
    %c12_160 = arith.constant 12 : index
    %181 = vector.load %arg8[%c0_159, %c12_160] : memref<8x110xbf16, #tpu.memory_space<vmem>>, vector<8x80xbf16>
    %cst_161 = arith.constant dense<0.000000e+00> : vector<16x80xf32>
    %182 = tpu.matmul %180, %181, %cst_161 {dimension_numbers = #tpu.dot_dimension_numbers<[1], [0], [0], [1], [0, 0, 1, 1], [], []>} : vector<16x8xbf16>, vector<8x80xbf16>, vector<16x80xf32> -> vector<16x80xf32>
    %183 = arith.addf %178, %182 : vector<16x80xf32>
    %184 = vector.extract_strided_slice %0 {offsets = [6, 0, 0], sizes = [1, 16, 8], strides = [1, 1, 1]} : vector<9x16x8xbf16> to vector<1x16x8xbf16>
    %185 = vector.shape_cast %184 : vector<1x16x8xbf16> to vector<16x8xbf16>
    %c0_162 = arith.constant 0 : index
    %c20_163 = arith.constant 20 : index
    %186 = vector.load %arg8[%c0_162, %c20_163] : memref<8x110xbf16, #tpu.memory_space<vmem>>, vector<8x80xbf16>
    %cst_164 = arith.constant dense<0.000000e+00> : vector<16x80xf32>
    %187 = tpu.matmul %185, %186, %cst_164 {dimension_numbers = #tpu.dot_dimension_numbers<[1], [0], [0], [1], [0, 0, 1, 1], [], []>} : vector<16x8xbf16>, vector<8x80xbf16>, vector<16x80xf32> -> vector<16x80xf32>
    %188 = arith.addf %183, %187 : vector<16x80xf32>
    %189 = vector.extract_strided_slice %0 {offsets = [7, 0, 0], sizes = [1, 16, 8], strides = [1, 1, 1]} : vector<9x16x8xbf16> to vector<1x16x8xbf16>
    %190 = vector.shape_cast %189 : vector<1x16x8xbf16> to vector<16x8xbf16>
    %c0_165 = arith.constant 0 : index
    %c21_166 = arith.constant 21 : index
    %191 = vector.load %arg8[%c0_165, %c21_166] : memref<8x110xbf16, #tpu.memory_space<vmem>>, vector<8x80xbf16>
    %cst_167 = arith.constant dense<0.000000e+00> : vector<16x80xf32>
    %192 = tpu.matmul %190, %191, %cst_167 {dimension_numbers = #tpu.dot_dimension_numbers<[1], [0], [0], [1], [0, 0, 1, 1], [], []>} : vector<16x8xbf16>, vector<8x80xbf16>, vector<16x80xf32> -> vector<16x80xf32>
    %193 = arith.addf %188, %192 : vector<16x80xf32>
    %194 = vector.extract_strided_slice %0 {offsets = [8, 0, 0], sizes = [1, 16, 8], strides = [1, 1, 1]} : vector<9x16x8xbf16> to vector<1x16x8xbf16>
    %195 = vector.shape_cast %194 : vector<1x16x8xbf16> to vector<16x8xbf16>
    %c0_168 = arith.constant 0 : index
    %c22 = arith.constant 22 : index
    %196 = vector.load %arg8[%c0_168, %c22] : memref<8x110xbf16, #tpu.memory_space<vmem>>, vector<8x80xbf16>
    %cst_169 = arith.constant dense<0.000000e+00> : vector<16x80xf32>
    %197 = tpu.matmul %195, %196, %cst_169 {dimension_numbers = #tpu.dot_dimension_numbers<[1], [0], [0], [1], [0, 0, 1, 1], [], []>} : vector<16x8xbf16>, vector<8x80xbf16>, vector<16x80xf32> -> vector<16x80xf32>
    %198 = arith.addf %193, %197 : vector<16x80xf32>
    %199 = vector.broadcast %1 : vector<16x1xf32> to vector<16x80xf32>
    %200 = arith.addf %198, %199 : vector<16x80xf32>
    %c0_170 = arith.constant 0 : index
    %c0_171 = arith.constant 0 : index
    %c0_172 = arith.constant 0 : index
    %201 = vector.load %arg6[%c0_170, %c0_171, %c0_172] : memref<1x16x128xf32, #tpu.memory_space<vmem>>, vector<1x16x80xf32>
    %202 = vector.shape_cast %201 : vector<1x16x80xf32> to vector<16x80xf32>
    %203 = vector.shape_cast %200 : vector<16x80xf32> to vector<1x16x80xf32>
    tpu.vector_store %arg6[%c0_170, %c0_171, %c0_172], %203 {strides = array<i32>} : memref<1x16x128xf32, #tpu.memory_space<vmem>>, vector<1x16x80xf32>,
    %cst_173 = arith.constant 0.000000e+00 : f32
    %204 = vector.broadcast %cst_173 : f32 to vector<16x48xf32>
    %c0_174 = arith.constant 0 : index
    %c0_175 = arith.constant 0 : index
    %c80 = arith.constant 80 : index
    %205 = vector.load %arg6[%c0_174, %c0_175, %c80] : memref<1x16x128xf32, #tpu.memory_space<vmem>>, vector<1x16x48xf32>
    %206 = vector.shape_cast %205 : vector<1x16x48xf32> to vector<16x48xf32>
    %207 = vector.shape_cast %204 : vector<16x48xf32> to vector<1x16x48xf32>
    tpu.vector_store %arg6[%c0_174, %c0_175, %c80], %207 {strides = array<i32>} : memref<1x16x128xf32, #tpu.memory_space<vmem>>, vector<1x16x48xf32>,
    return
  }
  func.func @transform_0(%arg0: i32) -> (i32, i32, i32, i32) {
    %c0_i32 = arith.constant 0 : i32
    %c0_i32_0 = arith.constant 0 : i32
    %c0_i32_1 = arith.constant 0 : i32
    %c0_i32_2 = arith.constant 0 : i32
    return %arg0, %c0_i32, %c0_i32_0, %c0_i32_1 : i32, i32, i32, i32
  }
  func.func @transform_1(%arg0: i32) -> (i32, i32, i32, i32) {
    %c0_i32 = arith.constant 0 : i32
    %c0_i32_0 = arith.constant 0 : i32
    %c0_i32_1 = arith.constant 0 : i32
    %c0_i32_2 = arith.constant 0 : i32
    return %arg0, %c0_i32, %c0_i32_0, %c0_i32_1 : i32, i32, i32, i32
  }
  func.func @transform_2(%arg0: i32) -> (i32, i32, i32) {
    %c0_i32 = arith.constant 0 : i32
    %c0_i32_0 = arith.constant 0 : i32
    %c0_i32_1 = arith.constant 0 : i32
    %c0_i32_2 = arith.constant 0 : i32
    return %c0_i32, %c0_i32_0, %c0_i32_1 : i32, i32, i32
  }
  func.func @transform_3(%arg0: i32) -> (i32, i32) {
    %c0_i32 = arith.constant 0 : i32
    %c0_i32_0 = arith.constant 0 : i32
    %c0_i32_1 = arith.constant 0 : i32
    return %c0_i32, %c0_i32_0 : i32, i32
  }
  func.func @transform_4(%arg0: i32) -> (i32, i32, i32) {
    %c0_i32 = arith.constant 0 : i32
    %c0_i32_0 = arith.constant 0 : i32
    %c0_i32_1 = arith.constant 0 : i32
    return %arg0, %c0_i32, %c0_i32_0 : i32, i32, i32
  }
  func.func @transform_5(%arg0: i32) -> (i32, i32, i32) {
    %c0_i32 = arith.constant 0 : i32
    %c0_i32_0 = arith.constant 0 : i32
    %c0_i32_1 = arith.constant 0 : i32
    return %arg0, %c0_i32, %c0_i32_0 : i32, i32, i32
  }
}

</mosaic_0001>

<llo_original>
// kernel: _datehead_forward.1
$region0: #{_datehead_forward.1}
  #allocation0 [shape = 'u32[]', space=smem, size = 0x4, offset = 0x4, fixed_abs, tag = 'smem constant byte address 0x4 - core index']
  #allocation1 [shape = 'u32[144,128]{1,0:T(1,128)}', space=vmem, size = 0x12000, scoped, tag = 'internal scratch']
  #allocation2 [shape = 'bf16[8,342]{1,0:T(8,128)(2,1)}', space=vmem, size = 0x1800, scoped, tag = 'scratch operand']
  #allocation3 [shape = 'bf16[8,110]{1,0:T(8,128)(2,1)}', space=vmem, size = 0x800, scoped, tag = 'scratch operand']
  %s0 = inlined_call_operand.hbm [shape: f32[2,8,16,16], index: 0, kind: input, shape index: {}]
  %s1 = inlined_call_operand.hbm [shape: f32[2,8,8,8], index: 1, kind: input, shape index: {}]
  %s2 = inlined_call_operand.vmem [shape: bf16[9,16,8], index: 2, kind: input, shape index: {}]
  %s3 = inlined_call_operand.vmem [shape: f32[16,1], index: 3, kind: input, shape index: {}]
  %s4 = inlined_call_operand.vmem [shape: f32[2,16,384], index: 4, kind: output, shape index: {0}]
  %s5 = inlined_call_operand.vmem [shape: f32[2,16,128], index: 5, kind: output, shape index: {1}]
  %6 = xla_tuple %s4, %s5
  %s7 = sld [smem:[#allocation0]]
  $region65: #{_datehead_forward.1} parent=0
    _
  %s9 = ssub.s32 1, %s7
  %s10 = scalar_select 0, %s9, %s7
  $region1: #{_datehead_forward.1} parent=0
    #allocation4 [shape = 'u8[131072]{0}', space=vmem, size = 0x20000, scoped, tag = 'input window, operand 0']
    #allocation5 [shape = 's32[2]{0}', space=sflag, size = 0x8, scoped, tag = 'scoped memory for _datehead_forward.1']
    #allocation6 [shape = 'u8[65536]{0}', space=vmem, size = 0x10000, scoped, tag = 'input window, operand 1']
    #allocation7 [shape = 's32[2]{0}', space=sflag, size = 0x8, scoped, tag = 'scoped memory for _datehead_forward.1']
    %11 = vsyncpa [#allocation5], 0
    %s12 = scalar_lea.sflag [#allocation5], 1
    %13 = vsyncpa %s12, 0
    %14 = vsyncpa [#allocation7], 0
    %s15 = scalar_lea.sflag [#allocation7], 1
    %16 = vsyncpa %s15, 0
    loop: start=0, step=1, limit=4
    $region2: #{_datehead_forward.1} parent=1 // loop_pre_header
      _
    $region3: #{_datehead_forward.1} parent=1 // loop_header
      %s18 = sphi 0, %s22
      %p19 = scmp.ge.s32.totalorder %s18, 4
      %s28 = sphi 0, %s30
      %s31 = sphi 0, %s28
      %s32 = sphi 0, %s31
      %s48 = sphi 0, %s32
      %s54 = sphi 0, %s56
      %s57 = sphi 0, %s54
      %s58 = sphi 0, %s57
      %s74 = sphi 0, %s58
      %s78 = sphi 0, %s78
      %s80 = sphi 0, %s78
      %s81 = sphi 0, %s80
      %s95 = sphi 0, %s81
      %s99 = sphi 0, %s99
      %s101 = sphi 0, %s99
      %s102 = sphi 0, %s101
      %s116 = sphi 0, %s102
      %s122 = sphi 0, %s124
      %s125 = sphi 0, %s122
      %s126 = sphi 0, %s125
      %s142 = sphi 0, %s126
      %s148 = sphi 0, %s150
      %s151 = sphi 0, %s148
      %s152 = sphi 0, %s151
      %s168 = sphi 0, %s152
    $region4: #{_datehead_forward.1} parent=1 // loop_header_branch
      %21 = sbr.rel (%p19) target = $region8
    $region5: #{_datehead_forward.1} parent=1 // loop_body
      %s23 = ssub.s32 %s18, 1
      %s24 = ssub.s32 %s18, 2
      %s25 = sadd.s32 %s18, 1
      %s26 = ssub.s32 %s18, %s25
      %p27 = scmp.eq.s32.totalorder %s26, 0
      %s29 = sadd.s32 %s28, 1
      %s30 = scalar_select %p27, %s28, %s29
      %p33 = pneg %p27
      %p34 = scmp.eq.s32.totalorder %s18, 1
      %p35 = por %p33, %p34
      %p36 = scmp.ne.s32.totalorder %s28, %s31
      %p37 = scmp.eq.s32.totalorder %s18, 0
      %p38 = por %p36, %p37
      %p39 = scmp.ne.s32.totalorder %s28, %s31
      %p40 = scmp.eq.s32.totalorder %s23, 1
      %p41 = por %p39, %p40
      %p42 = scmp.ne.s32.totalorder %s31, %s32
      %p43 = scmp.eq.s32.totalorder %s23, 0
      %p44 = por %p42, %p43
      %p45 = scmp.ne.s32.totalorder %s31, %s32
      %p46 = scmp.eq.s32.totalorder %s24, 1
      %p47 = por %p45, %p46
      %p49 = scmp.ne.s32.totalorder %s32, %s48
      %p50 = scmp.eq.s32.totalorder %s24, 0
      %p51 = por %p49, %p50
      %s52 = ssub.s32 %s18, %s25
      %p53 = scmp.eq.s32.totalorder %s52, 0
      %s55 = sadd.s32 %s54, 1
      %s56 = scalar_select %p53, %s54, %s55
      %p59 = pneg %p53
      %p60 = scmp.eq.s32.totalorder %s18, 1
      %p61 = por %p59, %p60
      %p62 = scmp.ne.s32.totalorder %s54, %s57
      %p63 = scmp.eq.s32.totalorder %s18, 0
      %p64 = por %p62, %p63
      %p65 = scmp.ne.s32.totalorder %s54, %s57
      %p66 = scmp.eq.s32.totalorder %s23, 1
      %p67 = por %p65, %p66
      %p68 = scmp.ne.s32.totalorder %s57, %s58
      %p69 = scmp.eq.s32.totalorder %s23, 0
      %p70 = por %p68, %p69
      %p71 = scmp.ne.s32.totalorder %s57, %s58
      %p72 = scmp.eq.s32.totalorder %s24, 1
      %p73 = por %p71, %p72
      %p75 = scmp.ne.s32.totalorder %s58, %s74
      %p76 = scmp.eq.s32.totalorder %s24, 0
      %p77 = por %p75, %p76
      %s79 = sadd.s32 %s78, 1
      %p82 = scmp.eq.s32.totalorder %s18, 1
      %p83 = scmp.ne.s32.totalorder %s78, %s80
      %p84 = scmp.eq.s32.totalorder %s18, 0
      %p85 = por %p83, %p84
      %p86 = scmp.ne.s32.totalorder %s78, %s80
      %p87 = scmp.eq.s32.totalorder %s23, 1
      %p88 = por %p86, %p87
      %p89 = scmp.ne.s32.totalorder %s80, %s81
      %p90 = scmp.eq.s32.totalorder %s23, 0
      %p91 = por %p89, %p90
      %p92 = scmp.ne.s32.totalorder %s80, %s81
      %p93 = scmp.eq.s32.totalorder %s24, 1
      %p94 = por %p92, %p93
      %p96 = scmp.ne.s32.totalorder %s81, %s95
      %p97 = scmp.eq.s32.totalorder %s24, 0
      %p98 = por %p96, %p97
      %s100 = sadd.s32 %s99, 1
      %p103 = scmp.eq.s32.totalorder %s18, 1
      %p104 = scmp.ne.s32.totalorder %s99, %s101
      %p105 = scmp.eq.s32.totalorder %s18, 0
      %p106 = por %p104, %p105
      %p107 = scmp.ne.s32.totalorder %s99, %s101
      %p108 = scmp.eq.s32.totalorder %s23, 1
      %p109 = por %p107, %p108
      %p110 = scmp.ne.s32.totalorder %s101, %s102
      %p111 = scmp.eq.s32.totalorder %s23, 0
      %p112 = por %p110, %p111
      %p113 = scmp.ne.s32.totalorder %s101, %s102
      %p114 = scmp.eq.s32.totalorder %s24, 1
      %p115 = por %p113, %p114
      %p117 = scmp.ne.s32.totalorder %s102, %s116
      %p118 = scmp.eq.s32.totalorder %s24, 0
      %p119 = por %p117, %p118
      %s120 = ssub.s32 %s18, %s25
      %p121 = scmp.eq.s32.totalorder %s120, 0
      %s123 = sadd.s32 %s122, 1
      %s124 = scalar_select %p121, %s122, %s123
      %p127 = pneg %p121
      %p128 = scmp.eq.s32.totalorder %s18, 1
      %p129 = por %p127, %p128
      %p130 = scmp.ne.s32.totalorder %s122, %s125
      %p131 = scmp.eq.s32.totalorder %s18, 0
      %p132 = por %p130, %p131
      %p133 = scmp.ne.s32.totalorder %s122, %s125
      %p134 = scmp.eq.s32.totalorder %s23, 1
      %p135 = por %p133, %p134
      %p136 = scmp.ne.s32.totalorder %s125, %s126
      %p137 = scmp.eq.s32.totalorder %s23, 0
      %p138 = por %p136, %p137
      %p139 = scmp.ne.s32.totalorder %s125, %s126
      %p140 = scmp.eq.s32.totalorder %s24, 1
      %p141 = por %p139, %p140
      %p143 = scmp.ne.s32.totalorder %s126, %s142
      %p144 = scmp.eq.s32.totalorder %s24, 0
      %p145 = por %p143, %p144
      %s146 = ssub.s32 %s18, %s25
      %p147 = scmp.eq.s32.totalorder %s146, 0
      %s149 = sadd.s32 %s148, 1
      %s150 = scalar_select %p147, %s148, %s149
      %p153 = pneg %p147
      %p154 = scmp.eq.s32.totalorder %s18, 1
      %p155 = por %p153, %p154
      %p156 = scmp.ne.s32.totalorder %s148, %s151
      %p157 = scmp.eq.s32.totalorder %s18, 0
      %p158 = por %p156, %p157
      %p159 = scmp.ne.s32.totalorder %s148, %s151
      %p160 = scmp.eq.s32.totalorder %s23, 1
      %p161 = por %p159, %p160
      %p162 = scmp.ne.s32.totalorder %s151, %s152
      %p163 = scmp.eq.s32.totalorder %s23, 0
      %p164 = por %p162, %p163
      %p165 = scmp.ne.s32.totalorder %s151, %s152
      %p166 = scmp.eq.s32.totalorder %s24, 1
      %p167 = por %p165, %p166
      %p169 = scmp.ne.s32.totalorder %s152, %s168
      %p170 = scmp.eq.s32.totalorder %s24, 0
      %p171 = por %p169, %p170
      %p172 = scmp.le.s32.totalorder 1, %s18
      %p173 = scmp.lt.s32.totalorder %s18, 3
      %p174 = pnand %p172, %p173
      %p175 = pneg %p174
      // Predicated region
      $region9: #{_datehead_forward.1} parent=5 // pred_check
        _
      $region10: #{_datehead_forward.1} parent=5 // pred_check_branch
        %177 = sbr.rel (%p174) target = $region12
      $region11: #{_datehead_forward.1} parent=5 // pred_region
        %s178 = ssub.s32 %s18, 1
        // Predicated region
        $region13: #{_datehead_forward.1} parent=11 // pred_check
          %p179 = pneg %p91
        $region14: #{_datehead_forward.1} parent=11 // pred_check_branch
          %181 = sbr.rel (%p179) target = $region16
        $region15: #{_datehead_forward.1} parent=11 // pred_region
          _
        $region16: #{_datehead_forward.1} parent=11 // pred_fallthru
          _
        // Predicated region
        $region17: #{_datehead_forward.1} parent=11 // pred_check
          %p182 = pneg %p112
        $region18: #{_datehead_forward.1} parent=11 // pred_check_branch
          %184 = sbr.rel (%p182) target = $region20
        $region19: #{_datehead_forward.1} parent=11 // pred_region
          _
        $region20: #{_datehead_forward.1} parent=11 // pred_fallthru
          _
      $region12: #{_datehead_forward.1} parent=5 // pred_fallthru
        _
      %p185 = scmp.lt.s32.totalorder %s18, 2
      // Predicated region
      $region21: #{_datehead_forward.1} parent=5 // pred_check
        %p186 = pneg %p185
      $region22: #{_datehead_forward.1} parent=5 // pred_check_branch
        %188 = sbr.rel (%p186) target = $region24
      $region23: #{_datehead_forward.1} parent=5 // pred_region
        // Predicated region
        $region25: #{_datehead_forward.1} parent=23 // pred_check
          %p189 = pneg %p38
        $region26: #{_datehead_forward.1} parent=23 // pred_check_branch
          %191 = sbr.rel (%p189) target = $region28
        $region27: #{_datehead_forward.1} parent=23 // pred_region
          %s192 = sand.u32 %s28, 1
          %s193 = scalar_lea.sflag [#allocation5], %s192
          %s194 = sand.u32 %s28, 1
          %s195 = smul.addr %s194, 128
          %s196 = scalar_lea.vmem [#allocation4], %s195
          %s198 = ssub.s32 2048, 2048
          %199 = vsyncadd %s193, %s198
          %s200 = smul.addr %s18, 16
          %s201 = smul.addr %s200, 128
          %s202 = scalar_lea.hbm %s0, %s201
          %s203 = sshll.u32 %s196, 4
          %s204 = int_to_ptr.vmem [resolvable:$true] %s203
          %209 = dma.hbm_to_vmem [thread:$0]  %s202, 2048, %s204, %s193, 128, 128, 8
        $region28: #{_datehead_forward.1} parent=23 // pred_fallthru
          _
        // Predicated region
        $region29: #{_datehead_forward.1} parent=23 // pred_check
          %p210 = pneg %p64
        $region30: #{_datehead_forward.1} parent=23 // pred_check_branch
          %212 = sbr.rel (%p210) target = $region32
        $region31: #{_datehead_forward.1} parent=23 // pred_region
          %s213 = sand.u32 %s54, 1
          %s214 = scalar_lea.sflag [#allocation7], %s213
          %s215 = sand.u32 %s54, 1
          %s216 = smul.addr %s215, 64
          %s217 = scalar_lea.vmem [#allocation6], %s216
          %s219 = ssub.s32 1024, 1024
          %220 = vsyncadd %s214, %s219
          %s221 = smul.addr %s18, 8
          %s222 = smul.addr %s221, 128
          %s223 = scalar_lea.hbm %s1, %s222
          %s224 = sshll.u32 %s217, 4
          %s225 = int_to_ptr.vmem [resolvable:$true] %s224
          %230 = dma.hbm_to_vmem [thread:$0]  %s223, 1024, %s225, %s214, 128, 128, 8
        $region32: #{_datehead_forward.1} parent=23 // pred_fallthru
          _
      $region24: #{_datehead_forward.1} parent=5 // pred_fallthru
        _
      %p231 = scmp.le.s32.totalorder 1, %s18
      %p232 = scmp.lt.s32.totalorder %s18, 3
      %p233 = pnand %p231, %p232
      %p234 = pneg %p233
      // Predicated region
      $region33: #{_datehead_forward.1} parent=5 // pred_check
        _
      $region34: #{_datehead_forward.1} parent=5 // pred_check_branch
        %236 = sbr.rel (%p233) target = $region36
      $region35: #{_datehead_forward.1} parent=5 // pred_region
        %s237 = ssub.s32 %s18, 1
        %s238 = sand.u32 %s31, 1
        %s239 = scalar_lea.sflag [#allocation5], %s238
        %s240 = sand.u32 %s31, 1
        %s241 = smul.addr %s240, 128
        %s242 = scalar_lea.vmem [#allocation4], %s241
        // Predicated region
        $region37: #{_datehead_forward.1} parent=35 // pred_check
          %p243 = pneg %p44
        $region38: #{_datehead_forward.1} parent=35 // pred_check_branch
          %245 = sbr.rel (%p243) target = $region40
        $region39: #{_datehead_forward.1} parent=35 // pred_region
          %246 = dma.done %s239, 2048
        $region40: #{_datehead_forward.1} parent=35 // pred_fallthru
          _
        %s247 = sand.u32 %s57, 1
        %s248 = scalar_lea.sflag [#allocation7], %s247
        %s249 = sand.u32 %s57, 1
        %s250 = smul.addr %s249, 64
        %s251 = scalar_lea.vmem [#allocation6], %s250
        // Predicated region
        $region41: #{_datehead_forward.1} parent=35 // pred_check
          %p252 = pneg %p70
        $region42: #{_datehead_forward.1} parent=35 // pred_check_branch
          %254 = sbr.rel (%p252) target = $region44
        $region43: #{_datehead_forward.1} parent=35 // pred_region
          %255 = dma.done %s248, 1024
        $region44: #{_datehead_forward.1} parent=35 // pred_fallthru
          _
        %s256 = sand.u32 %s31, 1
        %s257 = scalar_lea.sflag [#allocation5], %s256
        %s258 = sand.u32 %s31, 1
        %s259 = smul.addr %s258, 128
        %s260 = scalar_lea.vmem [#allocation4], %s259
        %p261 = pneg %p44
        %p262 = pneg %p41
        %s263 = sand.u32 %s57, 1
        %s264 = scalar_lea.sflag [#allocation7], %s263
        %s265 = sand.u32 %s57, 1
        %s266 = smul.addr %s265, 64
        %s267 = scalar_lea.vmem [#allocation6], %s266
        %p268 = pneg %p70
        %p269 = pneg %p67
        %p270 = pneg %p91
        %p271 = pneg %p88
        %p272 = pneg %p112
        %p273 = pneg %p109
        %p274 = pneg %p138
        %p275 = pneg %p135
        %p276 = scmp.lt.s32.totalorder %s23, 1
        %s277 = scalar_select %p276, %s23, 1
        %s278 = smul.addr %s277, 6
        %s279 = smul.addr %s278, 8
        %s280 = scalar_lea.vmem %s4, %s279
        %p281 = pneg %p164
        %p282 = pneg %p161
        %p283 = scmp.lt.s32.totalorder %s23, 1
        %s284 = scalar_select %p283, %s23, 1
        %s285 = smul.addr %s284, 2
        %s286 = smul.addr %s285, 8
        %s287 = scalar_lea.vmem %s5, %s286
        %p288 = scmp.lt.s32.totalorder %s23, 1
        %s289 = scalar_select %p288, %s23, 1
        %s290 = smul.addr %s289, 6
        %s291 = smul.addr %s290, 8
        %s292 = scalar_lea.vmem %s4, %s291
        %p293 = scmp.lt.s32.totalorder %s23, 1
        %s294 = scalar_select %p293, %s23, 1
        %s295 = smul.addr %s294, 2
        %s296 = smul.addr %s295, 8
        %s297 = scalar_lea.vmem %s5, %s296
        %v299 = vld [vmem:[%s2] sm:$0xf]
        %v300 = vld [vmem:[%s2 + $0x4] sm:$0xf]
        %v301 = vld [vmem:[%s2 + $0x8] sm:$0xf]
        %v302 = vld [vmem:[%s2 + $0xc] sm:$0xf]
        %v303 = vld [vmem:[%s2 + $0x10] sm:$0xf]
        %v304 = vld [vmem:[%s2 + $0x14] sm:$0xf]
        %v305 = vld [vmem:[%s2 + $0x18] sm:$0xf]
        %v306 = vld [vmem:[%s2 + $0x1c] sm:$0xf]
        %v307 = vld [vmem:[%s2 + $0x20] sm:$0xf]
        %v308 = vld [vmem:[%s2 + $0x24] sm:$0xf]
        %v309 = vld [vmem:[%s2 + $0x28] sm:$0xf]
        %v310 = vld [vmem:[%s2 + $0x2c] sm:$0xf]
        %v311 = vld [vmem:[%s2 + $0x30] sm:$0xf]
        %v312 = vld [vmem:[%s2 + $0x34] sm:$0xf]
        %v313 = vld [vmem:[%s2 + $0x38] sm:$0xf]
        %v314 = vld [vmem:[%s2 + $0x3c] sm:$0xf]
        %v315 = vld [vmem:[%s2 + $0x40] sm:$0xf]
        %v316 = vld [vmem:[%s2 + $0x44] sm:$0xf]
        %v317 = vld [vmem:[%s3] sm:$0xff]
        %v318 = vld [vmem:[%s3 + $0x8] sm:$0xff]
        %319 = vst [vmem:[#allocation2] sm:$0xff] 0
        %vm320 = vcmask 699392
        %321 = vst.msk [vmem:[#allocation2 + $0x8] sm:$0xf] %vm320, 0
        %v322 = vld [vmem:[%s242] sm:$0x1]
        %v323 = vld [vmem:[%s242 + $0x10] sm:$0x1]
        %v324 = vld [vmem:[%s242 + $0x20] sm:$0x1]
        %v325 = vld [vmem:[%s242 + $0x30] sm:$0x1]
        %v326 = vld [vmem:[%s242 + $0x40] sm:$0x1]
        %v327 = vld [vmem:[%s242 + $0x50] sm:$0x1]
        %v328 = vld [vmem:[%s242 + $0x60] sm:$0x1]
        %v329 = vld [vmem:[%s242 + $0x70] sm:$0x1]
        %v330 = vpack.c.bf16 %v322, %v322
        %v331 = vpack.c.bf16 %v323, %v323
        %v332 = vpack.c.bf16 %v324, %v324
        %v333 = vpack.c.bf16 %v325, %v325
        %v334 = vpack.c.bf16 %v326, %v326
        %v335 = vpack.c.bf16 %v327, %v327
        %v336 = vpack.c.bf16 %v328, %v328
        %v337 = vpack.c.bf16 %v329, %v329
        %v346 = vunpack.c.l.b16 %v330
        %v347 = vunpack.c.l.b16 %v331
        %v348 = vunpack.c.l.b16 %v332
        %v349 = vunpack.c.l.b16 %v333
        %v350 = vunpack.c.l.b16 %v334
        %v351 = vunpack.c.l.b16 %v335
        %v352 = vunpack.c.l.b16 %v336
        %v353 = vunpack.c.l.b16 %v337
        %v354 = vpack.c.b16 %v346, %v346
        %v355 = vpack.c.b16 %v347, %v347
        %v356 = vpack.c.b16 %v348, %v348
        %v357 = vpack.c.b16 %v349, %v349
        %v358 = vpack.c.b16 %v350, %v350
        %v359 = vpack.c.b16 %v351, %v351
        %v360 = vpack.c.b16 %v352, %v352
        %v361 = vpack.c.b16 %v353, %v353
        %v362 = vunpack.c.l.b16 %v354
        %v363 = vunpack.c.l.b16 %v355
        %v364 = vunpack.c.l.b16 %v356
        %v365 = vunpack.c.l.b16 %v357
        %v366 = vunpack.c.l.b16 %v358
        %v367 = vunpack.c.l.b16 %v359
        %v368 = vunpack.c.l.b16 %v360
        %v369 = vunpack.c.l.b16 %v361
        %v370 = vrot.slane %v363, 7
        %vm371 = vcmask 1041409
        %v372 = vsel %vm371, %v370, %v362
        %v373 = vrot.slane %v364, 6
        %vm374 = vcmask 1042434
        %v375 = vsel %vm374, %v373, %v372
        %v376 = vrot.slane %v365, 5
        %vm377 = vcmask 1043459
        %v378 = vsel %vm377, %v376, %v375
        %v379 = vrot.slane %v366, 4
        %vm380 = vcmask 1044484
        %v381 = vsel %vm380, %v379, %v378
        %v382 = vrot.slane %v367, 3
        %vm383 = vcmask 1045509
        %v384 = vsel %vm383, %v382, %v381
        %v385 = vrot.slane %v368, 2
        %vm386 = vcmask 1046534
        %v387 = vsel %vm386, %v385, %v384
        %v388 = vrot.slane %v369, 1
        %vm389 = vcmask 1047559
        %v390 = vsel %vm389, %v388, %v387
        %v391 = vpack.c.b16 %v390, %v390
        %392 = vrot.lane.b32.xlu0 %v391, 19
        %v393 = vpop.permute.xlu0 %392
        %vm395 = vcmask 281752
        %396 = vst.msk [vmem:[#allocation2] sm:$0xf] %vm395, %v393
        %v397 = vld [vmem:[%s242 + $0x1] sm:$0x1]
        %v398 = vld [vmem:[%s242 + $0x11] sm:$0x1]
        %v399 = vld [vmem:[%s242 + $0x21] sm:$0x1]
        %v400 = vld [vmem:[%s242 + $0x31] sm:$0x1]
        %v401 = vld [vmem:[%s242 + $0x41] sm:$0x1]
        %v402 = vld [vmem:[%s242 + $0x51] sm:$0x1]
        %v403 = vld [vmem:[%s242 + $0x61] sm:$0x1]
        %v404 = vld [vmem:[%s242 + $0x71] sm:$0x1]
        %v405 = vpack.c.bf16 %v397, %v397
        %v406 = vpack.c.bf16 %v398, %v398
        %v407 = vpack.c.bf16 %v399, %v399
        %v408 = vpack.c.bf16 %v400, %v400
        %v409 = vpack.c.bf16 %v401, %v401
        %v410 = vpack.c.bf16 %v402, %v402
        %v411 = vpack.c.bf16 %v403, %v403
        %v412 = vpack.c.bf16 %v404, %v404
        %v421 = vunpack.c.l.b16 %v405
        %v422 = vunpack.c.l.b16 %v406
        %v423 = vunpack.c.l.b16 %v407
        %v424 = vunpack.c.l.b16 %v408
        %v425 = vunpack.c.l.b16 %v409
        %v426 = vunpack.c.l.b16 %v410
        %v427 = vunpack.c.l.b16 %v411
        %v428 = vunpack.c.l.b16 %v412
        %v429 = vpack.c.b16 %v421, %v421
        %v430 = vpack.c.b16 %v422, %v422
        %v431 = vpack.c.b16 %v423, %v423
        %v432 = vpack.c.b16 %v424, %v424
        %v433 = vpack.c.b16 %v425, %v425
        %v434 = vpack.c.b16 %v426, %v426
        %v435 = vpack.c.b16 %v427, %v427
        %v436 = vpack.c.b16 %v428, %v428
        %v437 = vunpack.c.l.b16 %v429
        %v438 = vunpack.c.l.b16 %v430
        %v439 = vunpack.c.l.b16 %v431
        %v440 = vunpack.c.l.b16 %v432
        %v441 = vunpack.c.l.b16 %v433
        %v442 = vunpack.c.l.b16 %v434
        %v443 = vunpack.c.l.b16 %v435
        %v444 = vunpack.c.l.b16 %v436
        %v445 = vrot.slane %v438, 7
        %v446 = vsel %vm371, %v445, %v437
        %v447 = vrot.slane %v439, 6
        %v448 = vsel %vm374, %v447, %v446
        %v449 = vrot.slane %v440, 5
        %v450 = vsel %vm377, %v449, %v448
        %v451 = vrot.slane %v441, 4
        %v452 = vsel %vm380, %v451, %v450
        %v453 = vrot.slane %v442, 3
        %v454 = vsel %vm383, %v453, %v452
        %v455 = vrot.slane %v443, 2
        %v456 = vsel %vm386, %v455, %v454
        %v457 = vrot.slane %v444, 1
        %v458 = vsel %vm389, %v457, %v456
        %v459 = vpack.c.b16 %v458, %v458
        %460 = vrot.lane.b32.xlu0 %v459, 37
        %v461 = vpop.permute.xlu0 %460
        %vm463 = vcmask 429352
        %464 = vst.msk [vmem:[#allocation2] sm:$0xf] %vm463, %v461
        %v465 = vld [vmem:[%s242 + $0x2] sm:$0x1]
        %v466 = vld [vmem:[%s242 + $0x12] sm:$0x1]
        %v467 = vld [vmem:[%s242 + $0x22] sm:$0x1]
        %v468 = vld [vmem:[%s242 + $0x32] sm:$0x1]
        %v469 = vld [vmem:[%s242 + $0x42] sm:$0x1]
        %v470 = vld [vmem:[%s242 + $0x52] sm:$0x1]
        %v471 = vld [vmem:[%s242 + $0x62] sm:$0x1]
        %v472 = vld [vmem:[%s242 + $0x72] sm:$0x1]
        %v473 = vpack.c.bf16 %v465, %v465
        %v474 = vpack.c.bf16 %v466, %v466
        %v475 = vpack.c.bf16 %v467, %v467
        %v476 = vpack.c.bf16 %v468, %v468
        %v477 = vpack.c.bf16 %v469, %v469
        %v478 = vpack.c.bf16 %v470, %v470
        %v479 = vpack.c.bf16 %v471, %v471
        %v480 = vpack.c.bf16 %v472, %v472
        %v489 = vunpack.c.l.b16 %v473
        %v490 = vunpack.c.l.b16 %v474
        %v491 = vunpack.c.l.b16 %v475
        %v492 = vunpack.c.l.b16 %v476
        %v493 = vunpack.c.l.b16 %v477
        %v494 = vunpack.c.l.b16 %v478
        %v495 = vunpack.c.l.b16 %v479
        %v496 = vunpack.c.l.b16 %v480
        %v497 = vpack.c.b16 %v489, %v489
        %v498 = vpack.c.b16 %v490, %v490
        %v499 = vpack.c.b16 %v491, %v491
        %v500 = vpack.c.b16 %v492, %v492
        %v501 = vpack.c.b16 %v493, %v493
        %v502 = vpack.c.b16 %v494, %v494
        %v503 = vpack.c.b16 %v495, %v495
        %v504 = vpack.c.b16 %v496, %v496
        %v505 = vunpack.c.l.b16 %v497
        %v506 = vunpack.c.l.b16 %v498
        %v507 = vunpack.c.l.b16 %v499
        %v508 = vunpack.c.l.b16 %v500
        %v509 = vunpack.c.l.b16 %v501
        %v510 = vunpack.c.l.b16 %v502
        %v511 = vunpack.c.l.b16 %v503
        %v512 = vunpack.c.l.b16 %v504
        %v513 = vrot.slane %v506, 7
        %v514 = vsel %vm371, %v513, %v505
        %v515 = vrot.slane %v507, 6
        %v516 = vsel %vm374, %v515, %v514
        %v517 = vrot.slane %v508, 5
        %v518 = vsel %vm377, %v517, %v516
        %v519 = vrot.slane %v509, 4
        %v520 = vsel %vm380, %v519, %v518
        %v521 = vrot.slane %v510, 3
        %v522 = vsel %vm383, %v521, %v520
        %v523 = vrot.slane %v511, 2
        %v524 = vsel %vm386, %v523, %v522
        %v525 = vrot.slane %v512, 1
        %v526 = vsel %vm389, %v525, %v524
        %v527 = vpack.c.b16 %v526, %v526
        %528 = vrot.lane.b32.xlu0 %v527, 55
        %v529 = vpop.permute.xlu0 %528
        %vm531 = vcmask 576952
        %532 = vst.msk [vmem:[#allocation2] sm:$0xf] %vm531, %v529
        %v533 = vld [vmem:[%s242 + $0x3] sm:$0x1]
        %v534 = vld [vmem:[%s242 + $0x13] sm:$0x1]
        %v535 = vld [vmem:[%s242 + $0x23] sm:$0x1]
        %v536 = vld [vmem:[%s242 + $0x33] sm:$0x1]
        %v537 = vld [vmem:[%s242 + $0x43] sm:$0x1]
        %v538 = vld [vmem:[%s242 + $0x53] sm:$0x1]
        %v539 = vld [vmem:[%s242 + $0x63] sm:$0x1]
        %v540 = vld [vmem:[%s242 + $0x73] sm:$0x1]
        %v541 = vpack.c.bf16 %v533, %v533
        %v542 = vpack.c.bf16 %v534, %v534
        %v543 = vpack.c.bf16 %v535, %v535
        %v544 = vpack.c.bf16 %v536, %v536
        %v545 = vpack.c.bf16 %v537, %v537
        %v546 = vpack.c.bf16 %v538, %v538
        %v547 = vpack.c.bf16 %v539, %v539
        %v548 = vpack.c.bf16 %v540, %v540
        %v557 = vunpack.c.l.b16 %v541
        %v558 = vunpack.c.l.b16 %v542
        %v559 = vunpack.c.l.b16 %v543
        %v560 = vunpack.c.l.b16 %v544
        %v561 = vunpack.c.l.b16 %v545
        %v562 = vunpack.c.l.b16 %v546
        %v563 = vunpack.c.l.b16 %v547
        %v564 = vunpack.c.l.b16 %v548
        %v565 = vpack.c.b16 %v557, %v557
        %v566 = vpack.c.b16 %v558, %v558
        %v567 = vpack.c.b16 %v559, %v559
        %v568 = vpack.c.b16 %v560, %v560
        %v569 = vpack.c.b16 %v561, %v561
        %v570 = vpack.c.b16 %v562, %v562
        %v571 = vpack.c.b16 %v563, %v563
        %v572 = vpack.c.b16 %v564, %v564
        %v573 = vunpack.c.l.b16 %v565
        %v574 = vunpack.c.l.b16 %v566
        %v575 = vunpack.c.l.b16 %v567
        %v576 = vunpack.c.l.b16 %v568
        %v577 = vunpack.c.l.b16 %v569
        %v578 = vunpack.c.l.b16 %v570
        %v579 = vunpack.c.l.b16 %v571
        %v580 = vunpack.c.l.b16 %v572
        %v581 = vrot.slane %v574, 7
        %v582 = vsel %vm371, %v581, %v573
        %v583 = vrot.slane %v575, 6
        %v584 = vsel %vm374, %v583, %v582
        %v585 = vrot.slane %v576, 5
        %v586 = vsel %vm377, %v585, %v584
        %v587 = vrot.slane %v577, 4
        %v588 = vsel %vm380, %v587, %v586
        %v589 = vrot.slane %v578, 3
        %v590 = vsel %vm383, %v589, %v588
        %v591 = vrot.slane %v579, 2
        %v592 = vsel %vm386, %v591, %v590
        %v593 = vrot.slane %v580, 1
        %v594 = vsel %vm389, %v593, %v592
        %v595 = vpack.c.b16 %v594, %v594
        %596 = vrot.lane.b32.xlu0 %v595, 73
        %v597 = vpop.permute.xlu0 %596
        %vm599 = vcmask 724552
        %600 = vst.msk [vmem:[#allocation2] sm:$0xf] %vm599, %v597
        %v601 = vld [vmem:[%s242 + $0x4] sm:$0x1]
        %v602 = vld [vmem:[%s242 + $0x14] sm:$0x1]
        %v603 = vld [vmem:[%s242 + $0x24] sm:$0x1]
        %v604 = vld [vmem:[%s242 + $0x34] sm:$0x1]
        %v605 = vld [vmem:[%s242 + $0x44] sm:$0x1]
        %v606 = vld [vmem:[%s242 + $0x54] sm:$0x1]
        %v607 = vld [vmem:[%s242 + $0x64] sm:$0x1]
        %v608 = vld [vmem:[%s242 + $0x74] sm:$0x1]
        %v609 = vpack.c.bf16 %v601, %v601
        %v610 = vpack.c.bf16 %v602, %v602
        %v611 = vpack.c.bf16 %v603, %v603
        %v612 = vpack.c.bf16 %v604, %v604
        %v613 = vpack.c.bf16 %v605, %v605
        %v614 = vpack.c.bf16 %v606, %v606
        %v615 = vpack.c.bf16 %v607, %v607
        %v616 = vpack.c.bf16 %v608, %v608
        %v625 = vunpack.c.l.b16 %v609
        %v626 = vunpack.c.l.b16 %v610
        %v627 = vunpack.c.l.b16 %v611
        %v628 = vunpack.c.l.b16 %v612
        %v629 = vunpack.c.l.b16 %v613
        %v630 = vunpack.c.l.b16 %v614
        %v631 = vunpack.c.l.b16 %v615
        %v632 = vunpack.c.l.b16 %v616
        %v633 = vpack.c.b16 %v625, %v625
        %v634 = vpack.c.b16 %v626, %v626
        %v635 = vpack.c.b16 %v627, %v627
        %v636 = vpack.c.b16 %v628, %v628
        %v637 = vpack.c.b16 %v629, %v629
        %v638 = vpack.c.b16 %v630, %v630
        %v639 = vpack.c.b16 %v631, %v631
        %v640 = vpack.c.b16 %v632, %v632
        %v641 = vunpack.c.l.b16 %v633
        %v642 = vunpack.c.l.b16 %v634
        %v643 = vunpack.c.l.b16 %v635
        %v644 = vunpack.c.l.b16 %v636
        %v645 = vunpack.c.l.b16 %v637
        %v646 = vunpack.c.l.b16 %v638
        %v647 = vunpack.c.l.b16 %v639
        %v648 = vunpack.c.l.b16 %v640
        %v649 = vrot.slane %v642, 7
        %v650 = vsel %vm371, %v649, %v641
        %v651 = vrot.slane %v643, 6
        %v652 = vsel %vm374, %v651, %v650
        %v653 = vrot.slane %v644, 5
        %v654 = vsel %vm377, %v653, %v652
        %v655 = vrot.slane %v645, 4
        %v656 = vsel %vm380, %v655, %v654
        %v657 = vrot.slane %v646, 3
        %v658 = vsel %vm383, %v657, %v656
        %v659 = vrot.slane %v647, 2
        %v660 = vsel %vm386, %v659, %v658
        %v661 = vrot.slane %v648, 1
        %v662 = vsel %vm389, %v661, %v660
        %v663 = vpack.c.b16 %v662, %v662
        %664 = vrot.lane.b32.xlu0 %v663, 91
        %v665 = vpop.permute.xlu0 %664
        %vm667 = vcmask 872152
        %668 = vst.msk [vmem:[#allocation2] sm:$0xf] %vm667, %v665
        %v669 = vld [vmem:[%s242 + $0x5] sm:$0x1]
        %v670 = vld [vmem:[%s242 + $0x15] sm:$0x1]
        %v671 = vld [vmem:[%s242 + $0x25] sm:$0x1]
        %v672 = vld [vmem:[%s242 + $0x35] sm:$0x1]
        %v673 = vld [vmem:[%s242 + $0x45] sm:$0x1]
        %v674 = vld [vmem:[%s242 + $0x55] sm:$0x1]
        %v675 = vld [vmem:[%s242 + $0x65] sm:$0x1]
        %v676 = vld [vmem:[%s242 + $0x75] sm:$0x1]
        %v677 = vpack.c.bf16 %v669, %v669
        %v678 = vpack.c.bf16 %v670, %v670
        %v679 = vpack.c.bf16 %v671, %v671
        %v680 = vpack.c.bf16 %v672, %v672
        %v681 = vpack.c.bf16 %v673, %v673
        %v682 = vpack.c.bf16 %v674, %v674
        %v683 = vpack.c.bf16 %v675, %v675
        %v684 = vpack.c.bf16 %v676, %v676
        %v693 = vunpack.c.l.b16 %v677
        %v694 = vunpack.c.l.b16 %v678
        %v695 = vunpack.c.l.b16 %v679
        %v696 = vunpack.c.l.b16 %v680
        %v697 = vunpack.c.l.b16 %v681
        %v698 = vunpack.c.l.b16 %v682
        %v699 = vunpack.c.l.b16 %v683
        %v700 = vunpack.c.l.b16 %v684
        %v701 = vpack.c.b16 %v693, %v693
        %v702 = vpack.c.b16 %v694, %v694
        %v703 = vpack.c.b16 %v695, %v695
        %v704 = vpack.c.b16 %v696, %v696
        %v705 = vpack.c.b16 %v697, %v697
        %v706 = vpack.c.b16 %v698, %v698
        %v707 = vpack.c.b16 %v699, %v699
        %v708 = vpack.c.b16 %v700, %v700
        %v709 = vunpack.c.l.b16 %v701
        %v710 = vunpack.c.l.b16 %v702
        %v711 = vunpack.c.l.b16 %v703
        %v712 = vunpack.c.l.b16 %v704
        %v713 = vunpack.c.l.b16 %v705
        %v714 = vunpack.c.l.b16 %v706
        %v715 = vunpack.c.l.b16 %v707
        %v716 = vunpack.c.l.b16 %v708
        %v717 = vrot.slane %v710, 7
        %v718 = vsel %vm371, %v717, %v709
        %v719 = vrot.slane %v711, 6
        %v720 = vsel %vm374, %v719, %v718
        %v721 = vrot.slane %v712, 5
        %v722 = vsel %vm377, %v721, %v720
        %v723 = vrot.slane %v713, 4
        %v724 = vsel %vm380, %v723, %v722
        %v725 = vrot.slane %v714, 3
        %v726 = vsel %vm383, %v725, %v724
        %v727 = vrot.slane %v715, 2
        %v728 = vsel %vm386, %v727, %v726
        %v729 = vrot.slane %v716, 1
        %v730 = vsel %vm389, %v729, %v728
        %v731 = vpack.c.b16 %v730, %v730
        %732 = vrot.lane.b32.xlu0 %v731, 109
        %v733 = vpop.permute.xlu0 %732
        %vm735 = vcmask 1019752
        %736 = vst.msk [vmem:[#allocation2] sm:$0xf] %vm735, %v733
        %v737 = vld [vmem:[%s242 + $0x6] sm:$0x1]
        %v738 = vld [vmem:[%s242 + $0x16] sm:$0x1]
        %v739 = vld [vmem:[%s242 + $0x26] sm:$0x1]
        %v740 = vld [vmem:[%s242 + $0x36] sm:$0x1]
        %v741 = vld [vmem:[%s242 + $0x46] sm:$0x1]
        %v742 = vld [vmem:[%s242 + $0x56] sm:$0x1]
        %v743 = vld [vmem:[%s242 + $0x66] sm:$0x1]
        %v744 = vld [vmem:[%s242 + $0x76] sm:$0x1]
        %v745 = vpack.c.bf16 %v737, %v737
        %v746 = vpack.c.bf16 %v738, %v738
        %v747 = vpack.c.bf16 %v739, %v739
        %v748 = vpack.c.bf16 %v740, %v740
        %v749 = vpack.c.bf16 %v741, %v741
        %v750 = vpack.c.bf16 %v742, %v742
        %v751 = vpack.c.bf16 %v743, %v743
        %v752 = vpack.c.bf16 %v744, %v744
        %v761 = vunpack.c.l.b16 %v745
        %v762 = vunpack.c.l.b16 %v746
        %v763 = vunpack.c.l.b16 %v747
        %v764 = vunpack.c.l.b16 %v748
        %v765 = vunpack.c.l.b16 %v749
        %v766 = vunpack.c.l.b16 %v750
        %v767 = vunpack.c.l.b16 %v751
        %v768 = vunpack.c.l.b16 %v752
        %v769 = vpack.c.b16 %v761, %v761
        %v770 = vpack.c.b16 %v762, %v762
        %v771 = vpack.c.b16 %v763, %v763
        %v772 = vpack.c.b16 %v764, %v764
        %v773 = vpack.c.b16 %v765, %v765
        %v774 = vpack.c.b16 %v766, %v766
        %v775 = vpack.c.b16 %v767, %v767
        %v776 = vpack.c.b16 %v768, %v768
        %v777 = vunpack.c.l.b16 %v769
        %v778 = vunpack.c.l.b16 %v770
        %v779 = vunpack.c.l.b16 %v771
        %v780 = vunpack.c.l.b16 %v772
        %v781 = vunpack.c.l.b16 %v773
        %v782 = vunpack.c.l.b16 %v774
        %v783 = vunpack.c.l.b16 %v775
        %v784 = vunpack.c.l.b16 %v776
        %v785 = vrot.slane %v778, 7
        %v786 = vsel %vm371, %v785, %v777
        %v787 = vrot.slane %v779, 6
        %v788 = vsel %vm374, %v787, %v786
        %v789 = vrot.slane %v780, 5
        %v790 = vsel %vm377, %v789, %v788
        %v791 = vrot.slane %v781, 4
        %v792 = vsel %vm380, %v791, %v790
        %v793 = vrot.slane %v782, 3
        %v794 = vsel %vm383, %v793, %v792
        %v795 = vrot.slane %v783, 2
        %v796 = vsel %vm386, %v795, %v794
        %v797 = vrot.slane %v784, 1
        %v798 = vsel %vm389, %v797, %v796
        %v799 = vpack.c.b16 %v798, %v798
        %800 = vrot.lane.b32.xlu0 %v799, 127
        %v801 = vpop.permute.xlu0 %800
        %v802 = vrot.slane %v801, 4
        %vm803 = vcmask 1039360
        %v804 = vsel %vm803, %v802, %v801
        %vm806 = vcmask 1044472
        %vm807 = vcmask 121860
        %vm808 = vmor %vm807, %vm806
        %809 = vst.msk [vmem:[#allocation2] sm:$0xff] %vm808, %v804
        %v810 = vld [vmem:[%s242 + $0x7] sm:$0x1]
        %v811 = vld [vmem:[%s242 + $0x17] sm:$0x1]
        %v812 = vld [vmem:[%s242 + $0x27] sm:$0x1]
        %v813 = vld [vmem:[%s242 + $0x37] sm:$0x1]
        %v814 = vld [vmem:[%s242 + $0x47] sm:$0x1]
        %v815 = vld [vmem:[%s242 + $0x57] sm:$0x1]
        %v816 = vld [vmem:[%s242 + $0x67] sm:$0x1]
        %v817 = vld [vmem:[%s242 + $0x77] sm:$0x1]
        %v818 = vpack.c.bf16 %v810, %v810
        %v819 = vpack.c.bf16 %v811, %v811
        %v820 = vpack.c.bf16 %v812, %v812
        %v821 = vpack.c.bf16 %v813, %v813
        %v822 = vpack.c.bf16 %v814, %v814
        %v823 = vpack.c.bf16 %v815, %v815
        %v824 = vpack.c.bf16 %v816, %v816
        %v825 = vpack.c.bf16 %v817, %v817
        %v834 = vunpack.c.l.b16 %v818
        %v835 = vunpack.c.l.b16 %v819
        %v836 = vunpack.c.l.b16 %v820
        %v837 = vunpack.c.l.b16 %v821
        %v838 = vunpack.c.l.b16 %v822
        %v839 = vunpack.c.l.b16 %v823
        %v840 = vunpack.c.l.b16 %v824
        %v841 = vunpack.c.l.b16 %v825
        %v842 = vpack.c.b16 %v834, %v834
        %v843 = vpack.c.b16 %v835, %v835
        %v844 = vpack.c.b16 %v836, %v836
        %v845 = vpack.c.b16 %v837, %v837
        %v846 = vpack.c.b16 %v838, %v838
        %v847 = vpack.c.b16 %v839, %v839
        %v848 = vpack.c.b16 %v840, %v840
        %v849 = vpack.c.b16 %v841, %v841
        %v850 = vunpack.c.l.b16 %v842
        %v851 = vunpack.c.l.b16 %v843
        %v852 = vunpack.c.l.b16 %v844
        %v853 = vunpack.c.l.b16 %v845
        %v854 = vunpack.c.l.b16 %v846
        %v855 = vunpack.c.l.b16 %v847
        %v856 = vunpack.c.l.b16 %v848
        %v857 = vunpack.c.l.b16 %v849
        %v858 = vrot.slane %v851, 7
        %v859 = vsel %vm371, %v858, %v850
        %v860 = vrot.slane %v852, 6
        %v861 = vsel %vm374, %v860, %v859
        %v862 = vrot.slane %v853, 5
        %v863 = vsel %vm377, %v862, %v861
        %v864 = vrot.slane %v854, 4
        %v865 = vsel %vm380, %v864, %v863
        %v866 = vrot.slane %v855, 3
        %v867 = vsel %vm383, %v866, %v865
        %v868 = vrot.slane %v856, 2
        %v869 = vsel %vm386, %v868, %v867
        %v870 = vrot.slane %v857, 1
        %v871 = vsel %vm389, %v870, %v869
        %v872 = vpack.c.b16 %v871, %v871
        %873 = vrot.lane.b32.xlu0 %v872, 17
        %v874 = vpop.permute.xlu0 %873
        %vm876 = vcmask 265352
        %877 = vst.msk [vmem:[#allocation2 + $0x4] sm:$0xf] %vm876, %v874
        %v878 = vld [vmem:[%s242 + $0x8] sm:$0x1]
        %v879 = vld [vmem:[%s242 + $0x18] sm:$0x1]
        %v880 = vld [vmem:[%s242 + $0x28] sm:$0x1]
        %v881 = vld [vmem:[%s242 + $0x38] sm:$0x1]
        %v882 = vld [vmem:[%s242 + $0x48] sm:$0x1]
        %v883 = vld [vmem:[%s242 + $0x58] sm:$0x1]
        %v884 = vld [vmem:[%s242 + $0x68] sm:$0x1]
        %v885 = vld [vmem:[%s242 + $0x78] sm:$0x1]
        %v886 = vpack.c.bf16 %v878, %v878
        %v887 = vpack.c.bf16 %v879, %v879
        %v888 = vpack.c.bf16 %v880, %v880
        %v889 = vpack.c.bf16 %v881, %v881
        %v890 = vpack.c.bf16 %v882, %v882
        %v891 = vpack.c.bf16 %v883, %v883
        %v892 = vpack.c.bf16 %v884, %v884
        %v893 = vpack.c.bf16 %v885, %v885
        %v902 = vunpack.c.l.b16 %v886
        %v903 = vunpack.c.l.b16 %v887
        %v904 = vunpack.c.l.b16 %v888
        %v905 = vunpack.c.l.b16 %v889
        %v906 = vunpack.c.l.b16 %v890
        %v907 = vunpack.c.l.b16 %v891
        %v908 = vunpack.c.l.b16 %v892
        %v909 = vunpack.c.l.b16 %v893
        %v910 = vpack.c.b16 %v902, %v902
        %v911 = vpack.c.b16 %v903, %v903
        %v912 = vpack.c.b16 %v904, %v904
        %v913 = vpack.c.b16 %v905, %v905
        %v914 = vpack.c.b16 %v906, %v906
        %v915 = vpack.c.b16 %v907, %v907
        %v916 = vpack.c.b16 %v908, %v908
        %v917 = vpack.c.b16 %v909, %v909
        %v918 = vunpack.c.l.b16 %v910
        %v919 = vunpack.c.l.b16 %v911
        %v920 = vunpack.c.l.b16 %v912
        %v921 = vunpack.c.l.b16 %v913
        %v922 = vunpack.c.l.b16 %v914
        %v923 = vunpack.c.l.b16 %v915
        %v924 = vunpack.c.l.b16 %v916
        %v925 = vunpack.c.l.b16 %v917
        %v926 = vrot.slane %v919, 7
        %v927 = vsel %vm371, %v926, %v918
        %v928 = vrot.slane %v920, 6
        %v929 = vsel %vm374, %v928, %v927
        %v930 = vrot.slane %v921, 5
        %v931 = vsel %vm377, %v930, %v929
        %v932 = vrot.slane %v922, 4
        %v933 = vsel %vm380, %v932, %v931
        %v934 = vrot.slane %v923, 3
        %v935 = vsel %vm383, %v934, %v933
        %v936 = vrot.slane %v924, 2
        %v937 = vsel %vm386, %v936, %v935
        %v938 = vrot.slane %v925, 1
        %v939 = vsel %vm389, %v938, %v937
        %v940 = vpack.c.b16 %v939, %v939
        %941 = vrot.lane.b32.xlu0 %v940, 35
        %v942 = vpop.permute.xlu0 %941
        %vm944 = vcmask 412952
        %945 = vst.msk [vmem:[#allocation2 + $0x4] sm:$0xf] %vm944, %v942
        %v946 = vld [vmem:[%s242 + $0x9] sm:$0x1]
        %v947 = vld [vmem:[%s242 + $0x19] sm:$0x1]
        %v948 = vld [vmem:[%s242 + $0x29] sm:$0x1]
        %v949 = vld [vmem:[%s242 + $0x39] sm:$0x1]
        %v950 = vld [vmem:[%s242 + $0x49] sm:$0x1]
        %v951 = vld [vmem:[%s242 + $0x59] sm:$0x1]
        %v952 = vld [vmem:[%s242 + $0x69] sm:$0x1]
        %v953 = vld [vmem:[%s242 + $0x79] sm:$0x1]
        %v954 = vpack.c.bf16 %v946, %v946
        %v955 = vpack.c.bf16 %v947, %v947
        %v956 = vpack.c.bf16 %v948, %v948
        %v957 = vpack.c.bf16 %v949, %v949
        %v958 = vpack.c.bf16 %v950, %v950
        %v959 = vpack.c.bf16 %v951, %v951
        %v960 = vpack.c.bf16 %v952, %v952
        %v961 = vpack.c.bf16 %v953, %v953
        %v970 = vunpack.c.l.b16 %v954
        %v971 = vunpack.c.l.b16 %v955
        %v972 = vunpack.c.l.b16 %v956
        %v973 = vunpack.c.l.b16 %v957
        %v974 = vunpack.c.l.b16 %v958
        %v975 = vunpack.c.l.b16 %v959
        %v976 = vunpack.c.l.b16 %v960
        %v977 = vunpack.c.l.b16 %v961
        %v978 = vpack.c.b16 %v970, %v970
        %v979 = vpack.c.b16 %v971, %v971
        %v980 = vpack.c.b16 %v972, %v972
        %v981 = vpack.c.b16 %v973, %v973
        %v982 = vpack.c.b16 %v974, %v974
        %v983 = vpack.c.b16 %v975, %v975
        %v984 = vpack.c.b16 %v976, %v976
        %v985 = vpack.c.b16 %v977, %v977
        %v986 = vunpack.c.l.b16 %v978
        %v987 = vunpack.c.l.b16 %v979
        %v988 = vunpack.c.l.b16 %v980
        %v989 = vunpack.c.l.b16 %v981
        %v990 = vunpack.c.l.b16 %v982
        %v991 = vunpack.c.l.b16 %v983
        %v992 = vunpack.c.l.b16 %v984
        %v993 = vunpack.c.l.b16 %v985
        %v994 = vrot.slane %v987, 7
        %v995 = vsel %vm371, %v994, %v986
        %v996 = vrot.slane %v988, 6
        %v997 = vsel %vm374, %v996, %v995
        %v998 = vrot.slane %v989, 5
        %v999 = vsel %vm377, %v998, %v997
        %v1000 = vrot.slane %v990, 4
        %v1001 = vsel %vm380, %v1000, %v999
        %v1002 = vrot.slane %v991, 3
        %v1003 = vsel %vm383, %v1002, %v1001
        %v1004 = vrot.slane %v992, 2
        %v1005 = vsel %vm386, %v1004, %v1003
        %v1006 = vrot.slane %v993, 1
        %v1007 = vsel %vm389, %v1006, %v1005
        %v1008 = vpack.c.b16 %v1007, %v1007
        %1009 = vrot.lane.b32.xlu0 %v1008, 53
        %v1010 = vpop.permute.xlu0 %1009
        %vm1012 = vcmask 560552
        %1013 = vst.msk [vmem:[#allocation2 + $0x4] sm:$0xf] %vm1012, %v1010
        %v1014 = vld [vmem:[%s242 + $0xa] sm:$0x1]
        %v1015 = vld [vmem:[%s242 + $0x1a] sm:$0x1]
        %v1016 = vld [vmem:[%s242 + $0x2a] sm:$0x1]
        %v1017 = vld [vmem:[%s242 + $0x3a] sm:$0x1]
        %v1018 = vld [vmem:[%s242 + $0x4a] sm:$0x1]
        %v1019 = vld [vmem:[%s242 + $0x5a] sm:$0x1]
        %v1020 = vld [vmem:[%s242 + $0x6a] sm:$0x1]
        %v1021 = vld [vmem:[%s242 + $0x7a] sm:$0x1]
        %v1022 = vpack.c.bf16 %v1014, %v1014
        %v1023 = vpack.c.bf16 %v1015, %v1015
        %v1024 = vpack.c.bf16 %v1016, %v1016
        %v1025 = vpack.c.bf16 %v1017, %v1017
        %v1026 = vpack.c.bf16 %v1018, %v1018
        %v1027 = vpack.c.bf16 %v1019, %v1019
        %v1028 = vpack.c.bf16 %v1020, %v1020
        %v1029 = vpack.c.bf16 %v1021, %v1021
        %v1038 = vunpack.c.l.b16 %v1022
        %v1039 = vunpack.c.l.b16 %v1023
        %v1040 = vunpack.c.l.b16 %v1024
        %v1041 = vunpack.c.l.b16 %v1025
        %v1042 = vunpack.c.l.b16 %v1026
        %v1043 = vunpack.c.l.b16 %v1027
        %v1044 = vunpack.c.l.b16 %v1028
        %v1045 = vunpack.c.l.b16 %v1029
        %v1046 = vpack.c.b16 %v1038, %v1038
        %v1047 = vpack.c.b16 %v1039, %v1039
        %v1048 = vpack.c.b16 %v1040, %v1040
        %v1049 = vpack.c.b16 %v1041, %v1041
        %v1050 = vpack.c.b16 %v1042, %v1042
        %v1051 = vpack.c.b16 %v1043, %v1043
        %v1052 = vpack.c.b16 %v1044, %v1044
        %v1053 = vpack.c.b16 %v1045, %v1045
        %v1054 = vunpack.c.l.b16 %v1046
        %v1055 = vunpack.c.l.b16 %v1047
        %v1056 = vunpack.c.l.b16 %v1048
        %v1057 = vunpack.c.l.b16 %v1049
        %v1058 = vunpack.c.l.b16 %v1050
        %v1059 = vunpack.c.l.b16 %v1051
        %v1060 = vunpack.c.l.b16 %v1052
        %v1061 = vunpack.c.l.b16 %v1053
        %v1062 = vrot.slane %v1055, 7
        %v1063 = vsel %vm371, %v1062, %v1054
        %v1064 = vrot.slane %v1056, 6
        %v1065 = vsel %vm374, %v1064, %v1063
        %v1066 = vrot.slane %v1057, 5
        %v1067 = vsel %vm377, %v1066, %v1065
        %v1068 = vrot.slane %v1058, 4
        %v1069 = vsel %vm380, %v1068, %v1067
        %v1070 = vrot.slane %v1059, 3
        %v1071 = vsel %vm383, %v1070, %v1069
        %v1072 = vrot.slane %v1060, 2
        %v1073 = vsel %vm386, %v1072, %v1071
        %v1074 = vrot.slane %v1061, 1
        %v1075 = vsel %vm389, %v1074, %v1073
        %v1076 = vpack.c.b16 %v1075, %v1075
        %1077 = vrot.lane.b32.xlu0 %v1076, 71
        %v1078 = vpop.permute.xlu0 %1077
        %vm1080 = vcmask 708152
        %1081 = vst.msk [vmem:[#allocation2 + $0x4] sm:$0xf] %vm1080, %v1078
        %v1082 = vld [vmem:[%s242 + $0xb] sm:$0x1]
        %v1083 = vld [vmem:[%s242 + $0x1b] sm:$0x1]
        %v1084 = vld [vmem:[%s242 + $0x2b] sm:$0x1]
        %v1085 = vld [vmem:[%s242 + $0x3b] sm:$0x1]
        %v1086 = vld [vmem:[%s242 + $0x4b] sm:$0x1]
        %v1087 = vld [vmem:[%s242 + $0x5b] sm:$0x1]
        %v1088 = vld [vmem:[%s242 + $0x6b] sm:$0x1]
        %v1089 = vld [vmem:[%s242 + $0x7b] sm:$0x1]
        %v1090 = vpack.c.bf16 %v1082, %v1082
        %v1091 = vpack.c.bf16 %v1083, %v1083
        %v1092 = vpack.c.bf16 %v1084, %v1084
        %v1093 = vpack.c.bf16 %v1085, %v1085
        %v1094 = vpack.c.bf16 %v1086, %v1086
        %v1095 = vpack.c.bf16 %v1087, %v1087
        %v1096 = vpack.c.bf16 %v1088, %v1088
        %v1097 = vpack.c.bf16 %v1089, %v1089
        %v1106 = vunpack.c.l.b16 %v1090
        %v1107 = vunpack.c.l.b16 %v1091
        %v1108 = vunpack.c.l.b16 %v1092
        %v1109 = vunpack.c.l.b16 %v1093
        %v1110 = vunpack.c.l.b16 %v1094
        %v1111 = vunpack.c.l.b16 %v1095
        %v1112 = vunpack.c.l.b16 %v1096
        %v1113 = vunpack.c.l.b16 %v1097
        %v1114 = vpack.c.b16 %v1106, %v1106
        %v1115 = vpack.c.b16 %v1107, %v1107
        %v1116 = vpack.c.b16 %v1108, %v1108
        %v1117 = vpack.c.b16 %v1109, %v1109
        %v1118 = vpack.c.b16 %v1110, %v1110
        %v1119 = vpack.c.b16 %v1111, %v1111
        %v1120 = vpack.c.b16 %v1112, %v1112
        %v1121 = vpack.c.b16 %v1113, %v1113
        %v1122 = vunpack.c.l.b16 %v1114
        %v1123 = vunpack.c.l.b16 %v1115
        %v1124 = vunpack.c.l.b16 %v1116
        %v1125 = vunpack.c.l.b16 %v1117
        %v1126 = vunpack.c.l.b16 %v1118
        %v1127 = vunpack.c.l.b16 %v1119
        %v1128 = vunpack.c.l.b16 %v1120
        %v1129 = vunpack.c.l.b16 %v1121
        %v1130 = vrot.slane %v1123, 7
        %v1131 = vsel %vm371, %v1130, %v1122
        %v1132 = vrot.slane %v1124, 6
        %v1133 = vsel %vm374, %v1132, %v1131
        %v1134 = vrot.slane %v1125, 5
        %v1135 = vsel %vm377, %v1134, %v1133
        %v1136 = vrot.slane %v1126, 4
        %v1137 = vsel %vm380, %v1136, %v1135
        %v1138 = vrot.slane %v1127, 3
        %v1139 = vsel %vm383, %v1138, %v1137
        %v1140 = vrot.slane %v1128, 2
        %v1141 = vsel %vm386, %v1140, %v1139
        %v1142 = vrot.slane %v1129, 1
        %v1143 = vsel %vm389, %v1142, %v1141
        %v1144 = vpack.c.b16 %v1143, %v1143
        %1145 = vrot.lane.b32.xlu0 %v1144, 89
        %v1146 = vpop.permute.xlu0 %1145
        %vm1148 = vcmask 855752
        %1149 = vst.msk [vmem:[#allocation2 + $0x4] sm:$0xf] %vm1148, %v1146
        %v1150 = vld [vmem:[%s242 + $0xc] sm:$0x1]
        %v1151 = vld [vmem:[%s242 + $0x1c] sm:$0x1]
        %v1152 = vld [vmem:[%s242 + $0x2c] sm:$0x1]
        %v1153 = vld [vmem:[%s242 + $0x3c] sm:$0x1]
        %v1154 = vld [vmem:[%s242 + $0x4c] sm:$0x1]
        %v1155 = vld [vmem:[%s242 + $0x5c] sm:$0x1]
        %v1156 = vld [vmem:[%s242 + $0x6c] sm:$0x1]
        %v1157 = vld [vmem:[%s242 + $0x7c] sm:$0x1]
        %v1158 = vpack.c.bf16 %v1150, %v1150
        %v1159 = vpack.c.bf16 %v1151, %v1151
        %v1160 = vpack.c.bf16 %v1152, %v1152
        %v1161 = vpack.c.bf16 %v1153, %v1153
        %v1162 = vpack.c.bf16 %v1154, %v1154
        %v1163 = vpack.c.bf16 %v1155, %v1155
        %v1164 = vpack.c.bf16 %v1156, %v1156
        %v1165 = vpack.c.bf16 %v1157, %v1157
        %v1174 = vunpack.c.l.b16 %v1158
        %v1175 = vunpack.c.l.b16 %v1159
        %v1176 = vunpack.c.l.b16 %v1160
        %v1177 = vunpack.c.l.b16 %v1161
        %v1178 = vunpack.c.l.b16 %v1162
        %v1179 = vunpack.c.l.b16 %v1163
        %v1180 = vunpack.c.l.b16 %v1164
        %v1181 = vunpack.c.l.b16 %v1165
        %v1182 = vpack.c.b16 %v1174, %v1174
        %v1183 = vpack.c.b16 %v1175, %v1175
        %v1184 = vpack.c.b16 %v1176, %v1176
        %v1185 = vpack.c.b16 %v1177, %v1177
        %v1186 = vpack.c.b16 %v1178, %v1178
        %v1187 = vpack.c.b16 %v1179, %v1179
        %v1188 = vpack.c.b16 %v1180, %v1180
        %v1189 = vpack.c.b16 %v1181, %v1181
        %v1190 = vunpack.c.l.b16 %v1182
        %v1191 = vunpack.c.l.b16 %v1183
        %v1192 = vunpack.c.l.b16 %v1184
        %v1193 = vunpack.c.l.b16 %v1185
        %v1194 = vunpack.c.l.b16 %v1186
        %v1195 = vunpack.c.l.b16 %v1187
        %v1196 = vunpack.c.l.b16 %v1188
        %v1197 = vunpack.c.l.b16 %v1189
        %v1198 = vrot.slane %v1191, 7
        %v1199 = vsel %vm371, %v1198, %v1190
        %v1200 = vrot.slane %v1192, 6
        %v1201 = vsel %vm374, %v1200, %v1199
        %v1202 = vrot.slane %v1193, 5
        %v1203 = vsel %vm377, %v1202, %v1201
        %v1204 = vrot.slane %v1194, 4
        %v1205 = vsel %vm380, %v1204, %v1203
        %v1206 = vrot.slane %v1195, 3
        %v1207 = vsel %vm383, %v1206, %v1205
        %v1208 = vrot.slane %v1196, 2
        %v1209 = vsel %vm386, %v1208, %v1207
        %v1210 = vrot.slane %v1197, 1
        %v1211 = vsel %vm389, %v1210, %v1209
        %v1212 = vpack.c.b16 %v1211, %v1211
        %1213 = vrot.lane.b32.xlu0 %v1212, 107
        %v1214 = vpop.permute.xlu0 %1213
        %vm1216 = vcmask 1003352
        %1217 = vst.msk [vmem:[#allocation2 + $0x4] sm:$0xf] %vm1216, %v1214
        %v1218 = vld [vmem:[%s242 + $0xd] sm:$0x1]
        %v1219 = vld [vmem:[%s242 + $0x1d] sm:$0x1]
        %v1220 = vld [vmem:[%s242 + $0x2d] sm:$0x1]
        %v1221 = vld [vmem:[%s242 + $0x3d] sm:$0x1]
        %v1222 = vld [vmem:[%s242 + $0x4d] sm:$0x1]
        %v1223 = vld [vmem:[%s242 + $0x5d] sm:$0x1]
        %v1224 = vld [vmem:[%s242 + $0x6d] sm:$0x1]
        %v1225 = vld [vmem:[%s242 + $0x7d] sm:$0x1]
        %v1226 = vpack.c.bf16 %v1218, %v1218
        %v1227 = vpack.c.bf16 %v1219, %v1219
        %v1228 = vpack.c.bf16 %v1220, %v1220
        %v1229 = vpack.c.bf16 %v1221, %v1221
        %v1230 = vpack.c.bf16 %v1222, %v1222
        %v1231 = vpack.c.bf16 %v1223, %v1223
        %v1232 = vpack.c.bf16 %v1224, %v1224
        %v1233 = vpack.c.bf16 %v1225, %v1225
        %v1242 = vunpack.c.l.b16 %v1226
        %v1243 = vunpack.c.l.b16 %v1227
        %v1244 = vunpack.c.l.b16 %v1228
        %v1245 = vunpack.c.l.b16 %v1229
        %v1246 = vunpack.c.l.b16 %v1230
        %v1247 = vunpack.c.l.b16 %v1231
        %v1248 = vunpack.c.l.b16 %v1232
        %v1249 = vunpack.c.l.b16 %v1233
        %v1250 = vpack.c.b16 %v1242, %v1242
        %v1251 = vpack.c.b16 %v1243, %v1243
        %v1252 = vpack.c.b16 %v1244, %v1244
        %v1253 = vpack.c.b16 %v1245, %v1245
        %v1254 = vpack.c.b16 %v1246, %v1246
        %v1255 = vpack.c.b16 %v1247, %v1247
        %v1256 = vpack.c.b16 %v1248, %v1248
        %v1257 = vpack.c.b16 %v1249, %v1249
        %v1258 = vunpack.c.l.b16 %v1250
        %v1259 = vunpack.c.l.b16 %v1251
        %v1260 = vunpack.c.l.b16 %v1252
        %v1261 = vunpack.c.l.b16 %v1253
        %v1262 = vunpack.c.l.b16 %v1254
        %v1263 = vunpack.c.l.b16 %v1255
        %v1264 = vunpack.c.l.b16 %v1256
        %v1265 = vunpack.c.l.b16 %v1257
        %v1266 = vrot.slane %v1259, 7
        %v1267 = vsel %vm371, %v1266, %v1258
        %v1268 = vrot.slane %v1260, 6
        %v1269 = vsel %vm374, %v1268, %v1267
        %v1270 = vrot.slane %v1261, 5
        %v1271 = vsel %vm377, %v1270, %v1269
        %v1272 = vrot.slane %v1262, 4
        %v1273 = vsel %vm380, %v1272, %v1271
        %v1274 = vrot.slane %v1263, 3
        %v1275 = vsel %vm383, %v1274, %v1273
        %v1276 = vrot.slane %v1264, 2
        %v1277 = vsel %vm386, %v1276, %v1275
        %v1278 = vrot.slane %v1265, 1
        %v1279 = vsel %vm389, %v1278, %v1277
        %v1280 = vpack.c.b16 %v1279, %v1279
        %1281 = vrot.lane.b32.xlu0 %v1280, 125
        %v1282 = vpop.permute.xlu0 %1281
        %v1283 = vrot.slane %v1282, 4
        %vm1284 = vcmask 1022976
        %v1285 = vsel %vm1284, %v1283, %v1282
        %vm1287 = vcmask 1044456
        %vm1288 = vcmask 105476
        %vm1289 = vmor %vm1288, %vm1287
        %1290 = vst.msk [vmem:[#allocation2 + $0x4] sm:$0xff] %vm1289, %v1285
        %v1291 = vld [vmem:[%s242 + $0xe] sm:$0x1]
        %v1292 = vld [vmem:[%s242 + $0x1e] sm:$0x1]
        %v1293 = vld [vmem:[%s242 + $0x2e] sm:$0x1]
        %v1294 = vld [vmem:[%s242 + $0x3e] sm:$0x1]
        %v1295 = vld [vmem:[%s242 + $0x4e] sm:$0x1]
        %v1296 = vld [vmem:[%s242 + $0x5e] sm:$0x1]
        %v1297 = vld [vmem:[%s242 + $0x6e] sm:$0x1]
        %v1298 = vld [vmem:[%s242 + $0x7e] sm:$0x1]
        %v1299 = vpack.c.bf16 %v1291, %v1291
        %v1300 = vpack.c.bf16 %v1292, %v1292
        %v1301 = vpack.c.bf16 %v1293, %v1293
        %v1302 = vpack.c.bf16 %v1294, %v1294
        %v1303 = vpack.c.bf16 %v1295, %v1295
        %v1304 = vpack.c.bf16 %v1296, %v1296
        %v1305 = vpack.c.bf16 %v1297, %v1297
        %v1306 = vpack.c.bf16 %v1298, %v1298
        %v1315 = vunpack.c.l.b16 %v1299
        %v1316 = vunpack.c.l.b16 %v1300
        %v1317 = vunpack.c.l.b16 %v1301
        %v1318 = vunpack.c.l.b16 %v1302
        %v1319 = vunpack.c.l.b16 %v1303
        %v1320 = vunpack.c.l.b16 %v1304
        %v1321 = vunpack.c.l.b16 %v1305
        %v1322 = vunpack.c.l.b16 %v1306
        %v1323 = vpack.c.b16 %v1315, %v1315
        %v1324 = vpack.c.b16 %v1316, %v1316
        %v1325 = vpack.c.b16 %v1317, %v1317
        %v1326 = vpack.c.b16 %v1318, %v1318
        %v1327 = vpack.c.b16 %v1319, %v1319
        %v1328 = vpack.c.b16 %v1320, %v1320
        %v1329 = vpack.c.b16 %v1321, %v1321
        %v1330 = vpack.c.b16 %v1322, %v1322
        %v1331 = vunpack.c.l.b16 %v1323
        %v1332 = vunpack.c.l.b16 %v1324
        %v1333 = vunpack.c.l.b16 %v1325
        %v1334 = vunpack.c.l.b16 %v1326
        %v1335 = vunpack.c.l.b16 %v1327
        %v1336 = vunpack.c.l.b16 %v1328
        %v1337 = vunpack.c.l.b16 %v1329
        %v1338 = vunpack.c.l.b16 %v1330
        %v1339 = vrot.slane %v1332, 7
        %v1340 = vsel %vm371, %v1339, %v1331
        %v1341 = vrot.slane %v1333, 6
        %v1342 = vsel %vm374, %v1341, %v1340
        %v1343 = vrot.slane %v1334, 5
        %v1344 = vsel %vm377, %v1343, %v1342
        %v1345 = vrot.slane %v1335, 4
        %v1346 = vsel %vm380, %v1345, %v1344
        %v1347 = vrot.slane %v1336, 3
        %v1348 = vsel %vm383, %v1347, %v1346
        %v1349 = vrot.slane %v1337, 2
        %v1350 = vsel %vm386, %v1349, %v1348
        %v1351 = vrot.slane %v1338, 1
        %v1352 = vsel %vm389, %v1351, %v1350
        %v1353 = vpack.c.b16 %v1352, %v1352
        %1354 = vrot.lane.b32.xlu0 %v1353, 15
        %v1355 = vpop.permute.xlu0 %1354
        %vm1357 = vcmask 248952
        %1358 = vst.msk [vmem:[#allocation2 + $0x8] sm:$0xf] %vm1357, %v1355
        %v1359 = vld [vmem:[%s242 + $0xf] sm:$0x1]
        %v1360 = vld [vmem:[%s242 + $0x1f] sm:$0x1]
        %v1361 = vld [vmem:[%s242 + $0x2f] sm:$0x1]
        %v1362 = vld [vmem:[%s242 + $0x3f] sm:$0x1]
        %v1363 = vld [vmem:[%s242 + $0x4f] sm:$0x1]
        %v1364 = vld [vmem:[%s242 + $0x5f] sm:$0x1]
        %v1365 = vld [vmem:[%s242 + $0x6f] sm:$0x1]
        %v1366 = vld [vmem:[%s242 + $0x7f] sm:$0x1]
        %v1367 = vpack.c.bf16 %v1359, %v1359
        %v1368 = vpack.c.bf16 %v1360, %v1360
        %v1369 = vpack.c.bf16 %v1361, %v1361
        %v1370 = vpack.c.bf16 %v1362, %v1362
        %v1371 = vpack.c.bf16 %v1363, %v1363
        %v1372 = vpack.c.bf16 %v1364, %v1364
        %v1373 = vpack.c.bf16 %v1365, %v1365
        %v1374 = vpack.c.bf16 %v1366, %v1366
        %v1383 = vunpack.c.l.b16 %v1367
        %v1384 = vunpack.c.l.b16 %v1368
        %v1385 = vunpack.c.l.b16 %v1369
        %v1386 = vunpack.c.l.b16 %v1370
        %v1387 = vunpack.c.l.b16 %v1371
        %v1388 = vunpack.c.l.b16 %v1372
        %v1389 = vunpack.c.l.b16 %v1373
        %v1390 = vunpack.c.l.b16 %v1374
        %v1391 = vpack.c.b16 %v1383, %v1383
        %v1392 = vpack.c.b16 %v1384, %v1384
        %v1393 = vpack.c.b16 %v1385, %v1385
        %v1394 = vpack.c.b16 %v1386, %v1386
        %v1395 = vpack.c.b16 %v1387, %v1387
        %v1396 = vpack.c.b16 %v1388, %v1388
        %v1397 = vpack.c.b16 %v1389, %v1389
        %v1398 = vpack.c.b16 %v1390, %v1390
        %v1399 = vunpack.c.l.b16 %v1391
        %v1400 = vunpack.c.l.b16 %v1392
        %v1401 = vunpack.c.l.b16 %v1393
        %v1402 = vunpack.c.l.b16 %v1394
        %v1403 = vunpack.c.l.b16 %v1395
        %v1404 = vunpack.c.l.b16 %v1396
        %v1405 = vunpack.c.l.b16 %v1397
        %v1406 = vunpack.c.l.b16 %v1398
        %v1407 = vrot.slane %v1400, 7
        %v1408 = vsel %vm371, %v1407, %v1399
        %v1409 = vrot.slane %v1401, 6
        %v1410 = vsel %vm374, %v1409, %v1408
        %v1411 = vrot.slane %v1402, 5
        %v1412 = vsel %vm377, %v1411, %v1410
        %v1413 = vrot.slane %v1403, 4
        %v1414 = vsel %vm380, %v1413, %v1412
        %v1415 = vrot.slane %v1404, 3
        %v1416 = vsel %vm383, %v1415, %v1414
        %v1417 = vrot.slane %v1405, 2
        %v1418 = vsel %vm386, %v1417, %v1416
        %v1419 = vrot.slane %v1406, 1
        %v1420 = vsel %vm389, %v1419, %v1418
        %v1421 = vpack.c.b16 %v1420, %v1420
        %1422 = vrot.lane.b32.xlu0 %v1421, 33
        %v1423 = vpop.permute.xlu0 %1422
        %vm1425 = vcmask 396552
        %1426 = vst.msk [vmem:[#allocation2 + $0x8] sm:$0xf] %vm1425, %v1423
        %v1427 = vld [vmem:[#allocation2] sm:$0xff]
        %v1428 = vld [vmem:[#allocation2 + $0x8] sm:$0xf]
        %v1431 = vunpack.c.l.b16 %v301
        %v1432 = vunpack.c.l.b16 %v302
        %v1433 = vpack.c.b16 %v1432, %v1431
        %v1436 = vunpack.c.l.b16 %v1427
        %v1437 = vunpack.c.h.b16 %v1427
        %v1438 = vunpack.c.l.b16 %v1428
        %v1439 = vpack.c.b16 %v1436, %v1436
        %v1440 = vpack.c.b16 %v1437, %v1437
        %v1441 = vpack.c.b16 %v1438, %v1438
        %1442 = vrot.lane.b32.xlu0 %v1439, 127
        %v1443 = vpop.permute.xlu0 %1442
        %1444 = vrot.lane.b32.xlu0 %v1440, 127
        %v1445 = vpop.permute.xlu0 %1444
        %1446 = vrot.lane.b32.xlu0 %v1441, 127
        %v1447 = vpop.permute.xlu0 %1446
        %v1448 = vsel %vm803, %v1443, %v1445
        %v1449 = vsel %vm803, %v1445, %v1447
        %vm1450 = vcmask 64512
        %v1452 = vsel %vm1450, %v1433, 0
        %vm1454 = vcmask 1043456
        %v1456 = vsel %vm1454, %v1448, 0
        %v1459 = vsel %vm1454, %v1449, 0
        %v1462 = vsel %vm1454, %v1447, 0
        %1464 = vmatprep.subr.bf16.mxu0 0
        %1465 = vmatpush1.bf16.msra.mxu0 0
        %1466 = vmatprep.subr.bf16.mxu0 0
        %1467 = vmatpush1.bf16.msra.mxu0 0
        %1468 = vmatprep.subr.bf16.mxu0 0
        %1469 = vmatpush1.bf16.msra.mxu0 0
        %1470 = vmatprep.subr.bf16.mxu0 0
        %1471 = vmatpush1.bf16.msra.mxu0 0
        %1472 = vmatprep.subr.bf16.mxu0 0
        %1473 = vmatpush1.bf16.msra.mxu0 0
        %1474 = vmatprep.subr.bf16.mxu0 0
        %1475 = vmatpush1.bf16.msra.mxu0 0
        %1476 = vmatprep.subr.bf16.mxu0 0
        %1477 = vmatpush1.bf16.msra.mxu0 0
        %1478 = vmatprep.subr.bf16.mxu0 %v1459
        %1479 = vmatpush1.bf16.msra.mxu0 %v1456
        %1480 = vmatprep.subr.bf16.mxu0 0
        %1481 = vmatpush2.bf16.msra.mxu0 0
        %1482 = vmatprep.subr.bf16.mxu0 0
        %1483 = vmatpush2.bf16.msra.mxu0 0
        %1484 = vmatprep.subr.bf16.mxu0 0
        %1485 = vmatpush2.bf16.msra.mxu0 0
        %1486 = vmatprep.subr.bf16.mxu0 0
        %1487 = vmatpush2.bf16.msra.mxu0 0
        %1488 = vmatprep.subr.bf16.mxu0 0
        %1489 = vmatpush2.bf16.msra.mxu0 0
        %1490 = vmatprep.subr.bf16.mxu0 0
        %1491 = vmatpush2.bf16.msra.mxu0 0
        %1492 = vmatprep.subr.bf16.mxu0 0
        %1493 = vmatpush2.bf16.msra.mxu0 0
        %1494 = vmatprep.subr.bf16.mxu0 0
        %1495 = vmatpush2.bf16.msra.mxu0 0
        %1496 = vmatprep.mubr.bf16.mxu0 0
        %1497 = vmatmul.mubr.bf16.gmra.mxu0 %v1452
        %v1498 = vpop.f32.mrf.mxu0
        %v1499 = vadd.f32 0.0, %v1498
        %v1500 = vpop.f32.mrf.mxu0
        %v1501 = vadd.f32 0.0, %v1500
        %v1502 = vpop.f32.mrf.mxu0
        %v1503 = vadd.f32 0.0, %v1502
        %v1504 = vpop.f32.mrf.mxu0
        %v1505 = vadd.f32 0.0, %v1504
        %1506 = vdwg.mxu0
        %1507 = vmatprep.subr.bf16.mxu0 0
        %1508 = vmatpush1.bf16.msra.mxu0 0
        %1509 = vmatprep.subr.bf16.mxu0 0
        %1510 = vmatpush1.bf16.msra.mxu0 0
        %1511 = vmatprep.subr.bf16.mxu0 0
        %1512 = vmatpush1.bf16.msra.mxu0 0
        %1513 = vmatprep.subr.bf16.mxu0 0
        %1514 = vmatpush1.bf16.msra.mxu0 0
        %1515 = vmatprep.subr.bf16.mxu0 0
        %1516 = vmatpush1.bf16.msra.mxu0 0
        %1517 = vmatprep.subr.bf16.mxu0 0
        %1518 = vmatpush1.bf16.msra.mxu0 0
        %1519 = vmatprep.subr.bf16.mxu0 0
        %1520 = vmatpush1.bf16.msra.mxu0 0
        %1521 = vmatprep.subr.bf16.mxu0 0
        %1522 = vmatpush1.bf16.msra.mxu0 %v1462
        %1523 = vmatprep.subr.bf16.mxu0 0
        %1524 = vmatpush2.bf16.msra.mxu0 0
        %1525 = vmatprep.subr.bf16.mxu0 0
        %1526 = vmatpush2.bf16.msra.mxu0 0
        %1527 = vmatprep.subr.bf16.mxu0 0
        %1528 = vmatpush2.bf16.msra.mxu0 0
        %1529 = vmatprep.subr.bf16.mxu0 0
        %1530 = vmatpush2.bf16.msra.mxu0 0
        %1531 = vmatprep.subr.bf16.mxu0 0
        %1532 = vmatpush2.bf16.msra.mxu0 0
        %1533 = vmatprep.subr.bf16.mxu0 0
        %1534 = vmatpush2.bf16.msra.mxu0 0
        %1535 = vmatprep.subr.bf16.mxu0 0
        %1536 = vmatpush2.bf16.msra.mxu0 0
        %1537 = vmatprep.subr.bf16.mxu0 0
        %1538 = vmatpush2.bf16.msra.mxu0 0
        %1539 = vmatprep.mubr.bf16.mxu0 0
        %1540 = vmatmul.mubr.bf16.gmra.mxu0 %v1452
        %v1541 = vpop.f32.mrf.mxu0
        %v1542 = vadd.f32 0.0, %v1541
        %v1543 = vpop.f32.mrf.mxu0
        %v1544 = vpop.f32.mrf.mxu0
        %v1545 = vadd.f32 0.0, %v1544
        %v1546 = vpop.f32.mrf.mxu0
        %1547 = vdwg.mxu0
        %v1550 = vunpack.c.l.b16 %v299
        %v1551 = vunpack.c.l.b16 %v300
        %v1552 = vpack.c.b16 %v1551, %v1550
        %v1554 = vsel %vm1450, %v1552, 0
        %v1557 = vsel %vm1454, %v1439, 0
        %v1560 = vsel %vm1454, %v1440, 0
        %v1563 = vsel %vm1454, %v1441, 0
        %1565 = vmatprep.subr.bf16.mxu0 0
        %1566 = vmatpush1.bf16.msra.mxu0 0
        %1567 = vmatprep.subr.bf16.mxu0 0
        %1568 = vmatpush1.bf16.msra.mxu0 0
        %1569 = vmatprep.subr.bf16.mxu0 0
        %1570 = vmatpush1.bf16.msra.mxu0 0
        %1571 = vmatprep.subr.bf16.mxu0 0
        %1572 = vmatpush1.bf16.msra.mxu0 0
        %1573 = vmatprep.subr.bf16.mxu0 0
        %1574 = vmatpush1.bf16.msra.mxu0 0
        %1575 = vmatprep.subr.bf16.mxu0 0
        %1576 = vmatpush1.bf16.msra.mxu0 0
        %1577 = vmatprep.subr.bf16.mxu0 0
        %1578 = vmatpush1.bf16.msra.mxu0 0
        %1579 = vmatprep.subr.bf16.mxu0 %v1560
        %1580 = vmatpush1.bf16.msra.mxu0 %v1557
        %1581 = vmatprep.subr.bf16.mxu0 0
        %1582 = vmatpush2.bf16.msra.mxu0 0
        %1583 = vmatprep.subr.bf16.mxu0 0
        %1584 = vmatpush2.bf16.msra.mxu0 0
        %1585 = vmatprep.subr.bf16.mxu0 0
        %1586 = vmatpush2.bf16.msra.mxu0 0
        %1587 = vmatprep.subr.bf16.mxu0 0
        %1588 = vmatpush2.bf16.msra.mxu0 0
        %1589 = vmatprep.subr.bf16.mxu0 0
        %1590 = vmatpush2.bf16.msra.mxu0 0
        %1591 = vmatprep.subr.bf16.mxu0 0
        %1592 = vmatpush2.bf16.msra.mxu0 0
        %1593 = vmatprep.subr.bf16.mxu0 0
        %1594 = vmatpush2.bf16.msra.mxu0 0
        %1595 = vmatprep.subr.bf16.mxu0 0
        %1596 = vmatpush2.bf16.msra.mxu0 0
        %1597 = vmatprep.mubr.bf16.mxu0 0
        %1598 = vmatmul.mubr.bf16.gmra.mxu0 %v1554
        %v1599 = vpop.f32.mrf.mxu0
        %v1600 = vadd.f32 %v1499, %v1599
        %v1601 = vpop.f32.mrf.mxu0
        %v1602 = vadd.f32 %v1501, %v1601
        %v1603 = vpop.f32.mrf.mxu0
        %v1604 = vadd.f32 %v1503, %v1603
        %v1605 = vpop.f32.mrf.mxu0
        %v1606 = vadd.f32 %v1505, %v1605
        %1607 = vdwg.mxu0
        %1608 = vmatprep.subr.bf16.mxu0 0
        %1609 = vmatpush1.bf16.msra.mxu0 0
        %1610 = vmatprep.subr.bf16.mxu0 0
        %1611 = vmatpush1.bf16.msra.mxu0 0
        %1612 = vmatprep.subr.bf16.mxu0 0
        %1613 = vmatpush1.bf16.msra.mxu0 0
        %1614 = vmatprep.subr.bf16.mxu0 0
        %1615 = vmatpush1.bf16.msra.mxu0 0
        %1616 = vmatprep.subr.bf16.mxu0 0
        %1617 = vmatpush1.bf16.msra.mxu0 0
        %1618 = vmatprep.subr.bf16.mxu0 0
        %1619 = vmatpush1.bf16.msra.mxu0 0
        %1620 = vmatprep.subr.bf16.mxu0 0
        %1621 = vmatpush1.bf16.msra.mxu0 0
        %1622 = vmatprep.subr.bf16.mxu0 0
        %1623 = vmatpush1.bf16.msra.mxu0 %v1563
        %1624 = vmatprep.subr.bf16.mxu0 0
        %1625 = vmatpush2.bf16.msra.mxu0 0
        %1626 = vmatprep.subr.bf16.mxu0 0
        %1627 = vmatpush2.bf16.msra.mxu0 0
        %1628 = vmatprep.subr.bf16.mxu0 0
        %1629 = vmatpush2.bf16.msra.mxu0 0
        %1630 = vmatprep.subr.bf16.mxu0 0
        %1631 = vmatpush2.bf16.msra.mxu0 0
        %1632 = vmatprep.subr.bf16.mxu0 0
        %1633 = vmatpush2.bf16.msra.mxu0 0
        %1634 = vmatprep.subr.bf16.mxu0 0
        %1635 = vmatpush2.bf16.msra.mxu0 0
        %1636 = vmatprep.subr.bf16.mxu0 0
        %1637 = vmatpush2.bf16.msra.mxu0 0
        %1638 = vmatprep.subr.bf16.mxu0 0
        %1639 = vmatpush2.bf16.msra.mxu0 0
        %1640 = vmatprep.mubr.bf16.mxu0 0
        %1641 = vmatmul.mubr.bf16.gmra.mxu0 %v1554
        %v1642 = vpop.f32.mrf.mxu0
        %v1643 = vadd.f32 %v1542, %v1642
        %v1644 = vpop.f32.mrf.mxu0
        %v1645 = vpop.f32.mrf.mxu0
        %v1646 = vadd.f32 %v1545, %v1645
        %v1647 = vpop.f32.mrf.mxu0
        %1648 = vdwg.mxu0
        %v1651 = vunpack.c.l.b16 %v303
        %v1652 = vunpack.c.l.b16 %v304
        %v1653 = vpack.c.b16 %v1652, %v1651
        %1654 = vrot.lane.b32.xlu0 %v1439, 126
        %v1655 = vpop.permute.xlu0 %1654
        %1656 = vrot.lane.b32.xlu0 %v1440, 126
        %v1657 = vpop.permute.xlu0 %1656
        %1658 = vrot.lane.b32.xlu0 %v1441, 126
        %v1659 = vpop.permute.xlu0 %1658
        %vm1660 = vcmask 1031168
        %v1661 = vsel %vm1660, %v1655, %v1657
        %v1662 = vsel %vm1660, %v1657, %v1659
        %v1664 = vsel %vm1450, %v1653, 0
        %v1667 = vsel %vm1454, %v1661, 0
        %v1670 = vsel %vm1454, %v1662, 0
        %v1673 = vsel %vm1454, %v1659, 0
        %1675 = vmatprep.subr.bf16.mxu0 0
        %1676 = vmatpush1.bf16.msra.mxu0 0
        %1677 = vmatprep.subr.bf16.mxu0 0
        %1678 = vmatpush1.bf16.msra.mxu0 0
        %1679 = vmatprep.subr.bf16.mxu0 0
        %1680 = vmatpush1.bf16.msra.mxu0 0
        %1681 = vmatprep.subr.bf16.mxu0 0
        %1682 = vmatpush1.bf16.msra.mxu0 0
        %1683 = vmatprep.subr.bf16.mxu0 0
        %1684 = vmatpush1.bf16.msra.mxu0 0
        %1685 = vmatprep.subr.bf16.mxu0 0
        %1686 = vmatpush1.bf16.msra.mxu0 0
        %1687 = vmatprep.subr.bf16.mxu0 0
        %1688 = vmatpush1.bf16.msra.mxu0 0
        %1689 = vmatprep.subr.bf16.mxu0 %v1670
        %1690 = vmatpush1.bf16.msra.mxu0 %v1667
        %1691 = vmatprep.subr.bf16.mxu0 0
        %1692 = vmatpush2.bf16.msra.mxu0 0
        %1693 = vmatprep.subr.bf16.mxu0 0
        %1694 = vmatpush2.bf16.msra.mxu0 0
        %1695 = vmatprep.subr.bf16.mxu0 0
        %1696 = vmatpush2.bf16.msra.mxu0 0
        %1697 = vmatprep.subr.bf16.mxu0 0
        %1698 = vmatpush2.bf16.msra.mxu0 0
        %1699 = vmatprep.subr.bf16.mxu0 0
        %1700 = vmatpush2.bf16.msra.mxu0 0
        %1701 = vmatprep.subr.bf16.mxu0 0
        %1702 = vmatpush2.bf16.msra.mxu0 0
        %1703 = vmatprep.subr.bf16.mxu0 0
        %1704 = vmatpush2.bf16.msra.mxu0 0
        %1705 = vmatprep.subr.bf16.mxu0 0
        %1706 = vmatpush2.bf16.msra.mxu0 0
        %1707 = vmatprep.mubr.bf16.mxu0 0
        %1708 = vmatmul.mubr.bf16.gmra.mxu0 %v1664
        %v1709 = vpop.f32.mrf.mxu0
        %v1710 = vadd.f32 0.0, %v1709
        %v1711 = vpop.f32.mrf.mxu0
        %v1712 = vadd.f32 0.0, %v1711
        %v1713 = vpop.f32.mrf.mxu0
        %v1714 = vadd.f32 0.0, %v1713
        %v1715 = vpop.f32.mrf.mxu0
        %v1716 = vadd.f32 0.0, %v1715
        %1717 = vdwg.mxu0
        %1718 = vmatprep.subr.bf16.mxu0 0
        %1719 = vmatpush1.bf16.msra.mxu0 0
        %1720 = vmatprep.subr.bf16.mxu0 0
        %1721 = vmatpush1.bf16.msra.mxu0 0
        %1722 = vmatprep.subr.bf16.mxu0 0
        %1723 = vmatpush1.bf16.msra.mxu0 0
        %1724 = vmatprep.subr.bf16.mxu0 0
        %1725 = vmatpush1.bf16.msra.mxu0 0
        %1726 = vmatprep.subr.bf16.mxu0 0
        %1727 = vmatpush1.bf16.msra.mxu0 0
        %1728 = vmatprep.subr.bf16.mxu0 0
        %1729 = vmatpush1.bf16.msra.mxu0 0
        %1730 = vmatprep.subr.bf16.mxu0 0
        %1731 = vmatpush1.bf16.msra.mxu0 0
        %1732 = vmatprep.subr.bf16.mxu0 0
        %1733 = vmatpush1.bf16.msra.mxu0 %v1673
        %1734 = vmatprep.subr.bf16.mxu0 0
        %1735 = vmatpush2.bf16.msra.mxu0 0
        %1736 = vmatprep.subr.bf16.mxu0 0
        %1737 = vmatpush2.bf16.msra.mxu0 0
        %1738 = vmatprep.subr.bf16.mxu0 0
        %1739 = vmatpush2.bf16.msra.mxu0 0
        %1740 = vmatprep.subr.bf16.mxu0 0
        %1741 = vmatpush2.bf16.msra.mxu0 0
        %1742 = vmatprep.subr.bf16.mxu0 0
        %1743 = vmatpush2.bf16.msra.mxu0 0
        %1744 = vmatprep.subr.bf16.mxu0 0
        %1745 = vmatpush2.bf16.msra.mxu0 0
        %1746 = vmatprep.subr.bf16.mxu0 0
        %1747 = vmatpush2.bf16.msra.mxu0 0
        %1748 = vmatprep.subr.bf16.mxu0 0
        %1749 = vmatpush2.bf16.msra.mxu0 0
        %1750 = vmatprep.mubr.bf16.mxu0 0
        %1751 = vmatmul.mubr.bf16.gmra.mxu0 %v1664
        %v1752 = vpop.f32.mrf.mxu0
        %v1753 = vadd.f32 0.0, %v1752
        %v1754 = vpop.f32.mrf.mxu0
        %v1755 = vpop.f32.mrf.mxu0
        %v1756 = vadd.f32 0.0, %v1755
        %v1757 = vpop.f32.mrf.mxu0
        %1758 = vdwg.mxu0
        %v1759 = vadd.f32 %v1600, %v1710
        %v1760 = vadd.f32 %v1602, %v1712
        %v1761 = vadd.f32 %v1643, %v1753
        %v1762 = vadd.f32 %v1604, %v1714
        %v1763 = vadd.f32 %v1606, %v1716
        %v1764 = vadd.f32 %v1646, %v1756
        %v1767 = vunpack.c.l.b16 %v305
        %v1768 = vunpack.c.l.b16 %v306
        %v1769 = vpack.c.b16 %v1768, %v1767
        %1770 = vrot.lane.b32.xlu0 %v1439, 110
        %v1771 = vpop.permute.xlu0 %1770
        %1772 = vrot.lane.b32.xlu0 %v1440, 110
        %v1773 = vpop.permute.xlu0 %1772
        %1774 = vrot.lane.b32.xlu0 %v1441, 110
        %v1775 = vpop.permute.xlu0 %1774
        %vm1776 = vcmask 900096
        %v1777 = vsel %vm1776, %v1771, %v1773
        %v1778 = vsel %vm1776, %v1773, %v1775
        %v1780 = vsel %vm1450, %v1769, 0
        %v1783 = vsel %vm1454, %v1777, 0
        %v1786 = vsel %vm1454, %v1778, 0
        %v1789 = vsel %vm1454, %v1775, 0
        %1791 = vmatprep.subr.bf16.mxu0 0
        %1792 = vmatpush1.bf16.msra.mxu0 0
        %1793 = vmatprep.subr.bf16.mxu0 0
        %1794 = vmatpush1.bf16.msra.mxu0 0
        %1795 = vmatprep.subr.bf16.mxu0 0
        %1796 = vmatpush1.bf16.msra.mxu0 0
        %1797 = vmatprep.subr.bf16.mxu0 0
        %1798 = vmatpush1.bf16.msra.mxu0 0
        %1799 = vmatprep.subr.bf16.mxu0 0
        %1800 = vmatpush1.bf16.msra.mxu0 0
        %1801 = vmatprep.subr.bf16.mxu0 0
        %1802 = vmatpush1.bf16.msra.mxu0 0
        %1803 = vmatprep.subr.bf16.mxu0 0
        %1804 = vmatpush1.bf16.msra.mxu0 0
        %1805 = vmatprep.subr.bf16.mxu0 %v1786
        %1806 = vmatpush1.bf16.msra.mxu0 %v1783
        %1807 = vmatprep.subr.bf16.mxu0 0
        %1808 = vmatpush2.bf16.msra.mxu0 0
        %1809 = vmatprep.subr.bf16.mxu0 0
        %1810 = vmatpush2.bf16.msra.mxu0 0
        %1811 = vmatprep.subr.bf16.mxu0 0
        %1812 = vmatpush2.bf16.msra.mxu0 0
        %1813 = vmatprep.subr.bf16.mxu0 0
        %1814 = vmatpush2.bf16.msra.mxu0 0
        %1815 = vmatprep.subr.bf16.mxu0 0
        %1816 = vmatpush2.bf16.msra.mxu0 0
        %1817 = vmatprep.subr.bf16.mxu0 0
        %1818 = vmatpush2.bf16.msra.mxu0 0
        %1819 = vmatprep.subr.bf16.mxu0 0
        %1820 = vmatpush2.bf16.msra.mxu0 0
        %1821 = vmatprep.subr.bf16.mxu0 0
        %1822 = vmatpush2.bf16.msra.mxu0 0
        %1823 = vmatprep.mubr.bf16.mxu0 0
        %1824 = vmatmul.mubr.bf16.gmra.mxu0 %v1780
        %v1825 = vpop.f32.mrf.mxu0
        %v1826 = vadd.f32 0.0, %v1825
        %v1827 = vpop.f32.mrf.mxu0
        %v1828 = vadd.f32 0.0, %v1827
        %v1829 = vpop.f32.mrf.mxu0
        %v1830 = vadd.f32 0.0, %v1829
        %v1831 = vpop.f32.mrf.mxu0
        %v1832 = vadd.f32 0.0, %v1831
        %1833 = vdwg.mxu0
        %1834 = vmatprep.subr.bf16.mxu0 0
        %1835 = vmatpush1.bf16.msra.mxu0 0
        %1836 = vmatprep.subr.bf16.mxu0 0
        %1837 = vmatpush1.bf16.msra.mxu0 0
        %1838 = vmatprep.subr.bf16.mxu0 0
        %1839 = vmatpush1.bf16.msra.mxu0 0
        %1840 = vmatprep.subr.bf16.mxu0 0
        %1841 = vmatpush1.bf16.msra.mxu0 0
        %1842 = vmatprep.subr.bf16.mxu0 0
        %1843 = vmatpush1.bf16.msra.mxu0 0
        %1844 = vmatprep.subr.bf16.mxu0 0
        %1845 = vmatpush1.bf16.msra.mxu0 0
        %1846 = vmatprep.subr.bf16.mxu0 0
        %1847 = vmatpush1.bf16.msra.mxu0 0
        %1848 = vmatprep.subr.bf16.mxu0 0
        %1849 = vmatpush1.bf16.msra.mxu0 %v1789
        %1850 = vmatprep.subr.bf16.mxu0 0
        %1851 = vmatpush2.bf16.msra.mxu0 0
        %1852 = vmatprep.subr.bf16.mxu0 0
        %1853 = vmatpush2.bf16.msra.mxu0 0
        %1854 = vmatprep.subr.bf16.mxu0 0
        %1855 = vmatpush2.bf16.msra.mxu0 0
        %1856 = vmatprep.subr.bf16.mxu0 0
        %1857 = vmatpush2.bf16.msra.mxu0 0
        %1858 = vmatprep.subr.bf16.mxu0 0
        %1859 = vmatpush2.bf16.msra.mxu0 0
        %1860 = vmatprep.subr.bf16.mxu0 0
        %1861 = vmatpush2.bf16.msra.mxu0 0
        %1862 = vmatprep.subr.bf16.mxu0 0
        %1863 = vmatpush2.bf16.msra.mxu0 0
        %1864 = vmatprep.subr.bf16.mxu0 0
        %1865 = vmatpush2.bf16.msra.mxu0 0
        %1866 = vmatprep.mubr.bf16.mxu0 0
        %1867 = vmatmul.mubr.bf16.gmra.mxu0 %v1780
        %v1868 = vpop.f32.mrf.mxu0
        %v1869 = vadd.f32 0.0, %v1868
        %v1870 = vpop.f32.mrf.mxu0
        %v1871 = vpop.f32.mrf.mxu0
        %v1872 = vadd.f32 0.0, %v1871
        %v1873 = vpop.f32.mrf.mxu0
        %1874 = vdwg.mxu0
        %v1875 = vadd.f32 %v1759, %v1826
        %v1876 = vadd.f32 %v1760, %v1828
        %v1877 = vadd.f32 %v1761, %v1869
        %v1878 = vadd.f32 %v1762, %v1830
        %v1879 = vadd.f32 %v1763, %v1832
        %v1880 = vadd.f32 %v1764, %v1872
        %v1883 = vunpack.c.l.b16 %v307
        %v1884 = vunpack.c.l.b16 %v308
        %v1885 = vpack.c.b16 %v1884, %v1883
        %1886 = vrot.lane.b32.xlu0 %v1439, 109
        %v1887 = vpop.permute.xlu0 %1886
        %1888 = vrot.lane.b32.xlu0 %v1440, 109
        %v1889 = vpop.permute.xlu0 %1888
        %1890 = vrot.lane.b32.xlu0 %v1441, 109
        %v1891 = vpop.permute.xlu0 %1890
        %vm1892 = vcmask 891904
        %v1893 = vsel %vm1892, %v1887, %v1889
        %v1894 = vsel %vm1892, %v1889, %v1891
        %v1896 = vsel %vm1450, %v1885, 0
        %v1899 = vsel %vm1454, %v1893, 0
        %v1902 = vsel %vm1454, %v1894, 0
        %v1905 = vsel %vm1454, %v1891, 0
        %1907 = vmatprep.subr.bf16.mxu0 0
        %1908 = vmatpush1.bf16.msra.mxu0 0
        %1909 = vmatprep.subr.bf16.mxu0 0
        %1910 = vmatpush1.bf16.msra.mxu0 0
        %1911 = vmatprep.subr.bf16.mxu0 0
        %1912 = vmatpush1.bf16.msra.mxu0 0
        %1913 = vmatprep.subr.bf16.mxu0 0
        %1914 = vmatpush1.bf16.msra.mxu0 0
        %1915 = vmatprep.subr.bf16.mxu0 0
        %1916 = vmatpush1.bf16.msra.mxu0 0
        %1917 = vmatprep.subr.bf16.mxu0 0
        %1918 = vmatpush1.bf16.msra.mxu0 0
        %1919 = vmatprep.subr.bf16.mxu0 0
        %1920 = vmatpush1.bf16.msra.mxu0 0
        %1921 = vmatprep.subr.bf16.mxu0 %v1902
        %1922 = vmatpush1.bf16.msra.mxu0 %v1899
        %1923 = vmatprep.subr.bf16.mxu0 0
        %1924 = vmatpush2.bf16.msra.mxu0 0
        %1925 = vmatprep.subr.bf16.mxu0 0
        %1926 = vmatpush2.bf16.msra.mxu0 0
        %1927 = vmatprep.subr.bf16.mxu0 0
        %1928 = vmatpush2.bf16.msra.mxu0 0
        %1929 = vmatprep.subr.bf16.mxu0 0
        %1930 = vmatpush2.bf16.msra.mxu0 0
        %1931 = vmatprep.subr.bf16.mxu0 0
        %1932 = vmatpush2.bf16.msra.mxu0 0
        %1933 = vmatprep.subr.bf16.mxu0 0
        %1934 = vmatpush2.bf16.msra.mxu0 0
        %1935 = vmatprep.subr.bf16.mxu0 0
        %1936 = vmatpush2.bf16.msra.mxu0 0
        %1937 = vmatprep.subr.bf16.mxu0 0
        %1938 = vmatpush2.bf16.msra.mxu0 0
        %1939 = vmatprep.mubr.bf16.mxu0 0
        %1940 = vmatmul.mubr.bf16.gmra.mxu0 %v1896
        %v1941 = vpop.f32.mrf.mxu0
        %v1942 = vadd.f32 0.0, %v1941
        %v1943 = vpop.f32.mrf.mxu0
        %v1944 = vadd.f32 0.0, %v1943
        %v1945 = vpop.f32.mrf.mxu0
        %v1946 = vadd.f32 0.0, %v1945
        %v1947 = vpop.f32.mrf.mxu0
        %v1948 = vadd.f32 0.0, %v1947
        %1949 = vdwg.mxu0
        %1950 = vmatprep.subr.bf16.mxu0 0
        %1951 = vmatpush1.bf16.msra.mxu0 0
        %1952 = vmatprep.subr.bf16.mxu0 0
        %1953 = vmatpush1.bf16.msra.mxu0 0
        %1954 = vmatprep.subr.bf16.mxu0 0
        %1955 = vmatpush1.bf16.msra.mxu0 0
        %1956 = vmatprep.subr.bf16.mxu0 0
        %1957 = vmatpush1.bf16.msra.mxu0 0
        %1958 = vmatprep.subr.bf16.mxu0 0
        %1959 = vmatpush1.bf16.msra.mxu0 0
        %1960 = vmatprep.subr.bf16.mxu0 0
        %1961 = vmatpush1.bf16.msra.mxu0 0
        %1962 = vmatprep.subr.bf16.mxu0 0
        %1963 = vmatpush1.bf16.msra.mxu0 0
        %1964 = vmatprep.subr.bf16.mxu0 0
        %1965 = vmatpush1.bf16.msra.mxu0 %v1905
        %1966 = vmatprep.subr.bf16.mxu0 0
        %1967 = vmatpush2.bf16.msra.mxu0 0
        %1968 = vmatprep.subr.bf16.mxu0 0
        %1969 = vmatpush2.bf16.msra.mxu0 0
        %1970 = vmatprep.subr.bf16.mxu0 0
        %1971 = vmatpush2.bf16.msra.mxu0 0
        %1972 = vmatprep.subr.bf16.mxu0 0
        %1973 = vmatpush2.bf16.msra.mxu0 0
        %1974 = vmatprep.subr.bf16.mxu0 0
        %1975 = vmatpush2.bf16.msra.mxu0 0
        %1976 = vmatprep.subr.bf16.mxu0 0
        %1977 = vmatpush2.bf16.msra.mxu0 0
        %1978 = vmatprep.subr.bf16.mxu0 0
        %1979 = vmatpush2.bf16.msra.mxu0 0
        %1980 = vmatprep.subr.bf16.mxu0 0
        %1981 = vmatpush2.bf16.msra.mxu0 0
        %1982 = vmatprep.mubr.bf16.mxu0 0
        %1983 = vmatmul.mubr.bf16.gmra.mxu0 %v1896
        %v1984 = vpop.f32.mrf.mxu0
        %v1985 = vadd.f32 0.0, %v1984
        %v1986 = vpop.f32.mrf.mxu0
        %v1987 = vpop.f32.mrf.mxu0
        %v1988 = vadd.f32 0.0, %v1987
        %v1989 = vpop.f32.mrf.mxu0
        %1990 = vdwg.mxu0
        %v1991 = vadd.f32 %v1875, %v1942
        %v1992 = vadd.f32 %v1876, %v1944
        %v1993 = vadd.f32 %v1877, %v1985
        %v1994 = vadd.f32 %v1878, %v1946
        %v1995 = vadd.f32 %v1879, %v1948
        %v1996 = vadd.f32 %v1880, %v1988
        %v1999 = vunpack.c.l.b16 %v309
        %v2000 = vunpack.c.l.b16 %v310
        %v2001 = vpack.c.b16 %v2000, %v1999
        %2002 = vrot.lane.b32.xlu0 %v1439, 108
        %v2003 = vpop.permute.xlu0 %2002
        %2004 = vrot.lane.b32.xlu0 %v1440, 108
        %v2005 = vpop.permute.xlu0 %2004
        %2006 = vrot.lane.b32.xlu0 %v1441, 108
        %v2007 = vpop.permute.xlu0 %2006
        %vm2008 = vcmask 883712
        %v2009 = vsel %vm2008, %v2003, %v2005
        %v2010 = vsel %vm2008, %v2005, %v2007
        %v2012 = vsel %vm1450, %v2001, 0
        %v2015 = vsel %vm1454, %v2009, 0
        %v2018 = vsel %vm1454, %v2010, 0
        %v2021 = vsel %vm1454, %v2007, 0
        %2023 = vmatprep.subr.bf16.mxu0 0
        %2024 = vmatpush1.bf16.msra.mxu0 0
        %2025 = vmatprep.subr.bf16.mxu0 0
        %2026 = vmatpush1.bf16.msra.mxu0 0
        %2027 = vmatprep.subr.bf16.mxu0 0
        %2028 = vmatpush1.bf16.msra.mxu0 0
        %2029 = vmatprep.subr.bf16.mxu0 0
        %2030 = vmatpush1.bf16.msra.mxu0 0
        %2031 = vmatprep.subr.bf16.mxu0 0
        %2032 = vmatpush1.bf16.msra.mxu0 0
        %2033 = vmatprep.subr.bf16.mxu0 0
        %2034 = vmatpush1.bf16.msra.mxu0 0
        %2035 = vmatprep.subr.bf16.mxu0 0
        %2036 = vmatpush1.bf16.msra.mxu0 0
        %2037 = vmatprep.subr.bf16.mxu0 %v2018
        %2038 = vmatpush1.bf16.msra.mxu0 %v2015
        %2039 = vmatprep.subr.bf16.mxu0 0
        %2040 = vmatpush2.bf16.msra.mxu0 0
        %2041 = vmatprep.subr.bf16.mxu0 0
        %2042 = vmatpush2.bf16.msra.mxu0 0
        %2043 = vmatprep.subr.bf16.mxu0 0
        %2044 = vmatpush2.bf16.msra.mxu0 0
        %2045 = vmatprep.subr.bf16.mxu0 0
        %2046 = vmatpush2.bf16.msra.mxu0 0
        %2047 = vmatprep.subr.bf16.mxu0 0
        %2048 = vmatpush2.bf16.msra.mxu0 0
        %2049 = vmatprep.subr.bf16.mxu0 0
        %2050 = vmatpush2.bf16.msra.mxu0 0
        %2051 = vmatprep.subr.bf16.mxu0 0
        %2052 = vmatpush2.bf16.msra.mxu0 0
        %2053 = vmatprep.subr.bf16.mxu0 0
        %2054 = vmatpush2.bf16.msra.mxu0 0
        %2055 = vmatprep.mubr.bf16.mxu0 0
        %2056 = vmatmul.mubr.bf16.gmra.mxu0 %v2012
        %v2057 = vpop.f32.mrf.mxu0
        %v2058 = vadd.f32 0.0, %v2057
        %v2059 = vpop.f32.mrf.mxu0
        %v2060 = vadd.f32 0.0, %v2059
        %v2061 = vpop.f32.mrf.mxu0
        %v2062 = vadd.f32 0.0, %v2061
        %v2063 = vpop.f32.mrf.mxu0
        %v2064 = vadd.f32 0.0, %v2063
        %2065 = vdwg.mxu0
        %2066 = vmatprep.subr.bf16.mxu0 0
        %2067 = vmatpush1.bf16.msra.mxu0 0
        %2068 = vmatprep.subr.bf16.mxu0 0
        %2069 = vmatpush1.bf16.msra.mxu0 0
        %2070 = vmatprep.subr.bf16.mxu0 0
        %2071 = vmatpush1.bf16.msra.mxu0 0
        %2072 = vmatprep.subr.bf16.mxu0 0
        %2073 = vmatpush1.bf16.msra.mxu0 0
        %2074 = vmatprep.subr.bf16.mxu0 0
        %2075 = vmatpush1.bf16.msra.mxu0 0
        %2076 = vmatprep.subr.bf16.mxu0 0
        %2077 = vmatpush1.bf16.msra.mxu0 0
        %2078 = vmatprep.subr.bf16.mxu0 0
        %2079 = vmatpush1.bf16.msra.mxu0 0
        %2080 = vmatprep.subr.bf16.mxu0 0
        %2081 = vmatpush1.bf16.msra.mxu0 %v2021
        %2082 = vmatprep.subr.bf16.mxu0 0
        %2083 = vmatpush2.bf16.msra.mxu0 0
        %2084 = vmatprep.subr.bf16.mxu0 0
        %2085 = vmatpush2.bf16.msra.mxu0 0
        %2086 = vmatprep.subr.bf16.mxu0 0
        %2087 = vmatpush2.bf16.msra.mxu0 0
        %2088 = vmatprep.subr.bf16.mxu0 0
        %2089 = vmatpush2.bf16.msra.mxu0 0
        %2090 = vmatprep.subr.bf16.mxu0 0
        %2091 = vmatpush2.bf16.msra.mxu0 0
        %2092 = vmatprep.subr.bf16.mxu0 0
        %2093 = vmatpush2.bf16.msra.mxu0 0
        %2094 = vmatprep.subr.bf16.mxu0 0
        %2095 = vmatpush2.bf16.msra.mxu0 0
        %2096 = vmatprep.subr.bf16.mxu0 0
        %2097 = vmatpush2.bf16.msra.mxu0 0
        %2098 = vmatprep.mubr.bf16.mxu0 0
        %2099 = vmatmul.mubr.bf16.gmra.mxu0 %v2012
        %v2100 = vpop.f32.mrf.mxu0
        %v2101 = vadd.f32 0.0, %v2100
        %v2102 = vpop.f32.mrf.mxu0
        %v2103 = vpop.f32.mrf.mxu0
        %v2104 = vadd.f32 0.0, %v2103
        %v2105 = vpop.f32.mrf.mxu0
        %2106 = vdwg.mxu0
        %v2107 = vadd.f32 %v1991, %v2058
        %v2108 = vadd.f32 %v1992, %v2060
        %v2109 = vadd.f32 %v1993, %v2101
        %v2110 = vadd.f32 %v1994, %v2062
        %v2111 = vadd.f32 %v1995, %v2064
        %v2112 = vadd.f32 %v1996, %v2104
        %v2115 = vunpack.c.l.b16 %v311
        %v2116 = vunpack.c.l.b16 %v312
        %v2117 = vpack.c.b16 %v2116, %v2115
        %2118 = vrot.lane.b32.xlu0 %v1439, 92
        %v2119 = vpop.permute.xlu0 %2118
        %2120 = vrot.lane.b32.xlu0 %v1440, 92
        %v2121 = vpop.permute.xlu0 %2120
        %2122 = vrot.lane.b32.xlu0 %v1441, 92
        %v2123 = vpop.permute.xlu0 %2122
        %vm2124 = vcmask 752640
        %v2125 = vsel %vm2124, %v2119, %v2121
        %v2126 = vsel %vm2124, %v2121, %v2123
        %v2128 = vsel %vm1450, %v2117, 0
        %v2131 = vsel %vm1454, %v2125, 0
        %v2134 = vsel %vm1454, %v2126, 0
        %v2137 = vsel %vm1454, %v2123, 0
        %2139 = vmatprep.subr.bf16.mxu0 0
        %2140 = vmatpush1.bf16.msra.mxu0 0
        %2141 = vmatprep.subr.bf16.mxu0 0
        %2142 = vmatpush1.bf16.msra.mxu0 0
        %2143 = vmatprep.subr.bf16.mxu0 0
        %2144 = vmatpush1.bf16.msra.mxu0 0
        %2145 = vmatprep.subr.bf16.mxu0 0
        %2146 = vmatpush1.bf16.msra.mxu0 0
        %2147 = vmatprep.subr.bf16.mxu0 0
        %2148 = vmatpush1.bf16.msra.mxu0 0
        %2149 = vmatprep.subr.bf16.mxu0 0
        %2150 = vmatpush1.bf16.msra.mxu0 0
        %2151 = vmatprep.subr.bf16.mxu0 0
        %2152 = vmatpush1.bf16.msra.mxu0 0
        %2153 = vmatprep.subr.bf16.mxu0 %v2134
        %2154 = vmatpush1.bf16.msra.mxu0 %v2131
        %2155 = vmatprep.subr.bf16.mxu0 0
        %2156 = vmatpush2.bf16.msra.mxu0 0
        %2157 = vmatprep.subr.bf16.mxu0 0
        %2158 = vmatpush2.bf16.msra.mxu0 0
        %2159 = vmatprep.subr.bf16.mxu0 0
        %2160 = vmatpush2.bf16.msra.mxu0 0
        %2161 = vmatprep.subr.bf16.mxu0 0
        %2162 = vmatpush2.bf16.msra.mxu0 0
        %2163 = vmatprep.subr.bf16.mxu0 0
        %2164 = vmatpush2.bf16.msra.mxu0 0
        %2165 = vmatprep.subr.bf16.mxu0 0
        %2166 = vmatpush2.bf16.msra.mxu0 0
        %2167 = vmatprep.subr.bf16.mxu0 0
        %2168 = vmatpush2.bf16.msra.mxu0 0
        %2169 = vmatprep.subr.bf16.mxu0 0
        %2170 = vmatpush2.bf16.msra.mxu0 0
        %2171 = vmatprep.mubr.bf16.mxu0 0
        %2172 = vmatmul.mubr.bf16.gmra.mxu0 %v2128
        %v2173 = vpop.f32.mrf.mxu0
        %v2174 = vadd.f32 0.0, %v2173
        %v2175 = vpop.f32.mrf.mxu0
        %v2176 = vadd.f32 0.0, %v2175
        %v2177 = vpop.f32.mrf.mxu0
        %v2178 = vadd.f32 0.0, %v2177
        %v2179 = vpop.f32.mrf.mxu0
        %v2180 = vadd.f32 0.0, %v2179
        %2181 = vdwg.mxu0
        %2182 = vmatprep.subr.bf16.mxu0 0
        %2183 = vmatpush1.bf16.msra.mxu0 0
        %2184 = vmatprep.subr.bf16.mxu0 0
        %2185 = vmatpush1.bf16.msra.mxu0 0
        %2186 = vmatprep.subr.bf16.mxu0 0
        %2187 = vmatpush1.bf16.msra.mxu0 0
        %2188 = vmatprep.subr.bf16.mxu0 0
        %2189 = vmatpush1.bf16.msra.mxu0 0
        %2190 = vmatprep.subr.bf16.mxu0 0
        %2191 = vmatpush1.bf16.msra.mxu0 0
        %2192 = vmatprep.subr.bf16.mxu0 0
        %2193 = vmatpush1.bf16.msra.mxu0 0
        %2194 = vmatprep.subr.bf16.mxu0 0
        %2195 = vmatpush1.bf16.msra.mxu0 0
        %2196 = vmatprep.subr.bf16.mxu0 0
        %2197 = vmatpush1.bf16.msra.mxu0 %v2137
        %2198 = vmatprep.subr.bf16.mxu0 0
        %2199 = vmatpush2.bf16.msra.mxu0 0
        %2200 = vmatprep.subr.bf16.mxu0 0
        %2201 = vmatpush2.bf16.msra.mxu0 0
        %2202 = vmatprep.subr.bf16.mxu0 0
        %2203 = vmatpush2.bf16.msra.mxu0 0
        %2204 = vmatprep.subr.bf16.mxu0 0
        %2205 = vmatpush2.bf16.msra.mxu0 0
        %2206 = vmatprep.subr.bf16.mxu0 0
        %2207 = vmatpush2.bf16.msra.mxu0 0
        %2208 = vmatprep.subr.bf16.mxu0 0
        %2209 = vmatpush2.bf16.msra.mxu0 0
        %2210 = vmatprep.subr.bf16.mxu0 0
        %2211 = vmatpush2.bf16.msra.mxu0 0
        %2212 = vmatprep.subr.bf16.mxu0 0
        %2213 = vmatpush2.bf16.msra.mxu0 0
        %2214 = vmatprep.mubr.bf16.mxu0 0
        %2215 = vmatmul.mubr.bf16.gmra.mxu0 %v2128
        %v2216 = vpop.f32.mrf.mxu0
        %v2217 = vadd.f32 0.0, %v2216
        %v2218 = vpop.f32.mrf.mxu0
        %v2219 = vpop.f32.mrf.mxu0
        %v2220 = vadd.f32 0.0, %v2219
        %v2221 = vpop.f32.mrf.mxu0
        %2222 = vdwg.mxu0
        %v2223 = vadd.f32 %v2107, %v2174
        %v2224 = vadd.f32 %v2108, %v2176
        %v2225 = vadd.f32 %v2109, %v2217
        %v2226 = vadd.f32 %v2110, %v2178
        %v2227 = vadd.f32 %v2111, %v2180
        %v2228 = vadd.f32 %v2112, %v2220
        %v2231 = vunpack.c.l.b16 %v313
        %v2232 = vunpack.c.l.b16 %v314
        %v2233 = vpack.c.b16 %v2232, %v2231
        %2234 = vrot.lane.b32.xlu0 %v1439, 91
        %v2235 = vpop.permute.xlu0 %2234
        %2236 = vrot.lane.b32.xlu0 %v1440, 91
        %v2237 = vpop.permute.xlu0 %2236
        %2238 = vrot.lane.b32.xlu0 %v1441, 91
        %v2239 = vpop.permute.xlu0 %2238
        %vm2240 = vcmask 744448
        %v2241 = vsel %vm2240, %v2235, %v2237
        %v2242 = vsel %vm2240, %v2237, %v2239
        %v2244 = vsel %vm1450, %v2233, 0
        %v2247 = vsel %vm1454, %v2241, 0
        %v2250 = vsel %vm1454, %v2242, 0
        %v2253 = vsel %vm1454, %v2239, 0
        %2255 = vmatprep.subr.bf16.mxu0 0
        %2256 = vmatpush1.bf16.msra.mxu0 0
        %2257 = vmatprep.subr.bf16.mxu0 0
        %2258 = vmatpush1.bf16.msra.mxu0 0
        %2259 = vmatprep.subr.bf16.mxu0 0
        %2260 = vmatpush1.bf16.msra.mxu0 0
        %2261 = vmatprep.subr.bf16.mxu0 0
        %2262 = vmatpush1.bf16.msra.mxu0 0
        %2263 = vmatprep.subr.bf16.mxu0 0
        %2264 = vmatpush1.bf16.msra.mxu0 0
        %2265 = vmatprep.subr.bf16.mxu0 0
        %2266 = vmatpush1.bf16.msra.mxu0 0
        %2267 = vmatprep.subr.bf16.mxu0 0
        %2268 = vmatpush1.bf16.msra.mxu0 0
        %2269 = vmatprep.subr.bf16.mxu0 %v2250
        %2270 = vmatpush1.bf16.msra.mxu0 %v2247
        %2271 = vmatprep.subr.bf16.mxu0 0
        %2272 = vmatpush2.bf16.msra.mxu0 0
        %2273 = vmatprep.subr.bf16.mxu0 0
        %2274 = vmatpush2.bf16.msra.mxu0 0
        %2275 = vmatprep.subr.bf16.mxu0 0
        %2276 = vmatpush2.bf16.msra.mxu0 0
        %2277 = vmatprep.subr.bf16.mxu0 0
        %2278 = vmatpush2.bf16.msra.mxu0 0
        %2279 = vmatprep.subr.bf16.mxu0 0
        %2280 = vmatpush2.bf16.msra.mxu0 0
        %2281 = vmatprep.subr.bf16.mxu0 0
        %2282 = vmatpush2.bf16.msra.mxu0 0
        %2283 = vmatprep.subr.bf16.mxu0 0
        %2284 = vmatpush2.bf16.msra.mxu0 0
        %2285 = vmatprep.subr.bf16.mxu0 0
        %2286 = vmatpush2.bf16.msra.mxu0 0
        %2287 = vmatprep.mubr.bf16.mxu0 0
        %2288 = vmatmul.mubr.bf16.gmra.mxu0 %v2244
        %v2289 = vpop.f32.mrf.mxu0
        %v2290 = vadd.f32 0.0, %v2289
        %v2291 = vpop.f32.mrf.mxu0
        %v2292 = vadd.f32 0.0, %v2291
        %v2293 = vpop.f32.mrf.mxu0
        %v2294 = vadd.f32 0.0, %v2293
        %v2295 = vpop.f32.mrf.mxu0
        %v2296 = vadd.f32 0.0, %v2295
        %2297 = vdwg.mxu0
        %2298 = vmatprep.subr.bf16.mxu0 0
        %2299 = vmatpush1.bf16.msra.mxu0 0
        %2300 = vmatprep.subr.bf16.mxu0 0
        %2301 = vmatpush1.bf16.msra.mxu0 0
        %2302 = vmatprep.subr.bf16.mxu0 0
        %2303 = vmatpush1.bf16.msra.mxu0 0
        %2304 = vmatprep.subr.bf16.mxu0 0
        %2305 = vmatpush1.bf16.msra.mxu0 0
        %2306 = vmatprep.subr.bf16.mxu0 0
        %2307 = vmatpush1.bf16.msra.mxu0 0
        %2308 = vmatprep.subr.bf16.mxu0 0
        %2309 = vmatpush1.bf16.msra.mxu0 0
        %2310 = vmatprep.subr.bf16.mxu0 0
        %2311 = vmatpush1.bf16.msra.mxu0 0
        %2312 = vmatprep.subr.bf16.mxu0 0
        %2313 = vmatpush1.bf16.msra.mxu0 %v2253
        %2314 = vmatprep.subr.bf16.mxu0 0
        %2315 = vmatpush2.bf16.msra.mxu0 0
        %2316 = vmatprep.subr.bf16.mxu0 0
        %2317 = vmatpush2.bf16.msra.mxu0 0
        %2318 = vmatprep.subr.bf16.mxu0 0
        %2319 = vmatpush2.bf16.msra.mxu0 0
        %2320 = vmatprep.subr.bf16.mxu0 0
        %2321 = vmatpush2.bf16.msra.mxu0 0
        %2322 = vmatprep.subr.bf16.mxu0 0
        %2323 = vmatpush2.bf16.msra.mxu0 0
        %2324 = vmatprep.subr.bf16.mxu0 0
        %2325 = vmatpush2.bf16.msra.mxu0 0
        %2326 = vmatprep.subr.bf16.mxu0 0
        %2327 = vmatpush2.bf16.msra.mxu0 0
        %2328 = vmatprep.subr.bf16.mxu0 0
        %2329 = vmatpush2.bf16.msra.mxu0 0
        %2330 = vmatprep.mubr.bf16.mxu0 0
        %2331 = vmatmul.mubr.bf16.gmra.mxu0 %v2244
        %v2332 = vpop.f32.mrf.mxu0
        %v2333 = vadd.f32 0.0, %v2332
        %v2334 = vpop.f32.mrf.mxu0
        %v2335 = vpop.f32.mrf.mxu0
        %v2336 = vadd.f32 0.0, %v2335
        %v2337 = vpop.f32.mrf.mxu0
        %2338 = vdwg.mxu0
        %v2339 = vadd.f32 %v2223, %v2290
        %v2340 = vadd.f32 %v2224, %v2292
        %v2341 = vadd.f32 %v2225, %v2333
        %v2342 = vadd.f32 %v2226, %v2294
        %v2343 = vadd.f32 %v2227, %v2296
        %v2344 = vadd.f32 %v2228, %v2336
        %v2347 = vunpack.c.l.b16 %v315
        %v2348 = vunpack.c.l.b16 %v316
        %v2349 = vpack.c.b16 %v2348, %v2347
        %2350 = vrot.lane.b32.xlu0 %v1439, 90
        %v2351 = vpop.permute.xlu0 %2350
        %2352 = vrot.lane.b32.xlu0 %v1440, 90
        %v2353 = vpop.permute.xlu0 %2352
        %2354 = vrot.lane.b32.xlu0 %v1441, 90
        %v2355 = vpop.permute.xlu0 %2354
        %vm2356 = vcmask 736256
        %v2357 = vsel %vm2356, %v2351, %v2353
        %v2358 = vsel %vm2356, %v2353, %v2355
        %v2360 = vsel %vm1450, %v2349, 0
        %v2363 = vsel %vm1454, %v2357, 0
        %v2366 = vsel %vm1454, %v2358, 0
        %v2369 = vsel %vm1454, %v2355, 0
        %2371 = vmatprep.subr.bf16.mxu0 0
        %2372 = vmatpush1.bf16.msra.mxu0 0
        %2373 = vmatprep.subr.bf16.mxu0 0
        %2374 = vmatpush1.bf16.msra.mxu0 0
        %2375 = vmatprep.subr.bf16.mxu0 0
        %2376 = vmatpush1.bf16.msra.mxu0 0
        %2377 = vmatprep.subr.bf16.mxu0 0
        %2378 = vmatpush1.bf16.msra.mxu0 0
        %2379 = vmatprep.subr.bf16.mxu0 0
        %2380 = vmatpush1.bf16.msra.mxu0 0
        %2381 = vmatprep.subr.bf16.mxu0 0
        %2382 = vmatpush1.bf16.msra.mxu0 0
        %2383 = vmatprep.subr.bf16.mxu0 0
        %2384 = vmatpush1.bf16.msra.mxu0 0
        %2385 = vmatprep.subr.bf16.mxu0 %v2366
        %2386 = vmatpush1.bf16.msra.mxu0 %v2363
        %2387 = vmatprep.subr.bf16.mxu0 0
        %2388 = vmatpush2.bf16.msra.mxu0 0
        %2389 = vmatprep.subr.bf16.mxu0 0
        %2390 = vmatpush2.bf16.msra.mxu0 0
        %2391 = vmatprep.subr.bf16.mxu0 0
        %2392 = vmatpush2.bf16.msra.mxu0 0
        %2393 = vmatprep.subr.bf16.mxu0 0
        %2394 = vmatpush2.bf16.msra.mxu0 0
        %2395 = vmatprep.subr.bf16.mxu0 0
        %2396 = vmatpush2.bf16.msra.mxu0 0
        %2397 = vmatprep.subr.bf16.mxu0 0
        %2398 = vmatpush2.bf16.msra.mxu0 0
        %2399 = vmatprep.subr.bf16.mxu0 0
        %2400 = vmatpush2.bf16.msra.mxu0 0
        %2401 = vmatprep.subr.bf16.mxu0 0
        %2402 = vmatpush2.bf16.msra.mxu0 0
        %2403 = vmatprep.mubr.bf16.mxu0 0
        %2404 = vmatmul.mubr.bf16.gmra.mxu0 %v2360
        %v2405 = vpop.f32.mrf.mxu0
        %v2406 = vadd.f32 0.0, %v2405
        %v2407 = vpop.f32.mrf.mxu0
        %v2408 = vadd.f32 0.0, %v2407
        %v2409 = vpop.f32.mrf.mxu0
        %v2410 = vadd.f32 0.0, %v2409
        %v2411 = vpop.f32.mrf.mxu0
        %v2412 = vadd.f32 0.0, %v2411
        %2413 = vdwg.mxu0
        %2414 = vmatprep.subr.bf16.mxu0 0
        %2415 = vmatpush1.bf16.msra.mxu0 0
        %2416 = vmatprep.subr.bf16.mxu0 0
        %2417 = vmatpush1.bf16.msra.mxu0 0
        %2418 = vmatprep.subr.bf16.mxu0 0
        %2419 = vmatpush1.bf16.msra.mxu0 0
        %2420 = vmatprep.subr.bf16.mxu0 0
        %2421 = vmatpush1.bf16.msra.mxu0 0
        %2422 = vmatprep.subr.bf16.mxu0 0
        %2423 = vmatpush1.bf16.msra.mxu0 0
        %2424 = vmatprep.subr.bf16.mxu0 0
        %2425 = vmatpush1.bf16.msra.mxu0 0
        %2426 = vmatprep.subr.bf16.mxu0 0
        %2427 = vmatpush1.bf16.msra.mxu0 0
        %2428 = vmatprep.subr.bf16.mxu0 0
        %2429 = vmatpush1.bf16.msra.mxu0 %v2369
        %2430 = vmatprep.subr.bf16.mxu0 0
        %2431 = vmatpush2.bf16.msra.mxu0 0
        %2432 = vmatprep.subr.bf16.mxu0 0
        %2433 = vmatpush2.bf16.msra.mxu0 0
        %2434 = vmatprep.subr.bf16.mxu0 0
        %2435 = vmatpush2.bf16.msra.mxu0 0
        %2436 = vmatprep.subr.bf16.mxu0 0
        %2437 = vmatpush2.bf16.msra.mxu0 0
        %2438 = vmatprep.subr.bf16.mxu0 0
        %2439 = vmatpush2.bf16.msra.mxu0 0
        %2440 = vmatprep.subr.bf16.mxu0 0
        %2441 = vmatpush2.bf16.msra.mxu0 0
        %2442 = vmatprep.subr.bf16.mxu0 0
        %2443 = vmatpush2.bf16.msra.mxu0 0
        %2444 = vmatprep.subr.bf16.mxu0 0
        %2445 = vmatpush2.bf16.msra.mxu0 0
        %2446 = vmatprep.mubr.bf16.mxu0 0
        %2447 = vmatmul.mubr.bf16.gmra.mxu0 %v2360
        %v2448 = vpop.f32.mrf.mxu0
        %v2449 = vadd.f32 0.0, %v2448
        %v2450 = vpop.f32.mrf.mxu0
        %v2451 = vpop.f32.mrf.mxu0
        %v2452 = vadd.f32 0.0, %v2451
        %v2453 = vpop.f32.mrf.mxu0
        %2454 = vdwg.mxu0
        %v2455 = vadd.f32 %v2339, %v2406
        %v2456 = vadd.f32 %v2340, %v2408
        %v2457 = vadd.f32 %v2341, %v2449
        %v2458 = vadd.f32 %v2342, %v2410
        %v2459 = vadd.f32 %v2343, %v2412
        %v2460 = vadd.f32 %v2344, %v2452
        %2462 = vset.pattern.permute.xlu0 0
        %2463 = vperm.xlu0 %2462, %v317
        %v2464 = vpop.permute.xlu0 %2463
        %2467 = vset.pattern.permute.xlu0 0
        %2468 = vperm.xlu0 %2467, %v318
        %v2469 = vpop.permute.xlu0 %2468
        %v2471 = vadd.f32 %v2455, %v2464
        %v2472 = vadd.f32 %v2456, %v2464
        %v2473 = vadd.f32 %v2457, %v2464
        %v2474 = vadd.f32 %v2458, %v2469
        %v2475 = vadd.f32 %v2459, %v2469
        %v2476 = vadd.f32 %v2460, %v2469
        %2477 = vst [vmem:[%s292] sm:$0xff] %v2471
        %2478 = vst [vmem:[%s292 + $0x8] sm:$0xff] %v2472
        %vm2479 = vcmask 261120
        %2480 = vst.msk [vmem:[%s292 + $0x10] sm:$0xff] %vm2479, %v2473
        %2481 = vst [vmem:[%s292 + $0x18] sm:$0xff] %v2474
        %2482 = vst [vmem:[%s292 + $0x20] sm:$0xff] %v2475
        %2483 = vst.msk [vmem:[%s292 + $0x28] sm:$0xff] %vm2479, %v2476
        %vm2484 = vcmask 1047808
        %2485 = vst.msk [vmem:[%s292 + $0x10] sm:$0xff] %vm2484, 0.0
        %2486 = vst.msk [vmem:[%s292 + $0x28] sm:$0xff] %vm2484, 0.0
        %vm2487 = vcmask 896000
        %2488 = vst.msk [vmem:[#allocation3] sm:$0xf] %vm2487, 0
        %v2489 = vld [vmem:[%s251] sm:$0x1]
        %v2490 = vld [vmem:[%s251 + $0x8] sm:$0x1]
        %v2491 = vld [vmem:[%s251 + $0x10] sm:$0x1]
        %v2492 = vld [vmem:[%s251 + $0x18] sm:$0x1]
        %v2493 = vld [vmem:[%s251 + $0x20] sm:$0x1]
        %v2494 = vld [vmem:[%s251 + $0x28] sm:$0x1]
        %v2495 = vld [vmem:[%s251 + $0x30] sm:$0x1]
        %v2496 = vld [vmem:[%s251 + $0x38] sm:$0x1]
        %v2497 = vpack.c.bf16 %v2489, %v2489
        %v2498 = vpack.c.bf16 %v2490, %v2490
        %v2499 = vpack.c.bf16 %v2491, %v2491
        %v2500 = vpack.c.bf16 %v2492, %v2492
        %v2501 = vpack.c.bf16 %v2493, %v2493
        %v2502 = vpack.c.bf16 %v2494, %v2494
        %v2503 = vpack.c.bf16 %v2495, %v2495
        %v2504 = vpack.c.bf16 %v2496, %v2496
        %v2513 = vunpack.c.l.b16 %v2497
        %v2514 = vunpack.c.l.b16 %v2498
        %v2515 = vunpack.c.l.b16 %v2499
        %v2516 = vunpack.c.l.b16 %v2500
        %v2517 = vunpack.c.l.b16 %v2501
        %v2518 = vunpack.c.l.b16 %v2502
        %v2519 = vunpack.c.l.b16 %v2503
        %v2520 = vunpack.c.l.b16 %v2504
        %v2521 = vpack.c.b16 %v2513, %v2513
        %v2522 = vpack.c.b16 %v2514, %v2514
        %v2523 = vpack.c.b16 %v2515, %v2515
        %v2524 = vpack.c.b16 %v2516, %v2516
        %v2525 = vpack.c.b16 %v2517, %v2517
        %v2526 = vpack.c.b16 %v2518, %v2518
        %v2527 = vpack.c.b16 %v2519, %v2519
        %v2528 = vpack.c.b16 %v2520, %v2520
        %v2529 = vunpack.c.l.b16 %v2521
        %v2530 = vunpack.c.l.b16 %v2522
        %v2531 = vunpack.c.l.b16 %v2523
        %v2532 = vunpack.c.l.b16 %v2524
        %v2533 = vunpack.c.l.b16 %v2525
        %v2534 = vunpack.c.l.b16 %v2526
        %v2535 = vunpack.c.l.b16 %v2527
        %v2536 = vunpack.c.l.b16 %v2528
        %v2537 = vrot.slane %v2530, 7
        %v2538 = vsel %vm371, %v2537, %v2529
        %v2539 = vrot.slane %v2531, 6
        %v2540 = vsel %vm374, %v2539, %v2538
        %v2541 = vrot.slane %v2532, 5
        %v2542 = vsel %vm377, %v2541, %v2540
        %v2543 = vrot.slane %v2533, 4
        %v2544 = vsel %vm380, %v2543, %v2542
        %v2545 = vrot.slane %v2534, 3
        %v2546 = vsel %vm383, %v2545, %v2544
        %v2547 = vrot.slane %v2535, 2
        %v2548 = vsel %vm386, %v2547, %v2546
        %v2549 = vrot.slane %v2536, 1
        %v2550 = vsel %vm389, %v2549, %v2548
        %v2551 = vpack.c.b16 %v2550, %v2550
        %2552 = vrot.lane.b32.xlu0 %v2551, 11
        %v2553 = vpop.permute.xlu0 %2552
        %vm2555 = vcmask 150616
        %2556 = vst.msk [vmem:[#allocation3] sm:$0xf] %vm2555, %v2553
        %v2557 = vld [vmem:[%s251 + $0x1] sm:$0x1]
        %v2558 = vld [vmem:[%s251 + $0x9] sm:$0x1]
        %v2559 = vld [vmem:[%s251 + $0x11] sm:$0x1]
        %v2560 = vld [vmem:[%s251 + $0x19] sm:$0x1]
        %v2561 = vld [vmem:[%s251 + $0x21] sm:$0x1]
        %v2562 = vld [vmem:[%s251 + $0x29] sm:$0x1]
        %v2563 = vld [vmem:[%s251 + $0x31] sm:$0x1]
        %v2564 = vld [vmem:[%s251 + $0x39] sm:$0x1]
        %v2565 = vpack.c.bf16 %v2557, %v2557
        %v2566 = vpack.c.bf16 %v2558, %v2558
        %v2567 = vpack.c.bf16 %v2559, %v2559
        %v2568 = vpack.c.bf16 %v2560, %v2560
        %v2569 = vpack.c.bf16 %v2561, %v2561
        %v2570 = vpack.c.bf16 %v2562, %v2562
        %v2571 = vpack.c.bf16 %v2563, %v2563
        %v2572 = vpack.c.bf16 %v2564, %v2564
        %v2581 = vunpack.c.l.b16 %v2565
        %v2582 = vunpack.c.l.b16 %v2566
        %v2583 = vunpack.c.l.b16 %v2567
        %v2584 = vunpack.c.l.b16 %v2568
        %v2585 = vunpack.c.l.b16 %v2569
        %v2586 = vunpack.c.l.b16 %v2570
        %v2587 = vunpack.c.l.b16 %v2571
        %v2588 = vunpack.c.l.b16 %v2572
        %v2589 = vpack.c.b16 %v2581, %v2581
        %v2590 = vpack.c.b16 %v2582, %v2582
        %v2591 = vpack.c.b16 %v2583, %v2583
        %v2592 = vpack.c.b16 %v2584, %v2584
        %v2593 = vpack.c.b16 %v2585, %v2585
        %v2594 = vpack.c.b16 %v2586, %v2586
        %v2595 = vpack.c.b16 %v2587, %v2587
        %v2596 = vpack.c.b16 %v2588, %v2588
        %v2597 = vunpack.c.l.b16 %v2589
        %v2598 = vunpack.c.l.b16 %v2590
        %v2599 = vunpack.c.l.b16 %v2591
        %v2600 = vunpack.c.l.b16 %v2592
        %v2601 = vunpack.c.l.b16 %v2593
        %v2602 = vunpack.c.l.b16 %v2594
        %v2603 = vunpack.c.l.b16 %v2595
        %v2604 = vunpack.c.l.b16 %v2596
        %v2605 = vrot.slane %v2598, 7
        %v2606 = vsel %vm371, %v2605, %v2597
        %v2607 = vrot.slane %v2599, 6
        %v2608 = vsel %vm374, %v2607, %v2606
        %v2609 = vrot.slane %v2600, 5
        %v2610 = vsel %vm377, %v2609, %v2608
        %v2611 = vrot.slane %v2601, 4
        %v2612 = vsel %vm380, %v2611, %v2610
        %v2613 = vrot.slane %v2602, 3
        %v2614 = vsel %vm383, %v2613, %v2612
        %v2615 = vrot.slane %v2603, 2
        %v2616 = vsel %vm386, %v2615, %v2614
        %v2617 = vrot.slane %v2604, 1
        %v2618 = vsel %vm389, %v2617, %v2616
        %v2619 = vpack.c.b16 %v2618, %v2618
        %2620 = vrot.lane.b32.xlu0 %v2619, 21
        %v2621 = vpop.permute.xlu0 %2620
        %vm2623 = vcmask 232616
        %2624 = vst.msk [vmem:[#allocation3] sm:$0xf] %vm2623, %v2621
        %v2625 = vld [vmem:[%s251 + $0x2] sm:$0x1]
        %v2626 = vld [vmem:[%s251 + $0xa] sm:$0x1]
        %v2627 = vld [vmem:[%s251 + $0x12] sm:$0x1]
        %v2628 = vld [vmem:[%s251 + $0x1a] sm:$0x1]
        %v2629 = vld [vmem:[%s251 + $0x22] sm:$0x1]
        %v2630 = vld [vmem:[%s251 + $0x2a] sm:$0x1]
        %v2631 = vld [vmem:[%s251 + $0x32] sm:$0x1]
        %v2632 = vld [vmem:[%s251 + $0x3a] sm:$0x1]
        %v2633 = vpack.c.bf16 %v2625, %v2625
        %v2634 = vpack.c.bf16 %v2626, %v2626
        %v2635 = vpack.c.bf16 %v2627, %v2627
        %v2636 = vpack.c.bf16 %v2628, %v2628
        %v2637 = vpack.c.bf16 %v2629, %v2629
        %v2638 = vpack.c.bf16 %v2630, %v2630
        %v2639 = vpack.c.bf16 %v2631, %v2631
        %v2640 = vpack.c.bf16 %v2632, %v2632
        %v2649 = vunpack.c.l.b16 %v2633
        %v2650 = vunpack.c.l.b16 %v2634
        %v2651 = vunpack.c.l.b16 %v2635
        %v2652 = vunpack.c.l.b16 %v2636
        %v2653 = vunpack.c.l.b16 %v2637
        %v2654 = vunpack.c.l.b16 %v2638
        %v2655 = vunpack.c.l.b16 %v2639
        %v2656 = vunpack.c.l.b16 %v2640
        %v2657 = vpack.c.b16 %v2649, %v2649
        %v2658 = vpack.c.b16 %v2650, %v2650
        %v2659 = vpack.c.b16 %v2651, %v2651
        %v2660 = vpack.c.b16 %v2652, %v2652
        %v2661 = vpack.c.b16 %v2653, %v2653
        %v2662 = vpack.c.b16 %v2654, %v2654
        %v2663 = vpack.c.b16 %v2655, %v2655
        %v2664 = vpack.c.b16 %v2656, %v2656
        %v2665 = vunpack.c.l.b16 %v2657
        %v2666 = vunpack.c.l.b16 %v2658
        %v2667 = vunpack.c.l.b16 %v2659
        %v2668 = vunpack.c.l.b16 %v2660
        %v2669 = vunpack.c.l.b16 %v2661
        %v2670 = vunpack.c.l.b16 %v2662
        %v2671 = vunpack.c.l.b16 %v2663
        %v2672 = vunpack.c.l.b16 %v2664
        %v2673 = vrot.slane %v2666, 7
        %v2674 = vsel %vm371, %v2673, %v2665
        %v2675 = vrot.slane %v2667, 6
        %v2676 = vsel %vm374, %v2675, %v2674
        %v2677 = vrot.slane %v2668, 5
        %v2678 = vsel %vm377, %v2677, %v2676
        %v2679 = vrot.slane %v2669, 4
        %v2680 = vsel %vm380, %v2679, %v2678
        %v2681 = vrot.slane %v2670, 3
        %v2682 = vsel %vm383, %v2681, %v2680
        %v2683 = vrot.slane %v2671, 2
        %v2684 = vsel %vm386, %v2683, %v2682
        %v2685 = vrot.slane %v2672, 1
        %v2686 = vsel %vm389, %v2685, %v2684
        %v2687 = vpack.c.b16 %v2686, %v2686
        %2688 = vrot.lane.b32.xlu0 %v2687, 31
        %v2689 = vpop.permute.xlu0 %2688
        %vm2691 = vcmask 314616
        %2692 = vst.msk [vmem:[#allocation3] sm:$0xf] %vm2691, %v2689
        %v2693 = vld [vmem:[%s251 + $0x3] sm:$0x1]
        %v2694 = vld [vmem:[%s251 + $0xb] sm:$0x1]
        %v2695 = vld [vmem:[%s251 + $0x13] sm:$0x1]
        %v2696 = vld [vmem:[%s251 + $0x1b] sm:$0x1]
        %v2697 = vld [vmem:[%s251 + $0x23] sm:$0x1]
        %v2698 = vld [vmem:[%s251 + $0x2b] sm:$0x1]
        %v2699 = vld [vmem:[%s251 + $0x33] sm:$0x1]
        %v2700 = vld [vmem:[%s251 + $0x3b] sm:$0x1]
        %v2701 = vpack.c.bf16 %v2693, %v2693
        %v2702 = vpack.c.bf16 %v2694, %v2694
        %v2703 = vpack.c.bf16 %v2695, %v2695
        %v2704 = vpack.c.bf16 %v2696, %v2696
        %v2705 = vpack.c.bf16 %v2697, %v2697
        %v2706 = vpack.c.bf16 %v2698, %v2698
        %v2707 = vpack.c.bf16 %v2699, %v2699
        %v2708 = vpack.c.bf16 %v2700, %v2700
        %v2717 = vunpack.c.l.b16 %v2701
        %v2718 = vunpack.c.l.b16 %v2702
        %v2719 = vunpack.c.l.b16 %v2703
        %v2720 = vunpack.c.l.b16 %v2704
        %v2721 = vunpack.c.l.b16 %v2705
        %v2722 = vunpack.c.l.b16 %v2706
        %v2723 = vunpack.c.l.b16 %v2707
        %v2724 = vunpack.c.l.b16 %v2708
        %v2725 = vpack.c.b16 %v2717, %v2717
        %v2726 = vpack.c.b16 %v2718, %v2718
        %v2727 = vpack.c.b16 %v2719, %v2719
        %v2728 = vpack.c.b16 %v2720, %v2720
        %v2729 = vpack.c.b16 %v2721, %v2721
        %v2730 = vpack.c.b16 %v2722, %v2722
        %v2731 = vpack.c.b16 %v2723, %v2723
        %v2732 = vpack.c.b16 %v2724, %v2724
        %v2733 = vunpack.c.l.b16 %v2725
        %v2734 = vunpack.c.l.b16 %v2726
        %v2735 = vunpack.c.l.b16 %v2727
        %v2736 = vunpack.c.l.b16 %v2728
        %v2737 = vunpack.c.l.b16 %v2729
        %v2738 = vunpack.c.l.b16 %v2730
        %v2739 = vunpack.c.l.b16 %v2731
        %v2740 = vunpack.c.l.b16 %v2732
        %v2741 = vrot.slane %v2734, 7
        %v2742 = vsel %vm371, %v2741, %v2733
        %v2743 = vrot.slane %v2735, 6
        %v2744 = vsel %vm374, %v2743, %v2742
        %v2745 = vrot.slane %v2736, 5
        %v2746 = vsel %vm377, %v2745, %v2744
        %v2747 = vrot.slane %v2737, 4
        %v2748 = vsel %vm380, %v2747, %v2746
        %v2749 = vrot.slane %v2738, 3
        %v2750 = vsel %vm383, %v2749, %v2748
        %v2751 = vrot.slane %v2739, 2
        %v2752 = vsel %vm386, %v2751, %v2750
        %v2753 = vrot.slane %v2740, 1
        %v2754 = vsel %vm389, %v2753, %v2752
        %v2755 = vpack.c.b16 %v2754, %v2754
        %2756 = vrot.lane.b32.xlu0 %v2755, 41
        %v2757 = vpop.permute.xlu0 %2756
        %vm2759 = vcmask 396616
        %2760 = vst.msk [vmem:[#allocation3] sm:$0xf] %vm2759, %v2757
        %v2761 = vld [vmem:[%s251 + $0x4] sm:$0x1]
        %v2762 = vld [vmem:[%s251 + $0xc] sm:$0x1]
        %v2763 = vld [vmem:[%s251 + $0x14] sm:$0x1]
        %v2764 = vld [vmem:[%s251 + $0x1c] sm:$0x1]
        %v2765 = vld [vmem:[%s251 + $0x24] sm:$0x1]
        %v2766 = vld [vmem:[%s251 + $0x2c] sm:$0x1]
        %v2767 = vld [vmem:[%s251 + $0x34] sm:$0x1]
        %v2768 = vld [vmem:[%s251 + $0x3c] sm:$0x1]
        %v2769 = vpack.c.bf16 %v2761, %v2761
        %v2770 = vpack.c.bf16 %v2762, %v2762
        %v2771 = vpack.c.bf16 %v2763, %v2763
        %v2772 = vpack.c.bf16 %v2764, %v2764
        %v2773 = vpack.c.bf16 %v2765, %v2765
        %v2774 = vpack.c.bf16 %v2766, %v2766
        %v2775 = vpack.c.bf16 %v2767, %v2767
        %v2776 = vpack.c.bf16 %v2768, %v2768
        %v2785 = vunpack.c.l.b16 %v2769
        %v2786 = vunpack.c.l.b16 %v2770
        %v2787 = vunpack.c.l.b16 %v2771
        %v2788 = vunpack.c.l.b16 %v2772
        %v2789 = vunpack.c.l.b16 %v2773
        %v2790 = vunpack.c.l.b16 %v2774
        %v2791 = vunpack.c.l.b16 %v2775
        %v2792 = vunpack.c.l.b16 %v2776
        %v2793 = vpack.c.b16 %v2785, %v2785
        %v2794 = vpack.c.b16 %v2786, %v2786
        %v2795 = vpack.c.b16 %v2787, %v2787
        %v2796 = vpack.c.b16 %v2788, %v2788
        %v2797 = vpack.c.b16 %v2789, %v2789
        %v2798 = vpack.c.b16 %v2790, %v2790
        %v2799 = vpack.c.b16 %v2791, %v2791
        %v2800 = vpack.c.b16 %v2792, %v2792
        %v2801 = vunpack.c.l.b16 %v2793
        %v2802 = vunpack.c.l.b16 %v2794
        %v2803 = vunpack.c.l.b16 %v2795
        %v2804 = vunpack.c.l.b16 %v2796
        %v2805 = vunpack.c.l.b16 %v2797
        %v2806 = vunpack.c.l.b16 %v2798
        %v2807 = vunpack.c.l.b16 %v2799
        %v2808 = vunpack.c.l.b16 %v2800
        %v2809 = vrot.slane %v2802, 7
        %v2810 = vsel %vm371, %v2809, %v2801
        %v2811 = vrot.slane %v2803, 6
        %v2812 = vsel %vm374, %v2811, %v2810
        %v2813 = vrot.slane %v2804, 5
        %v2814 = vsel %vm377, %v2813, %v2812
        %v2815 = vrot.slane %v2805, 4
        %v2816 = vsel %vm380, %v2815, %v2814
        %v2817 = vrot.slane %v2806, 3
        %v2818 = vsel %vm383, %v2817, %v2816
        %v2819 = vrot.slane %v2807, 2
        %v2820 = vsel %vm386, %v2819, %v2818
        %v2821 = vrot.slane %v2808, 1
        %v2822 = vsel %vm389, %v2821, %v2820
        %v2823 = vpack.c.b16 %v2822, %v2822
        %2824 = vrot.lane.b32.xlu0 %v2823, 51
        %v2825 = vpop.permute.xlu0 %2824
        %vm2827 = vcmask 478616
        %2828 = vst.msk [vmem:[#allocation3] sm:$0xf] %vm2827, %v2825
        %v2829 = vld [vmem:[%s251 + $0x5] sm:$0x1]
        %v2830 = vld [vmem:[%s251 + $0xd] sm:$0x1]
        %v2831 = vld [vmem:[%s251 + $0x15] sm:$0x1]
        %v2832 = vld [vmem:[%s251 + $0x1d] sm:$0x1]
        %v2833 = vld [vmem:[%s251 + $0x25] sm:$0x1]
        %v2834 = vld [vmem:[%s251 + $0x2d] sm:$0x1]
        %v2835 = vld [vmem:[%s251 + $0x35] sm:$0x1]
        %v2836 = vld [vmem:[%s251 + $0x3d] sm:$0x1]
        %v2837 = vpack.c.bf16 %v2829, %v2829
        %v2838 = vpack.c.bf16 %v2830, %v2830
        %v2839 = vpack.c.bf16 %v2831, %v2831
        %v2840 = vpack.c.bf16 %v2832, %v2832
        %v2841 = vpack.c.bf16 %v2833, %v2833
        %v2842 = vpack.c.bf16 %v2834, %v2834
        %v2843 = vpack.c.bf16 %v2835, %v2835
        %v2844 = vpack.c.bf16 %v2836, %v2836
        %v2853 = vunpack.c.l.b16 %v2837
        %v2854 = vunpack.c.l.b16 %v2838
        %v2855 = vunpack.c.l.b16 %v2839
        %v2856 = vunpack.c.l.b16 %v2840
        %v2857 = vunpack.c.l.b16 %v2841
        %v2858 = vunpack.c.l.b16 %v2842
        %v2859 = vunpack.c.l.b16 %v2843
        %v2860 = vunpack.c.l.b16 %v2844
        %v2861 = vpack.c.b16 %v2853, %v2853
        %v2862 = vpack.c.b16 %v2854, %v2854
        %v2863 = vpack.c.b16 %v2855, %v2855
        %v2864 = vpack.c.b16 %v2856, %v2856
        %v2865 = vpack.c.b16 %v2857, %v2857
        %v2866 = vpack.c.b16 %v2858, %v2858
        %v2867 = vpack.c.b16 %v2859, %v2859
        %v2868 = vpack.c.b16 %v2860, %v2860
        %v2869 = vunpack.c.l.b16 %v2861
        %v2870 = vunpack.c.l.b16 %v2862
        %v2871 = vunpack.c.l.b16 %v2863
        %v2872 = vunpack.c.l.b16 %v2864
        %v2873 = vunpack.c.l.b16 %v2865
        %v2874 = vunpack.c.l.b16 %v2866
        %v2875 = vunpack.c.l.b16 %v2867
        %v2876 = vunpack.c.l.b16 %v2868
        %v2877 = vrot.slane %v2870, 7
        %v2878 = vsel %vm371, %v2877, %v2869
        %v2879 = vrot.slane %v2871, 6
        %v2880 = vsel %vm374, %v2879, %v2878
        %v2881 = vrot.slane %v2872, 5
        %v2882 = vsel %vm377, %v2881, %v2880
        %v2883 = vrot.slane %v2873, 4
        %v2884 = vsel %vm380, %v2883, %v2882
        %v2885 = vrot.slane %v2874, 3
        %v2886 = vsel %vm383, %v2885, %v2884
        %v2887 = vrot.slane %v2875, 2
        %v2888 = vsel %vm386, %v2887, %v2886
        %v2889 = vrot.slane %v2876, 1
        %v2890 = vsel %vm389, %v2889, %v2888
        %v2891 = vpack.c.b16 %v2890, %v2890
        %2892 = vrot.lane.b32.xlu0 %v2891, 61
        %v2893 = vpop.permute.xlu0 %2892
        %vm2895 = vcmask 560616
        %2896 = vst.msk [vmem:[#allocation3] sm:$0xf] %vm2895, %v2893
        %v2897 = vld [vmem:[%s251 + $0x6] sm:$0x1]
        %v2898 = vld [vmem:[%s251 + $0xe] sm:$0x1]
        %v2899 = vld [vmem:[%s251 + $0x16] sm:$0x1]
        %v2900 = vld [vmem:[%s251 + $0x1e] sm:$0x1]
        %v2901 = vld [vmem:[%s251 + $0x26] sm:$0x1]
        %v2902 = vld [vmem:[%s251 + $0x2e] sm:$0x1]
        %v2903 = vld [vmem:[%s251 + $0x36] sm:$0x1]
        %v2904 = vld [vmem:[%s251 + $0x3e] sm:$0x1]
        %v2905 = vpack.c.bf16 %v2897, %v2897
        %v2906 = vpack.c.bf16 %v2898, %v2898
        %v2907 = vpack.c.bf16 %v2899, %v2899
        %v2908 = vpack.c.bf16 %v2900, %v2900
        %v2909 = vpack.c.bf16 %v2901, %v2901
        %v2910 = vpack.c.bf16 %v2902, %v2902
        %v2911 = vpack.c.bf16 %v2903, %v2903
        %v2912 = vpack.c.bf16 %v2904, %v2904
        %v2921 = vunpack.c.l.b16 %v2905
        %v2922 = vunpack.c.l.b16 %v2906
        %v2923 = vunpack.c.l.b16 %v2907
        %v2924 = vunpack.c.l.b16 %v2908
        %v2925 = vunpack.c.l.b16 %v2909
        %v2926 = vunpack.c.l.b16 %v2910
        %v2927 = vunpack.c.l.b16 %v2911
        %v2928 = vunpack.c.l.b16 %v2912
        %v2929 = vpack.c.b16 %v2921, %v2921
        %v2930 = vpack.c.b16 %v2922, %v2922
        %v2931 = vpack.c.b16 %v2923, %v2923
        %v2932 = vpack.c.b16 %v2924, %v2924
        %v2933 = vpack.c.b16 %v2925, %v2925
        %v2934 = vpack.c.b16 %v2926, %v2926
        %v2935 = vpack.c.b16 %v2927, %v2927
        %v2936 = vpack.c.b16 %v2928, %v2928
        %v2937 = vunpack.c.l.b16 %v2929
        %v2938 = vunpack.c.l.b16 %v2930
        %v2939 = vunpack.c.l.b16 %v2931
        %v2940 = vunpack.c.l.b16 %v2932
        %v2941 = vunpack.c.l.b16 %v2933
        %v2942 = vunpack.c.l.b16 %v2934
        %v2943 = vunpack.c.l.b16 %v2935
        %v2944 = vunpack.c.l.b16 %v2936
        %v2945 = vrot.slane %v2938, 7
        %v2946 = vsel %vm371, %v2945, %v2937
        %v2947 = vrot.slane %v2939, 6
        %v2948 = vsel %vm374, %v2947, %v2946
        %v2949 = vrot.slane %v2940, 5
        %v2950 = vsel %vm377, %v2949, %v2948
        %v2951 = vrot.slane %v2941, 4
        %v2952 = vsel %vm380, %v2951, %v2950
        %v2953 = vrot.slane %v2942, 3
        %v2954 = vsel %vm383, %v2953, %v2952
        %v2955 = vrot.slane %v2943, 2
        %v2956 = vsel %vm386, %v2955, %v2954
        %v2957 = vrot.slane %v2944, 1
        %v2958 = vsel %vm389, %v2957, %v2956
        %v2959 = vpack.c.b16 %v2958, %v2958
        %2960 = vrot.lane.b32.xlu0 %v2959, 71
        %v2961 = vpop.permute.xlu0 %2960
        %vm2963 = vcmask 642616
        %2964 = vst.msk [vmem:[#allocation3] sm:$0xf] %vm2963, %v2961
        %v2965 = vld [vmem:[%s251 + $0x7] sm:$0x1]
        %v2966 = vld [vmem:[%s251 + $0xf] sm:$0x1]
        %v2967 = vld [vmem:[%s251 + $0x17] sm:$0x1]
        %v2968 = vld [vmem:[%s251 + $0x1f] sm:$0x1]
        %v2969 = vld [vmem:[%s251 + $0x27] sm:$0x1]
        %v2970 = vld [vmem:[%s251 + $0x2f] sm:$0x1]
        %v2971 = vld [vmem:[%s251 + $0x37] sm:$0x1]
        %v2972 = vld [vmem:[%s251 + $0x3f] sm:$0x1]
        %v2973 = vpack.c.bf16 %v2965, %v2965
        %v2974 = vpack.c.bf16 %v2966, %v2966
        %v2975 = vpack.c.bf16 %v2967, %v2967
        %v2976 = vpack.c.bf16 %v2968, %v2968
        %v2977 = vpack.c.bf16 %v2969, %v2969
        %v2978 = vpack.c.bf16 %v2970, %v2970
        %v2979 = vpack.c.bf16 %v2971, %v2971
        %v2980 = vpack.c.bf16 %v2972, %v2972
        %v2989 = vunpack.c.l.b16 %v2973
        %v2990 = vunpack.c.l.b16 %v2974
        %v2991 = vunpack.c.l.b16 %v2975
        %v2992 = vunpack.c.l.b16 %v2976
        %v2993 = vunpack.c.l.b16 %v2977
        %v2994 = vunpack.c.l.b16 %v2978
        %v2995 = vunpack.c.l.b16 %v2979
        %v2996 = vunpack.c.l.b16 %v2980
        %v2997 = vpack.c.b16 %v2989, %v2989
        %v2998 = vpack.c.b16 %v2990, %v2990
        %v2999 = vpack.c.b16 %v2991, %v2991
        %v3000 = vpack.c.b16 %v2992, %v2992
        %v3001 = vpack.c.b16 %v2993, %v2993
        %v3002 = vpack.c.b16 %v2994, %v2994
        %v3003 = vpack.c.b16 %v2995, %v2995
        %v3004 = vpack.c.b16 %v2996, %v2996
        %v3005 = vunpack.c.l.b16 %v2997
        %v3006 = vunpack.c.l.b16 %v2998
        %v3007 = vunpack.c.l.b16 %v2999
        %v3008 = vunpack.c.l.b16 %v3000
        %v3009 = vunpack.c.l.b16 %v3001
        %v3010 = vunpack.c.l.b16 %v3002
        %v3011 = vunpack.c.l.b16 %v3003
        %v3012 = vunpack.c.l.b16 %v3004
        %v3013 = vrot.slane %v3006, 7
        %v3014 = vsel %vm371, %v3013, %v3005
        %v3015 = vrot.slane %v3007, 6
        %v3016 = vsel %vm374, %v3015, %v3014
        %v3017 = vrot.slane %v3008, 5
        %v3018 = vsel %vm377, %v3017, %v3016
        %v3019 = vrot.slane %v3009, 4
        %v3020 = vsel %vm380, %v3019, %v3018
        %v3021 = vrot.slane %v3010, 3
        %v3022 = vsel %vm383, %v3021, %v3020
        %v3023 = vrot.slane %v3011, 2
        %v3024 = vsel %vm386, %v3023, %v3022
        %v3025 = vrot.slane %v3012, 1
        %v3026 = vsel %vm389, %v3025, %v3024
        %v3027 = vpack.c.b16 %v3026, %v3026
        %3028 = vrot.lane.b32.xlu0 %v3027, 81
        %v3029 = vpop.permute.xlu0 %3028
        %vm3031 = vcmask 724616
        %3032 = vst.msk [vmem:[#allocation3] sm:$0xf] %vm3031, %v3029
        %v3033 = vld [vmem:[#allocation3] sm:$0xf]
        %v3035 = vunpack.c.l.b16 %v3033
        %v3036 = vpack.c.b16 %v3035, %v3035
        %3037 = vrot.lane.b32.xlu0 %v3036, 127
        %v3038 = vpop.permute.xlu0 %3037
        %v3040 = vsel %vm1454, %v3038, 0
        %3042 = vmatprep.subr.bf16.mxu0 0
        %3043 = vmatpush1.bf16.msra.mxu0 0
        %3044 = vmatprep.subr.bf16.mxu0 0
        %3045 = vmatpush1.bf16.msra.mxu0 0
        %3046 = vmatprep.subr.bf16.mxu0 0
        %3047 = vmatpush1.bf16.msra.mxu0 0
        %3048 = vmatprep.subr.bf16.mxu0 0
        %3049 = vmatpush1.bf16.msra.mxu0 0
        %3050 = vmatprep.subr.bf16.mxu0 0
        %3051 = vmatpush1.bf16.msra.mxu0 0
        %3052 = vmatprep.subr.bf16.mxu0 0
        %3053 = vmatpush1.bf16.msra.mxu0 0
        %3054 = vmatprep.subr.bf16.mxu0 0
        %3055 = vmatpush1.bf16.msra.mxu0 0
        %3056 = vmatprep.subr.bf16.mxu0 0
        %3057 = vmatpush1.bf16.msra.mxu0 %v3040
        %3058 = vmatprep.subr.bf16.mxu0 0
        %3059 = vmatpush2.bf16.msra.mxu0 0
        %3060 = vmatprep.subr.bf16.mxu0 0
        %3061 = vmatpush2.bf16.msra.mxu0 0
        %3062 = vmatprep.subr.bf16.mxu0 0
        %3063 = vmatpush2.bf16.msra.mxu0 0
        %3064 = vmatprep.subr.bf16.mxu0 0
        %3065 = vmatpush2.bf16.msra.mxu0 0
        %3066 = vmatprep.subr.bf16.mxu0 0
        %3067 = vmatpush2.bf16.msra.mxu0 0
        %3068 = vmatprep.subr.bf16.mxu0 0
        %3069 = vmatpush2.bf16.msra.mxu0 0
        %3070 = vmatprep.subr.bf16.mxu0 0
        %3071 = vmatpush2.bf16.msra.mxu0 0
        %3072 = vmatprep.subr.bf16.mxu0 0
        %3073 = vmatpush2.bf16.msra.mxu0 0
        %3074 = vmatprep.mubr.bf16.mxu0 0
        %3075 = vmatmul.mubr.bf16.gmra.mxu0 %v1452
        %v3076 = vpop.f32.mrf.mxu0
        %v3077 = vadd.f32 0.0, %v3076
        %v3078 = vpop.f32.mrf.mxu0
        %v3079 = vpop.f32.mrf.mxu0
        %v3080 = vadd.f32 0.0, %v3079
        %v3081 = vpop.f32.mrf.mxu0
        %3082 = vdwg.mxu0
        %v3084 = vsel %vm1454, %v3033, 0
        %3086 = vmatprep.subr.bf16.mxu0 0
        %3087 = vmatpush1.bf16.msra.mxu0 0
        %3088 = vmatprep.subr.bf16.mxu0 0
        %3089 = vmatpush1.bf16.msra.mxu0 0
        %3090 = vmatprep.subr.bf16.mxu0 0
        %3091 = vmatpush1.bf16.msra.mxu0 0
        %3092 = vmatprep.subr.bf16.mxu0 0
        %3093 = vmatpush1.bf16.msra.mxu0 0
        %3094 = vmatprep.subr.bf16.mxu0 0
        %3095 = vmatpush1.bf16.msra.mxu0 0
        %3096 = vmatprep.subr.bf16.mxu0 0
        %3097 = vmatpush1.bf16.msra.mxu0 0
        %3098 = vmatprep.subr.bf16.mxu0 0
        %3099 = vmatpush1.bf16.msra.mxu0 0
        %3100 = vmatprep.subr.bf16.mxu0 0
        %3101 = vmatpush1.bf16.msra.mxu0 %v3084
        %3102 = vmatprep.subr.bf16.mxu0 0
        %3103 = vmatpush2.bf16.msra.mxu0 0
        %3104 = vmatprep.subr.bf16.mxu0 0
        %3105 = vmatpush2.bf16.msra.mxu0 0
        %3106 = vmatprep.subr.bf16.mxu0 0
        %3107 = vmatpush2.bf16.msra.mxu0 0
        %3108 = vmatprep.subr.bf16.mxu0 0
        %3109 = vmatpush2.bf16.msra.mxu0 0
        %3110 = vmatprep.subr.bf16.mxu0 0
        %3111 = vmatpush2.bf16.msra.mxu0 0
        %3112 = vmatprep.subr.bf16.mxu0 0
        %3113 = vmatpush2.bf16.msra.mxu0 0
        %3114 = vmatprep.subr.bf16.mxu0 0
        %3115 = vmatpush2.bf16.msra.mxu0 0
        %3116 = vmatprep.subr.bf16.mxu0 0
        %3117 = vmatpush2.bf16.msra.mxu0 0
        %3118 = vmatprep.mubr.bf16.mxu0 0
        %3119 = vmatmul.mubr.bf16.gmra.mxu0 %v1554
        %v3120 = vpop.f32.mrf.mxu0
        %v3121 = vadd.f32 %v3077, %v3120
        %v3122 = vpop.f32.mrf.mxu0
        %v3123 = vpop.f32.mrf.mxu0
        %v3124 = vadd.f32 %v3080, %v3123
        %v3125 = vpop.f32.mrf.mxu0
        %3126 = vdwg.mxu0
        %3127 = vrot.lane.b32.xlu0 %v3036, 126
        %v3128 = vpop.permute.xlu0 %3127
        %v3130 = vsel %vm1454, %v3128, 0
        %3132 = vmatprep.subr.bf16.mxu0 0
        %3133 = vmatpush1.bf16.msra.mxu0 0
        %3134 = vmatprep.subr.bf16.mxu0 0
        %3135 = vmatpush1.bf16.msra.mxu0 0
        %3136 = vmatprep.subr.bf16.mxu0 0
        %3137 = vmatpush1.bf16.msra.mxu0 0
        %3138 = vmatprep.subr.bf16.mxu0 0
        %3139 = vmatpush1.bf16.msra.mxu0 0
        %3140 = vmatprep.subr.bf16.mxu0 0
        %3141 = vmatpush1.bf16.msra.mxu0 0
        %3142 = vmatprep.subr.bf16.mxu0 0
        %3143 = vmatpush1.bf16.msra.mxu0 0
        %3144 = vmatprep.subr.bf16.mxu0 0
        %3145 = vmatpush1.bf16.msra.mxu0 0
        %3146 = vmatprep.subr.bf16.mxu0 0
        %3147 = vmatpush1.bf16.msra.mxu0 %v3130
        %3148 = vmatprep.subr.bf16.mxu0 0
        %3149 = vmatpush2.bf16.msra.mxu0 0
        %3150 = vmatprep.subr.bf16.mxu0 0
        %3151 = vmatpush2.bf16.msra.mxu0 0
        %3152 = vmatprep.subr.bf16.mxu0 0
        %3153 = vmatpush2.bf16.msra.mxu0 0
        %3154 = vmatprep.subr.bf16.mxu0 0
        %3155 = vmatpush2.bf16.msra.mxu0 0
        %3156 = vmatprep.subr.bf16.mxu0 0
        %3157 = vmatpush2.bf16.msra.mxu0 0
        %3158 = vmatprep.subr.bf16.mxu0 0
        %3159 = vmatpush2.bf16.msra.mxu0 0
        %3160 = vmatprep.subr.bf16.mxu0 0
        %3161 = vmatpush2.bf16.msra.mxu0 0
        %3162 = vmatprep.subr.bf16.mxu0 0
        %3163 = vmatpush2.bf16.msra.mxu0 0
        %3164 = vmatprep.mubr.bf16.mxu0 0
        %3165 = vmatmul.mubr.bf16.gmra.mxu0 %v1664
        %v3166 = vpop.f32.mrf.mxu0
        %v3167 = vadd.f32 0.0, %v3166
        %v3168 = vpop.f32.mrf.mxu0
        %v3169 = vpop.f32.mrf.mxu0
        %v3170 = vadd.f32 0.0, %v3169
        %v3171 = vpop.f32.mrf.mxu0
        %3172 = vdwg.mxu0
        %v3173 = vadd.f32 %v3121, %v3167
        %v3174 = vadd.f32 %v3124, %v3170
        %3175 = vrot.lane.b32.xlu0 %v3036, 118
        %v3176 = vpop.permute.xlu0 %3175
        %v3178 = vsel %vm1454, %v3176, 0
        %3180 = vmatprep.subr.bf16.mxu0 0
        %3181 = vmatpush1.bf16.msra.mxu0 0
        %3182 = vmatprep.subr.bf16.mxu0 0
        %3183 = vmatpush1.bf16.msra.mxu0 0
        %3184 = vmatprep.subr.bf16.mxu0 0
        %3185 = vmatpush1.bf16.msra.mxu0 0
        %3186 = vmatprep.subr.bf16.mxu0 0
        %3187 = vmatpush1.bf16.msra.mxu0 0
        %3188 = vmatprep.subr.bf16.mxu0 0
        %3189 = vmatpush1.bf16.msra.mxu0 0
        %3190 = vmatprep.subr.bf16.mxu0 0
        %3191 = vmatpush1.bf16.msra.mxu0 0
        %3192 = vmatprep.subr.bf16.mxu0 0
        %3193 = vmatpush1.bf16.msra.mxu0 0
        %3194 = vmatprep.subr.bf16.mxu0 0
        %3195 = vmatpush1.bf16.msra.mxu0 %v3178
        %3196 = vmatprep.subr.bf16.mxu0 0
        %3197 = vmatpush2.bf16.msra.mxu0 0
        %3198 = vmatprep.subr.bf16.mxu0 0
        %3199 = vmatpush2.bf16.msra.mxu0 0
        %3200 = vmatprep.subr.bf16.mxu0 0
        %3201 = vmatpush2.bf16.msra.mxu0 0
        %3202 = vmatprep.subr.bf16.mxu0 0
        %3203 = vmatpush2.bf16.msra.mxu0 0
        %3204 = vmatprep.subr.bf16.mxu0 0
        %3205 = vmatpush2.bf16.msra.mxu0 0
        %3206 = vmatprep.subr.bf16.mxu0 0
        %3207 = vmatpush2.bf16.msra.mxu0 0
        %3208 = vmatprep.subr.bf16.mxu0 0
        %3209 = vmatpush2.bf16.msra.mxu0 0
        %3210 = vmatprep.subr.bf16.mxu0 0
        %3211 = vmatpush2.bf16.msra.mxu0 0
        %3212 = vmatprep.mubr.bf16.mxu0 0
        %3213 = vmatmul.mubr.bf16.gmra.mxu0 %v1780
        %v3214 = vpop.f32.mrf.mxu0
        %v3215 = vadd.f32 0.0, %v3214
        %v3216 = vpop.f32.mrf.mxu0
        %v3217 = vpop.f32.mrf.mxu0
        %v3218 = vadd.f32 0.0, %v3217
        %v3219 = vpop.f32.mrf.mxu0
        %3220 = vdwg.mxu0
        %v3221 = vadd.f32 %v3173, %v3215
        %v3222 = vadd.f32 %v3174, %v3218
        %3223 = vrot.lane.b32.xlu0 %v3036, 117
        %v3224 = vpop.permute.xlu0 %3223
        %v3226 = vsel %vm1454, %v3224, 0
        %3228 = vmatprep.subr.bf16.mxu0 0
        %3229 = vmatpush1.bf16.msra.mxu0 0
        %3230 = vmatprep.subr.bf16.mxu0 0
        %3231 = vmatpush1.bf16.msra.mxu0 0
        %3232 = vmatprep.subr.bf16.mxu0 0
        %3233 = vmatpush1.bf16.msra.mxu0 0
        %3234 = vmatprep.subr.bf16.mxu0 0
        %3235 = vmatpush1.bf16.msra.mxu0 0
        %3236 = vmatprep.subr.bf16.mxu0 0
        %3237 = vmatpush1.bf16.msra.mxu0 0
        %3238 = vmatprep.subr.bf16.mxu0 0
        %3239 = vmatpush1.bf16.msra.mxu0 0
        %3240 = vmatprep.subr.bf16.mxu0 0
        %3241 = vmatpush1.bf16.msra.mxu0 0
        %3242 = vmatprep.subr.bf16.mxu0 0
        %3243 = vmatpush1.bf16.msra.mxu0 %v3226
        %3244 = vmatprep.subr.bf16.mxu0 0
        %3245 = vmatpush2.bf16.msra.mxu0 0
        %3246 = vmatprep.subr.bf16.mxu0 0
        %3247 = vmatpush2.bf16.msra.mxu0 0
        %3248 = vmatprep.subr.bf16.mxu0 0
        %3249 = vmatpush2.bf16.msra.mxu0 0
        %3250 = vmatprep.subr.bf16.mxu0 0
        %3251 = vmatpush2.bf16.msra.mxu0 0
        %3252 = vmatprep.subr.bf16.mxu0 0
        %3253 = vmatpush2.bf16.msra.mxu0 0
        %3254 = vmatprep.subr.bf16.mxu0 0
        %3255 = vmatpush2.bf16.msra.mxu0 0
        %3256 = vmatprep.subr.bf16.mxu0 0
        %3257 = vmatpush2.bf16.msra.mxu0 0
        %3258 = vmatprep.subr.bf16.mxu0 0
        %3259 = vmatpush2.bf16.msra.mxu0 0
        %3260 = vmatprep.mubr.bf16.mxu0 0
        %3261 = vmatmul.mubr.bf16.gmra.mxu0 %v1896
        %v3262 = vpop.f32.mrf.mxu0
        %v3263 = vadd.f32 0.0, %v3262
        %v3264 = vpop.f32.mrf.mxu0
        %v3265 = vpop.f32.mrf.mxu0
        %v3266 = vadd.f32 0.0, %v3265
        %v3267 = vpop.f32.mrf.mxu0
        %3268 = vdwg.mxu0
        %v3269 = vadd.f32 %v3221, %v3263
        %v3270 = vadd.f32 %v3222, %v3266
        %3271 = vrot.lane.b32.xlu0 %v3036, 116
        %v3272 = vpop.permute.xlu0 %3271
        %v3274 = vsel %vm1454, %v3272, 0
        %3276 = vmatprep.subr.bf16.mxu0 0
        %3277 = vmatpush1.bf16.msra.mxu0 0
        %3278 = vmatprep.subr.bf16.mxu0 0
        %3279 = vmatpush1.bf16.msra.mxu0 0
        %3280 = vmatprep.subr.bf16.mxu0 0
        %3281 = vmatpush1.bf16.msra.mxu0 0
        %3282 = vmatprep.subr.bf16.mxu0 0
        %3283 = vmatpush1.bf16.msra.mxu0 0
        %3284 = vmatprep.subr.bf16.mxu0 0
        %3285 = vmatpush1.bf16.msra.mxu0 0
        %3286 = vmatprep.subr.bf16.mxu0 0
        %3287 = vmatpush1.bf16.msra.mxu0 0
        %3288 = vmatprep.subr.bf16.mxu0 0
        %3289 = vmatpush1.bf16.msra.mxu0 0
        %3290 = vmatprep.subr.bf16.mxu0 0
        %3291 = vmatpush1.bf16.msra.mxu0 %v3274
        %3292 = vmatprep.subr.bf16.mxu0 0
        %3293 = vmatpush2.bf16.msra.mxu0 0
        %3294 = vmatprep.subr.bf16.mxu0 0
        %3295 = vmatpush2.bf16.msra.mxu0 0
        %3296 = vmatprep.subr.bf16.mxu0 0
        %3297 = vmatpush2.bf16.msra.mxu0 0
        %3298 = vmatprep.subr.bf16.mxu0 0
        %3299 = vmatpush2.bf16.msra.mxu0 0
        %3300 = vmatprep.subr.bf16.mxu0 0
        %3301 = vmatpush2.bf16.msra.mxu0 0
        %3302 = vmatprep.subr.bf16.mxu0 0
        %3303 = vmatpush2.bf16.msra.mxu0 0
        %3304 = vmatprep.subr.bf16.mxu0 0
        %3305 = vmatpush2.bf16.msra.mxu0 0
        %3306 = vmatprep.subr.bf16.mxu0 0
        %3307 = vmatpush2.bf16.msra.mxu0 0
        %3308 = vmatprep.mubr.bf16.mxu0 0
        %3309 = vmatmul.mubr.bf16.gmra.mxu0 %v2012
        %v3310 = vpop.f32.mrf.mxu0
        %v3311 = vadd.f32 0.0, %v3310
        %v3312 = vpop.f32.mrf.mxu0
        %v3313 = vpop.f32.mrf.mxu0
        %v3314 = vadd.f32 0.0, %v3313
        %v3315 = vpop.f32.mrf.mxu0
        %3316 = vdwg.mxu0
        %v3317 = vadd.f32 %v3269, %v3311
        %v3318 = vadd.f32 %v3270, %v3314
        %3319 = vrot.lane.b32.xlu0 %v3036, 108
        %v3320 = vpop.permute.xlu0 %3319
        %v3322 = vsel %vm1454, %v3320, 0
        %3324 = vmatprep.subr.bf16.mxu0 0
        %3325 = vmatpush1.bf16.msra.mxu0 0
        %3326 = vmatprep.subr.bf16.mxu0 0
        %3327 = vmatpush1.bf16.msra.mxu0 0
        %3328 = vmatprep.subr.bf16.mxu0 0
        %3329 = vmatpush1.bf16.msra.mxu0 0
        %3330 = vmatprep.subr.bf16.mxu0 0
        %3331 = vmatpush1.bf16.msra.mxu0 0
        %3332 = vmatprep.subr.bf16.mxu0 0
        %3333 = vmatpush1.bf16.msra.mxu0 0
        %3334 = vmatprep.subr.bf16.mxu0 0
        %3335 = vmatpush1.bf16.msra.mxu0 0
        %3336 = vmatprep.subr.bf16.mxu0 0
        %3337 = vmatpush1.bf16.msra.mxu0 0
        %3338 = vmatprep.subr.bf16.mxu0 0
        %3339 = vmatpush1.bf16.msra.mxu0 %v3322
        %3340 = vmatprep.subr.bf16.mxu0 0
        %3341 = vmatpush2.bf16.msra.mxu0 0
        %3342 = vmatprep.subr.bf16.mxu0 0
        %3343 = vmatpush2.bf16.msra.mxu0 0
        %3344 = vmatprep.subr.bf16.mxu0 0
        %3345 = vmatpush2.bf16.msra.mxu0 0
        %3346 = vmatprep.subr.bf16.mxu0 0
        %3347 = vmatpush2.bf16.msra.mxu0 0
        %3348 = vmatprep.subr.bf16.mxu0 0
        %3349 = vmatpush2.bf16.msra.mxu0 0
        %3350 = vmatprep.subr.bf16.mxu0 0
        %3351 = vmatpush2.bf16.msra.mxu0 0
        %3352 = vmatprep.subr.bf16.mxu0 0
        %3353 = vmatpush2.bf16.msra.mxu0 0
        %3354 = vmatprep.subr.bf16.mxu0 0
        %3355 = vmatpush2.bf16.msra.mxu0 0
        %3356 = vmatprep.mubr.bf16.mxu0 0
        %3357 = vmatmul.mubr.bf16.gmra.mxu0 %v2128
        %v3358 = vpop.f32.mrf.mxu0
        %v3359 = vadd.f32 0.0, %v3358
        %v3360 = vpop.f32.mrf.mxu0
        %v3361 = vpop.f32.mrf.mxu0
        %v3362 = vadd.f32 0.0, %v3361
        %v3363 = vpop.f32.mrf.mxu0
        %3364 = vdwg.mxu0
        %v3365 = vadd.f32 %v3317, %v3359
        %v3366 = vadd.f32 %v3318, %v3362
        %3367 = vrot.lane.b32.xlu0 %v3036, 107
        %v3368 = vpop.permute.xlu0 %3367
        %v3370 = vsel %vm1454, %v3368, 0
        %3372 = vmatprep.subr.bf16.mxu0 0
        %3373 = vmatpush1.bf16.msra.mxu0 0
        %3374 = vmatprep.subr.bf16.mxu0 0
        %3375 = vmatpush1.bf16.msra.mxu0 0
        %3376 = vmatprep.subr.bf16.mxu0 0
        %3377 = vmatpush1.bf16.msra.mxu0 0
        %3378 = vmatprep.subr.bf16.mxu0 0
        %3379 = vmatpush1.bf16.msra.mxu0 0
        %3380 = vmatprep.subr.bf16.mxu0 0
        %3381 = vmatpush1.bf16.msra.mxu0 0
        %3382 = vmatprep.subr.bf16.mxu0 0
        %3383 = vmatpush1.bf16.msra.mxu0 0
        %3384 = vmatprep.subr.bf16.mxu0 0
        %3385 = vmatpush1.bf16.msra.mxu0 0
        %3386 = vmatprep.subr.bf16.mxu0 0
        %3387 = vmatpush1.bf16.msra.mxu0 %v3370
        %3388 = vmatprep.subr.bf16.mxu0 0
        %3389 = vmatpush2.bf16.msra.mxu0 0
        %3390 = vmatprep.subr.bf16.mxu0 0
        %3391 = vmatpush2.bf16.msra.mxu0 0
        %3392 = vmatprep.subr.bf16.mxu0 0
        %3393 = vmatpush2.bf16.msra.mxu0 0
        %3394 = vmatprep.subr.bf16.mxu0 0
        %3395 = vmatpush2.bf16.msra.mxu0 0
        %3396 = vmatprep.subr.bf16.mxu0 0
        %3397 = vmatpush2.bf16.msra.mxu0 0
        %3398 = vmatprep.subr.bf16.mxu0 0
        %3399 = vmatpush2.bf16.msra.mxu0 0
        %3400 = vmatprep.subr.bf16.mxu0 0
        %3401 = vmatpush2.bf16.msra.mxu0 0
        %3402 = vmatprep.subr.bf16.mxu0 0
        %3403 = vmatpush2.bf16.msra.mxu0 0
        %3404 = vmatprep.mubr.bf16.mxu0 0
        %3405 = vmatmul.mubr.bf16.gmra.mxu0 %v2244
        %v3406 = vpop.f32.mrf.mxu0
        %v3407 = vadd.f32 0.0, %v3406
        %v3408 = vpop.f32.mrf.mxu0
        %v3409 = vpop.f32.mrf.mxu0
        %v3410 = vadd.f32 0.0, %v3409
        %v3411 = vpop.f32.mrf.mxu0
        %3412 = vdwg.mxu0
        %v3413 = vadd.f32 %v3365, %v3407
        %v3414 = vadd.f32 %v3366, %v3410
        %3415 = vrot.lane.b32.xlu0 %v3036, 106
        %v3416 = vpop.permute.xlu0 %3415
        %v3418 = vsel %vm1454, %v3416, 0
        %3420 = vmatprep.subr.bf16.mxu0 0
        %3421 = vmatpush1.bf16.msra.mxu0 0
        %3422 = vmatprep.subr.bf16.mxu0 0
        %3423 = vmatpush1.bf16.msra.mxu0 0
        %3424 = vmatprep.subr.bf16.mxu0 0
        %3425 = vmatpush1.bf16.msra.mxu0 0
        %3426 = vmatprep.subr.bf16.mxu0 0
        %3427 = vmatpush1.bf16.msra.mxu0 0
        %3428 = vmatprep.subr.bf16.mxu0 0
        %3429 = vmatpush1.bf16.msra.mxu0 0
        %3430 = vmatprep.subr.bf16.mxu0 0
        %3431 = vmatpush1.bf16.msra.mxu0 0
        %3432 = vmatprep.subr.bf16.mxu0 0
        %3433 = vmatpush1.bf16.msra.mxu0 0
        %3434 = vmatprep.subr.bf16.mxu0 0
        %3435 = vmatpush1.bf16.msra.mxu0 %v3418
        %3436 = vmatprep.subr.bf16.mxu0 0
        %3437 = vmatpush2.bf16.msra.mxu0 0
        %3438 = vmatprep.subr.bf16.mxu0 0
        %3439 = vmatpush2.bf16.msra.mxu0 0
        %3440 = vmatprep.subr.bf16.mxu0 0
        %3441 = vmatpush2.bf16.msra.mxu0 0
        %3442 = vmatprep.subr.bf16.mxu0 0
        %3443 = vmatpush2.bf16.msra.mxu0 0
        %3444 = vmatprep.subr.bf16.mxu0 0
        %3445 = vmatpush2.bf16.msra.mxu0 0
        %3446 = vmatprep.subr.bf16.mxu0 0
        %3447 = vmatpush2.bf16.msra.mxu0 0
        %3448 = vmatprep.subr.bf16.mxu0 0
        %3449 = vmatpush2.bf16.msra.mxu0 0
        %3450 = vmatprep.subr.bf16.mxu0 0
        %3451 = vmatpush2.bf16.msra.mxu0 0
        %3452 = vmatprep.mubr.bf16.mxu0 0
        %3453 = vmatmul.mubr.bf16.gmra.mxu0 %v2360
        %v3454 = vpop.f32.mrf.mxu0
        %v3455 = vadd.f32 0.0, %v3454
        %v3456 = vpop.f32.mrf.mxu0
        %v3457 = vpop.f32.mrf.mxu0
        %v3458 = vadd.f32 0.0, %v3457
        %v3459 = vpop.f32.mrf.mxu0
        %3460 = vdwg.mxu0
        %v3461 = vadd.f32 %v3413, %v3455
        %v3462 = vadd.f32 %v3414, %v3458
        %v3463 = vadd.f32 %v3461, %v2464
        %v3464 = vadd.f32 %v3462, %v2469
        %vm3465 = vcmask 654336
        %3466 = vst.msk [vmem:[%s297] sm:$0xff] %vm3465, %v3463
        %3467 = vst.msk [vmem:[%s297 + $0x8] sm:$0xff] %vm3465, %v3464
        %vm3468 = vcmask 1048192
        %3469 = vst.msk [vmem:[%s297] sm:$0xff] %vm3468, 0.0
        %3470 = vst.msk [vmem:[%s297 + $0x8] sm:$0xff] %vm3468, 0.0
        %p3471 = scmp.lt.s32.totalorder %s23, 1
        %s3472 = scalar_select %p3471, %s23, 1
        %s3473 = smul.addr %s3472, 6
        %s3474 = smul.addr %s3473, 8
        %s3475 = scalar_lea.vmem %s4, %s3474
        %p3476 = scmp.lt.s32.totalorder %s23, 1
        %s3477 = scalar_select %p3476, %s23, 1
        %s3478 = smul.addr %s3477, 2
        %s3479 = smul.addr %s3478, 8
        %s3480 = scalar_lea.vmem %s5, %s3479
        // Predicated region
        $region45: #{_datehead_forward.1} parent=35 // pred_check
          %p3481 = pneg %p135
        $region46: #{_datehead_forward.1} parent=35 // pred_check_branch
          %3483 = sbr.rel (%p3481) target = $region48
        $region47: #{_datehead_forward.1} parent=35 // pred_region
          _
        $region48: #{_datehead_forward.1} parent=35 // pred_fallthru
          _
        // Predicated region
        $region49: #{_datehead_forward.1} parent=35 // pred_check
          %p3484 = pneg %p161
        $region50: #{_datehead_forward.1} parent=35 // pred_check_branch
          %3486 = sbr.rel (%p3484) target = $region52
        $region51: #{_datehead_forward.1} parent=35 // pred_region
          _
        $region52: #{_datehead_forward.1} parent=35 // pred_fallthru
          _
      $region36: #{_datehead_forward.1} parent=5 // pred_fallthru
        _
      %p3487 = scmp.le.s32.totalorder 2, %s18
      // Predicated region
      $region53: #{_datehead_forward.1} parent=5 // pred_check
        %p3488 = pneg %p3487
      $region54: #{_datehead_forward.1} parent=5 // pred_check_branch
        %3490 = sbr.rel (%p3488) target = $region56
      $region55: #{_datehead_forward.1} parent=5 // pred_region
        %s3491 = ssub.s32 %s18, 2
        // Predicated region
        $region57: #{_datehead_forward.1} parent=55 // pred_check
          %p3492 = pneg %p141
        $region58: #{_datehead_forward.1} parent=55 // pred_check_branch
          %3494 = sbr.rel (%p3492) target = $region60
        $region59: #{_datehead_forward.1} parent=55 // pred_region
          %p3495 = scmp.lt.s32.totalorder %s24, 1
          %s3496 = scalar_select %p3495, %s24, 1
          %s3497 = smul.addr %s3496, 6
          %s3498 = smul.addr %s3497, 8
          %s3499 = scalar_lea.vmem %s4, %s3498
        $region60: #{_datehead_forward.1} parent=55 // pred_fallthru
          _
        // Predicated region
        $region61: #{_datehead_forward.1} parent=55 // pred_check
          %p3500 = pneg %p167
        $region62: #{_datehead_forward.1} parent=55 // pred_check_branch
          %3502 = sbr.rel (%p3500) target = $region64
        $region63: #{_datehead_forward.1} parent=55 // pred_region
          %p3503 = scmp.lt.s32.totalorder %s24, 1
          %s3504 = scalar_select %p3503, %s24, 1
          %s3505 = smul.addr %s3504, 2
          %s3506 = smul.addr %s3505, 8
          %s3507 = scalar_lea.vmem %s5, %s3506
        $region64: #{_datehead_forward.1} parent=55 // pred_fallthru
          _
      $region56: #{_datehead_forward.1} parent=5 // pred_fallthru
        _
    $region6: #{_datehead_forward.1} parent=1 // loop_footer
      %s22 = sadd.s32 1, %s18
    $region7: #{_datehead_forward.1} parent=1 // loop_footer_branch
      %17 = sbr.rel target = $region3
    $region8: #{_datehead_forward.1} parent=1 // loop_exit
      _
    %3508 = vsyncpa [#allocation5], 1
    %s3509 = scalar_lea.sflag [#allocation5], 1
    %3510 = vsyncpa %s3509, 1
    %3511 = vsyncpa [#allocation7], 1
    %s3512 = scalar_lea.sflag [#allocation7], 1
    %3513 = vsyncpa %s3512, 1

</llo_original>
